<compile_context>
chip_gen: v6e
topology: v6e:2x2x1
jax: 0.10.0
libtpu: 0.0.40
codegen_flags: <defaults>
</compile_context>

<pallas_src>
import functools

import jax
import jax.numpy as jnp
from jax.experimental import pallas as pl
from jax.experimental.pallas import tpu as pltpu

H = W = 7  # spatial size implied by Linear(768) consistency (see note above)


def aux_head_kernel(x_ref, w1_ref, bns_ref, bnb_ref, w2_ref, wc_ref, bc_ref,
                    out_ref, *, pool_dtype):
    """One batch tile: ReLU -> AvgPool(5,s2) -> 1x1 conv -> BN -> ReLU
    -> 2x2 conv -> ReLU -> Linear (output padded to a 128-lane slab)."""
    # ReLU + pooling in bf16 on v6e/v7x (bf16 VALU), f32 elsewhere (v5e).
    x = jnp.maximum(x_ref[...].astype(pool_dtype), 0.0)            # (TN, 7, 7, C)
    tn = x.shape[0]

    # ---- separable 5x5 / stride-2 pooling (sums only; 1/25 folded into bn scale)
    # H direction (axis 1 is an untiled axis -> slices are whole (W, C) tiles);
    # windows start at h0 in {0, 2}; rows 2..4 are shared.
    mid_h = x[:, 2] + x[:, 3] + x[:, 4]                             # (TN, 7, C)
    sh0 = mid_h + x[:, 0] + x[:, 1]                                 # rows 0..4
    sh2 = mid_h + x[:, 5] + x[:, 6]                                 # rows 2..6
    # W direction (axis 1 of the (TN,7,C) slabs = sublane axis): windowed in-tile
    # sublane reductions instead of 12 per-column sublane extracts.
    p00 = jnp.sum(sh0[:, 0:5, :], axis=1)                           # (TN, C)
    p02 = jnp.sum(sh0[:, 2:7, :], axis=1)
    p20 = jnp.sum(sh2[:, 0:5, :], axis=1)
    p22 = jnp.sum(sh2[:, 2:7, :], axis=1)

    # ---- fused 1x1 conv: ONE (4*TN, C) @ (C, 128) MXU matmul (single weight push)
    pooled = jnp.concatenate([p00, p02, p20, p22], axis=0).astype(jnp.bfloat16)
    hp = jnp.dot(pooled, w1_ref[...], preferred_element_type=jnp.float32)  # (4TN,128)

    # BN (eval-mode stats + 1/25 pooling scale folded into bns) + ReLU, applied once
    # on the fused slab (no per-position broadcast re-materialization).
    # TODO(synk): training-mode BatchNorm (batch statistics) is not implemented.
    hp = jnp.maximum(hp * bns_ref[...] + bnb_ref[...], 0.0).astype(jnp.bfloat16)

    # ---- 2x2 conv as ONE K=512 matmul: lane-concat the 4 position blocks
    hp_cat = jnp.concatenate(
        [hp[0 * tn:1 * tn], hp[1 * tn:2 * tn], hp[2 * tn:3 * tn], hp[3 * tn:4 * tn]],
        axis=-1)                                                    # (TN, 512)
    z = jnp.maximum(
        jnp.dot(hp_cat, w2_ref[...], preferred_element_type=jnp.float32), 0.0)

    # classifier: Linear(768, num_classes), output padded to a 128-lane slab
    out_ref[...] = jnp.dot(z.astype(jnp.bfloat16), wc_ref[...],
                           preferred_element_type=jnp.float32) + bc_ref[...]


def _vmem_capacity_bytes():
    try:
        info = pltpu.get_tpu_info()
        cap = int(getattr(info, "vmem_capacity_bytes", 0) or 0)
        if cap > 0:
            return cap
    except Exception:
        pass
    return 64 * 1024 * 1024  # conservative default (v7x-sized)


def aux_head_forward(x_nhwc, params, num_classes, *, batch_tile=None):
    """x_nhwc: (N, 7, 7, C).  Producers should emit NHWC (ideally bf16) directly.
    Returns (N, num_classes) float32."""
    n, h, w, c = x_nhwc.shape
    assert (h, w) == (H, W), "this head expects a 7x7 spatial tap"
    w1, bn_scale, bn_bias, w2, wc, bc = params
    assert w1.shape[0] == c
    nc_pad = wc.shape[-1]

    # Stream the activation in bf16: for realistic C this head is input-DMA-bound,
    # so this halves HBM traffic (the kernel upcasts if pooling in f32).
    x_nhwc = x_nhwc.astype(jnp.bfloat16)

    # bf16 VALU exists on v6e / v7x; keep f32 pooling elsewhere (e.g. v5e).
    kind = getattr(jax.devices()[0], "device_kind", "").lower()
    pool_dtype = jnp.bfloat16 if ("v6" in kind or "v7" in kind) else jnp.float32

    # ---- generation-aware VMEM budget & batch-tile sizing --------------------
    vmem_phys = _vmem_capacity_bytes()
    if vmem_phys >= 128 * 1024 * 1024:          # v5e / v6e: 128 MiB physical
        input_budget = 40 * 1024 * 1024
        vmem_limit = 96 * 1024 * 1024
    else:                                        # v7x: 64 MiB physical
        input_budget = 20 * 1024 * 1024
        vmem_limit = 44 * 1024 * 1024
    vmem_limit = min(vmem_limit, (vmem_phys * 3) // 4)

    # per-batch-row VMEM bytes of the double-buffered input tile, accounting for
    # the (sublane, lane) layout padding of the trailing (W, C) dims.
    # TODO(synk): for C << 128 a lane-dense packing (fold W*C into the lane axis)
    #             would recover the wasted DMA/lane bandwidth; real DARTS taps
    #             have C >= 128 so plain NHWC is already lane-dense there.
    c_lanes = 128 * pl.cdiv(c, 128)
    per_row = 2 * H * 8 * c_lanes * x_nhwc.dtype.itemsize
    if batch_tile is None:
        batch_tile = max(8, (input_budget // per_row) // 8 * 8)    # no hard cap

    if batch_tile >= n:
        tn = n                                   # single tile: block == full array
    else:
        tn = max(8, (batch_tile // 8) * 8)       # sublane-friendly tile
    if n >= 16:
        # keep >=2 grid steps so dimension_semantics=("parallel",) can shard the
        # batch across both TensorCores on v7x (harmless on 1-TC chips).
        tn = min(tn, max(8, 8 * pl.cdiv(pl.cdiv(n, 2), 8)))
    n_pad = tn * pl.cdiv(n, tn)
    if n_pad != n:
        x_nhwc = jnp.pad(x_nhwc, ((0, n_pad - n), (0, 0), (0, 0), (0, 0)))

    # Advisory cost hint so XLA can schedule/overlap this tiny head.
    flops = 2 * n_pad * (4 * c * 128 + 512 * 768 + 768 * nc_pad)
    bytes_accessed = int(
        x_nhwc.size * x_nhwc.dtype.itemsize
        + sum(int(p.size) * p.dtype.itemsize
              for p in (w1, bn_scale, bn_bias, w2, wc, bc))
        + n_pad * nc_pad * 4)
    cost = pl.CostEstimate(flops=flops, transcendentals=0,
                           bytes_accessed=bytes_accessed)

    def weight_spec(shape, index_map, single_buffer):
        # Weight block index is constant (resident); single-buffer it so the saved
        # VMEM goes into a bigger input tile (matters most on v7x's 64 MiB).
        if single_buffer:
            try:
                return pl.BlockSpec(shape, index_map, pipeline_mode=pl.Buffered(1))
            except (TypeError, ValueError, AttributeError):
                pass
        return pl.BlockSpec(shape, index_map)

    def call(single_buffer_weights):
        in_specs = [
            pl.BlockSpec((tn, H, W, c), lambda i: (i, 0, 0, 0)),   # streamed per tile
            weight_spec(w1.shape, lambda i: (0, 0), single_buffer_weights),
            weight_spec(bn_scale.shape, lambda i: (0, 0), single_buffer_weights),
            weight_spec(bn_bias.shape, lambda i: (0, 0), single_buffer_weights),
            weight_spec(w2.shape, lambda i: (0, 0), single_buffer_weights),
            weight_spec(wc.shape, lambda i: (0, 0), single_buffer_weights),
            weight_spec(bc.shape, lambda i: (0, 0), single_buffer_weights),
        ]
        return pl.pallas_call(
            functools.partial(aux_head_kernel, pool_dtype=pool_dtype),
            out_shape=jax.ShapeDtypeStruct((n_pad, nc_pad), jnp.float32),
            grid=(n_pad // tn,),
            in_specs=in_specs,
            out_specs=pl.BlockSpec((tn, nc_pad), lambda i: (i, 0)),
            compiler_params=pltpu.CompilerParams(
                dimension_semantics=("parallel",),
                vmem_limit_bytes=vmem_limit,
            ),
            cost_estimate=cost,
        )(x_nhwc, w1, bn_scale, bn_bias, w2, wc, bc)

    try:
        out = call(True)
    except Exception:
        # Fallback for toolchains that reject single-buffered (Buffered(1)) specs.
        out = call(False)
    return out[:n, :num_classes]


def init_params(key, c_in, num_classes):
    """Deterministic synthetic parameters (shapes from the module __init__).
    Conv/linear weights are stored bf16 in matmul layout; BN scale/bias stay f32
    and fold in eval-mode BatchNorm statistics AND the 1/25 pooling normalization."""
    k1, k2, k3, k4, k5, k6, k7, k8 = jax.random.split(key, 8)
    nc_pad = 128 * pl.cdiv(num_classes, 128)

    # Conv2d(C, 128, 1, bias=False): PyTorch (128, C, 1, 1) -> ours (C, 128)
    w1 = (jax.random.normal(k1, (c_in, 128), jnp.float32) * 0.1).astype(jnp.bfloat16)

    # BatchNorm2d(128), eval-mode fold (+ 1/25 avg-pool scale folded into the scale)
    gamma = 1.0 + 0.1 * jax.random.normal(k2, (128,), jnp.float32)
    beta = 0.1 * jax.random.normal(k3, (128,), jnp.float32)
    running_mean = 0.05 * jax.random.normal(k4, (128,), jnp.float32)
    running_var = jnp.abs(1.0 + 0.1 * jax.random.normal(k5, (128,), jnp.float32))
    eps = 1e-5
    inv_std = gamma / jnp.sqrt(running_var + eps)
    bn_scale = (inv_std / 25.0).reshape(1, 128)                    # includes 1/25
    bn_bias = (beta - running_mean * inv_std).reshape(1, 128)

    # Conv2d(128, 768, 2, bias=False): PyTorch (768,128,2,2) -> ours (kh,kw,Cin,Cout),
    # flattened to (512, 768) so the 2x2 conv is a single K=512 matmul; row-block
    # order (0,0),(0,1),(1,0),(1,1) matches the pooled-position order in the kernel.
    w2 = (jax.random.normal(k6, (2, 2, 128, 768), jnp.float32) * 0.05
          ).reshape(512, 768).astype(jnp.bfloat16)

    # Linear(768, num_classes), padded to a lane-dense 128-wide output
    wc_full = jax.random.normal(k7, (768, num_classes), jnp.float32) * 0.02
    wc = jnp.zeros((768, nc_pad), jnp.float32).at[:, :num_classes].set(wc_full)
    wc = wc.astype(jnp.bfloat16)
    bc_full = jax.random.normal(k8, (num_classes,), jnp.float32) * 0.01
    bc = jnp.zeros((1, nc_pad), jnp.float32).at[0, :num_classes].set(bc_full)
    return w1, bn_scale, bn_bias, w2, wc, bc


def reference(x_nhwc, params, num_classes):
    """Pure-JAX f32 reference with identical math (weights upcast from bf16; the
    activation goes through the same bf16 streaming cast the wrapper applies)."""
    w1, bn_scale, bn_bias, w2, wc, bc = params
    x = jnp.maximum(x_nhwc.astype(jnp.bfloat16).astype(jnp.float32), 0.0)
    n = x.shape[0]
    pooled = jnp.stack(
        [jnp.sum(x[:, h0:h0 + 5, w0:w0 + 5, :], axis=(1, 2))
         for h0 in (0, 2) for w0 in (0, 2)], axis=1)               # (N, 4, C) sums
    h1 = jnp.maximum(pooled @ w1.astype(jnp.float32) * bn_scale + bn_bias, 0.0)
    z = jnp.maximum(h1.reshape(n, 512) @ w2.astype(jnp.float32), 0.0)
    out = z @ wc.astype(jnp.float32) + bc
    return out[:, :num_classes]


if __name__ == "__main__":
    key = jax.random.PRNGKey(0)
    kx, kp = jax.random.split(key)
    N, C, NUM_CLASSES = 2, 8, 10

    # PyTorch-layout input (N, C, 7, 7); the one-time NHWC transpose below stands
    # in for a producer that emits NHWC (ideally bf16) directly.
    x_nchw = jax.random.normal(kx, (N, C, H, W), jnp.float32)
    x_nhwc = jnp.transpose(x_nchw, (0, 2, 3, 1))

    params = init_params(kp, C, NUM_CLASSES)

    out = aux_head_forward(x_nhwc, params, NUM_CLASSES)
    out = jax.block_until_ready(out)

    ref = reference(x_nhwc, params, NUM_CLASSES)
    assert out.shape == (N, NUM_CLASSES)
    assert jnp.allclose(out, ref, rtol=2e-2, atol=2e-2), "mismatch vs reference"
    print("KERNEL_OK")
</pallas_src>

<mosaic_0001>
module attributes {stable_mosaic.version = 11 : i64} {
  func.func @aux_head_kernel(%arg0: i32, %arg1: memref<2x7x7x8xbf16, #tpu.memory_space<vmem>>, %arg2: memref<8x128xbf16, #tpu.memory_space<vmem>>, %arg3: memref<1x128xf32, #tpu.memory_space<vmem>>, %arg4: memref<1x128xf32, #tpu.memory_space<vmem>>, %arg5: memref<512x768xbf16, #tpu.memory_space<vmem>>, %arg6: memref<768x128xbf16, #tpu.memory_space<vmem>>, %arg7: memref<1x128xf32, #tpu.memory_space<vmem>>, %arg8: memref<2x128xf32, #tpu.memory_space<vmem>>) attributes {dimension_semantics = [#tpu.dimension_semantics<parallel>], iteration_bounds = array<i64: 1>, scalar_prefetch = 0 : i64, scratch_operands = 0 : i64, tpu.core_type = #tpu.core_type<tc>, window_params = [{transform_indices = @transform_0, window_bounds = array<i64: 2, 7, 7, 8>}, {pipeline_mode = #tpu.pipeline_mode<synchronous>, transform_indices = @transform_1, window_bounds = array<i64: 8, 128>}, {pipeline_mode = #tpu.pipeline_mode<synchronous>, transform_indices = @transform_2, window_bounds = array<i64: 1, 128>}, {pipeline_mode = #tpu.pipeline_mode<synchronous>, transform_indices = @transform_3, window_bounds = array<i64: 1, 128>}, {pipeline_mode = #tpu.pipeline_mode<synchronous>, transform_indices = @transform_4, window_bounds = array<i64: 512, 768>}, {pipeline_mode = #tpu.pipeline_mode<synchronous>, transform_indices = @transform_5, window_bounds = array<i64: 768, 128>}, {pipeline_mode = #tpu.pipeline_mode<synchronous>, transform_indices = @transform_6, window_bounds = array<i64: 1, 128>}, {transform_indices = @transform_7, window_bounds = array<i64: 2, 128>}]} {
    %c0 = arith.constant 0 : index
    %c0_0 = arith.constant 0 : index
    %c0_1 = arith.constant 0 : index
    %c0_2 = arith.constant 0 : index
    %0 = vector.load %arg1[%c0, %c0_0, %c0_1, %c0_2] : memref<2x7x7x8xbf16, #tpu.memory_space<vmem>>, vector<2x7x7x8xbf16>
    %1 = arith.extf %0 : vector<2x7x7x8xbf16> to vector<2x7x7x8xf32>
    %cst = arith.constant 0.000000e+00 : f32
    %2 = vector.broadcast %cst : f32 to vector<2x7x7x8xf32>
    %3 = arith.maximumf %1, %2 : vector<2x7x7x8xf32>
    %4 = vector.extract_strided_slice %3 {offsets = [0, 2, 0, 0], sizes = [2, 1, 7, 8], strides = [1, 1, 1, 1]} : vector<2x7x7x8xf32> to vector<2x1x7x8xf32>
    %5 = vector.shape_cast %4 : vector<2x1x7x8xf32> to vector<2x7x8xf32>
    %6 = vector.extract_strided_slice %3 {offsets = [0, 3, 0, 0], sizes = [2, 1, 7, 8], strides = [1, 1, 1, 1]} : vector<2x7x7x8xf32> to vector<2x1x7x8xf32>
    %7 = vector.shape_cast %6 : vector<2x1x7x8xf32> to vector<2x7x8xf32>
    %8 = arith.addf %5, %7 : vector<2x7x8xf32>
    %9 = vector.extract_strided_slice %3 {offsets = [0, 4, 0, 0], sizes = [2, 1, 7, 8], strides = [1, 1, 1, 1]} : vector<2x7x7x8xf32> to vector<2x1x7x8xf32>
    %10 = vector.shape_cast %9 : vector<2x1x7x8xf32> to vector<2x7x8xf32>
    %11 = arith.addf %8, %10 : vector<2x7x8xf32>
    %12 = vector.extract_strided_slice %3 {offsets = [0, 0, 0, 0], sizes = [2, 1, 7, 8], strides = [1, 1, 1, 1]} : vector<2x7x7x8xf32> to vector<2x1x7x8xf32>
    %13 = vector.shape_cast %12 : vector<2x1x7x8xf32> to vector<2x7x8xf32>
    %14 = arith.addf %11, %13 : vector<2x7x8xf32>
    %15 = vector.extract_strided_slice %3 {offsets = [0, 1, 0, 0], sizes = [2, 1, 7, 8], strides = [1, 1, 1, 1]} : vector<2x7x7x8xf32> to vector<2x1x7x8xf32>
    %16 = vector.shape_cast %15 : vector<2x1x7x8xf32> to vector<2x7x8xf32>
    %17 = arith.addf %14, %16 : vector<2x7x8xf32>
    %18 = vector.extract_strided_slice %3 {offsets = [0, 5, 0, 0], sizes = [2, 1, 7, 8], strides = [1, 1, 1, 1]} : vector<2x7x7x8xf32> to vector<2x1x7x8xf32>
    %19 = vector.shape_cast %18 : vector<2x1x7x8xf32> to vector<2x7x8xf32>
    %20 = arith.addf %11, %19 : vector<2x7x8xf32>
    %21 = vector.extract_strided_slice %3 {offsets = [0, 6, 0, 0], sizes = [2, 1, 7, 8], strides = [1, 1, 1, 1]} : vector<2x7x7x8xf32> to vector<2x1x7x8xf32>
    %22 = vector.shape_cast %21 : vector<2x1x7x8xf32> to vector<2x7x8xf32>
    %23 = arith.addf %20, %22 : vector<2x7x8xf32>
    %24 = vector.extract_strided_slice %17 {offsets = [0, 0, 0], sizes = [2, 5, 8], strides = [1, 1, 1]} : vector<2x7x8xf32> to vector<2x5x8xf32>
    %cst_3 = arith.constant dense<0.000000e+00> : vector<2x8xf32>
    %25 = vector.multi_reduction <add>, %24, %cst_3 [1] : vector<2x5x8xf32> to vector<2x8xf32>
    %26 = vector.extract_strided_slice %17 {offsets = [0, 2, 0], sizes = [2, 5, 8], strides = [1, 1, 1]} : vector<2x7x8xf32> to vector<2x5x8xf32>
    %cst_4 = arith.constant dense<0.000000e+00> : vector<2x8xf32>
    %27 = vector.multi_reduction <add>, %26, %cst_4 [1] : vector<2x5x8xf32> to vector<2x8xf32>
    %28 = vector.extract_strided_slice %23 {offsets = [0, 0, 0], sizes = [2, 5, 8], strides = [1, 1, 1]} : vector<2x7x8xf32> to vector<2x5x8xf32>
    %cst_5 = arith.constant dense<0.000000e+00> : vector<2x8xf32>
    %29 = vector.multi_reduction <add>, %28, %cst_5 [1] : vector<2x5x8xf32> to vector<2x8xf32>
    %30 = vector.extract_strided_slice %23 {offsets = [0, 2, 0], sizes = [2, 5, 8], strides = [1, 1, 1]} : vector<2x7x8xf32> to vector<2x5x8xf32>
    %cst_6 = arith.constant dense<0.000000e+00> : vector<2x8xf32>
    %31 = vector.multi_reduction <add>, %30, %cst_6 [1] : vector<2x5x8xf32> to vector<2x8xf32>
    %32 = tpu.concatenate %25, %27, %29, %31 in 0 : vector<2x8xf32>, vector<2x8xf32>, vector<2x8xf32>, vector<2x8xf32> -> vector<8x8xf32>
    %33 = arith.truncf %32 : vector<8x8xf32> to vector<8x8xbf16>
    %c0_7 = arith.constant 0 : index
    %c0_8 = arith.constant 0 : index
    %34 = vector.load %arg2[%c0_7, %c0_8] : memref<8x128xbf16, #tpu.memory_space<vmem>>, vector<8x128xbf16>
    %cst_9 = arith.constant dense<0.000000e+00> : vector<8x128xf32>
    %35 = tpu.matmul %33, %34, %cst_9 {dimension_numbers = #tpu.dot_dimension_numbers<[1], [0], [0], [1], [0, 0, 1, 1], [], []>} : vector<8x8xbf16>, vector<8x128xbf16>, vector<8x128xf32> -> vector<8x128xf32>
    %c0_10 = arith.constant 0 : index
    %c0_11 = arith.constant 0 : index
    %36 = vector.load %arg3[%c0_10, %c0_11] : memref<1x128xf32, #tpu.memory_space<vmem>>, vector<1x128xf32>
    %37 = vector.broadcast %36 : vector<1x128xf32> to vector<8x128xf32>
    %38 = arith.mulf %35, %37 : vector<8x128xf32>
    %c0_12 = arith.constant 0 : index
    %c0_13 = arith.constant 0 : index
    %39 = vector.load %arg4[%c0_12, %c0_13] : memref<1x128xf32, #tpu.memory_space<vmem>>, vector<1x128xf32>
    %40 = vector.broadcast %39 : vector<1x128xf32> to vector<8x128xf32>
    %41 = arith.addf %38, %40 : vector<8x128xf32>
    %cst_14 = arith.constant 0.000000e+00 : f32
    %42 = vector.broadcast %cst_14 : f32 to vector<8x128xf32>
    %43 = arith.maximumf %41, %42 : vector<8x128xf32>
    %44 = arith.truncf %43 : vector<8x128xf32> to vector<8x128xbf16>
    %45 = vector.extract_strided_slice %44 {offsets = [0, 0], sizes = [2, 128], strides = [1, 1]} : vector<8x128xbf16> to vector<2x128xbf16>
    %46 = vector.extract_strided_slice %44 {offsets = [2, 0], sizes = [2, 128], strides = [1, 1]} : vector<8x128xbf16> to vector<2x128xbf16>
    %47 = vector.extract_strided_slice %44 {offsets = [4, 0], sizes = [2, 128], strides = [1, 1]} : vector<8x128xbf16> to vector<2x128xbf16>
    %48 = vector.extract_strided_slice %44 {offsets = [6, 0], sizes = [2, 128], strides = [1, 1]} : vector<8x128xbf16> to vector<2x128xbf16>
    %49 = tpu.concatenate %45, %46, %47, %48 in 1 : vector<2x128xbf16>, vector<2x128xbf16>, vector<2x128xbf16>, vector<2x128xbf16> -> vector<2x512xbf16>
    %c0_15 = arith.constant 0 : index
    %c0_16 = arith.constant 0 : index
    %50 = vector.load %arg5[%c0_15, %c0_16] : memref<512x768xbf16, #tpu.memory_space<vmem>>, vector<512x768xbf16>
    %cst_17 = arith.constant dense<0.000000e+00> : vector<2x768xf32>
    %51 = tpu.matmul %49, %50, %cst_17 {dimension_numbers = #tpu.dot_dimension_numbers<[1], [0], [0], [1], [0, 0, 1, 1], [], []>} : vector<2x512xbf16>, vector<512x768xbf16>, vector<2x768xf32> -> vector<2x768xf32>
    %cst_18 = arith.constant 0.000000e+00 : f32
    %52 = vector.broadcast %cst_18 : f32 to vector<2x768xf32>
    %53 = arith.maximumf %51, %52 : vector<2x768xf32>
    %54 = arith.truncf %53 : vector<2x768xf32> to vector<2x768xbf16>
    %c0_19 = arith.constant 0 : index
    %c0_20 = arith.constant 0 : index
    %55 = vector.load %arg6[%c0_19, %c0_20] : memref<768x128xbf16, #tpu.memory_space<vmem>>, vector<768x128xbf16>
    %cst_21 = arith.constant dense<0.000000e+00> : vector<2x128xf32>
    %56 = tpu.matmul %54, %55, %cst_21 {dimension_numbers = #tpu.dot_dimension_numbers<[1], [0], [0], [1], [0, 0, 1, 1], [], []>} : vector<2x768xbf16>, vector<768x128xbf16>, vector<2x128xf32> -> vector<2x128xf32>
    %c0_22 = arith.constant 0 : index
    %c0_23 = arith.constant 0 : index
    %57 = vector.load %arg7[%c0_22, %c0_23] : memref<1x128xf32, #tpu.memory_space<vmem>>, vector<1x128xf32>
    %58 = vector.broadcast %57 : vector<1x128xf32> to vector<2x128xf32>
    %59 = arith.addf %56, %58 : vector<2x128xf32>
    %c0_24 = arith.constant 0 : index
    %c0_25 = arith.constant 0 : index
    %60 = vector.load %arg8[%c0_24, %c0_25] : memref<2x128xf32, #tpu.memory_space<vmem>>, vector<2x128xf32>
    tpu.vector_store %arg8[%c0_24, %c0_25], %59 {strides = array<i32>} : memref<2x128xf32, #tpu.memory_space<vmem>>, vector<2x128xf32>,
    return
  }
  func.func @transform_0(%arg0: i32) -> (i32, i32, i32, i32) {
    %c0_i32 = arith.constant 0 : i32
    %c0_i32_0 = arith.constant 0 : i32
    %c0_i32_1 = arith.constant 0 : i32
    %c0_i32_2 = arith.constant 0 : i32
    return %arg0, %c0_i32, %c0_i32_0, %c0_i32_1 : i32, i32, i32, i32
  }
  func.func @transform_1(%arg0: i32) -> (i32, i32) {
    %c0_i32 = arith.constant 0 : i32
    %c0_i32_0 = arith.constant 0 : i32
    %c0_i32_1 = arith.constant 0 : i32
    return %c0_i32, %c0_i32_0 : i32, i32
  }
  func.func @transform_2(%arg0: i32) -> (i32, i32) {
    %c0_i32 = arith.constant 0 : i32
    %c0_i32_0 = arith.constant 0 : i32
    %c0_i32_1 = arith.constant 0 : i32
    return %c0_i32, %c0_i32_0 : i32, i32
  }
  func.func @transform_3(%arg0: i32) -> (i32, i32) {
    %c0_i32 = arith.constant 0 : i32
    %c0_i32_0 = arith.constant 0 : i32
    %c0_i32_1 = arith.constant 0 : i32
    return %c0_i32, %c0_i32_0 : i32, i32
  }
  func.func @transform_4(%arg0: i32) -> (i32, i32) {
    %c0_i32 = arith.constant 0 : i32
    %c0_i32_0 = arith.constant 0 : i32
    %c0_i32_1 = arith.constant 0 : i32
    return %c0_i32, %c0_i32_0 : i32, i32
  }
  func.func @transform_5(%arg0: i32) -> (i32, i32) {
    %c0_i32 = arith.constant 0 : i32
    %c0_i32_0 = arith.constant 0 : i32
    %c0_i32_1 = arith.constant 0 : i32
    return %c0_i32, %c0_i32_0 : i32, i32
  }
  func.func @transform_6(%arg0: i32) -> (i32, i32) {
    %c0_i32 = arith.constant 0 : i32
    %c0_i32_0 = arith.constant 0 : i32
    %c0_i32_1 = arith.constant 0 : i32
    return %c0_i32, %c0_i32_0 : i32, i32
  }
  func.func @transform_7(%arg0: i32) -> (i32, i32) {
    %c0_i32 = arith.constant 0 : i32
    %c0_i32_0 = arith.constant 0 : i32
    return %arg0, %c0_i32 : i32, i32
  }
}

module attributes {stable_mosaic.version = 11 : i64} {
  func.func @aux_head_kernel(%arg0: i32, %arg1: memref<2x7x7x8xbf16, #tpu.memory_space<vmem>>, %arg2: memref<8x128xbf16, #tpu.memory_space<vmem>>, %arg3: memref<1x128xf32, #tpu.memory_space<vmem>>, %arg4: memref<1x128xf32, #tpu.memory_space<vmem>>, %arg5: memref<512x768xbf16, #tpu.memory_space<vmem>>, %arg6: memref<768x128xbf16, #tpu.memory_space<vmem>>, %arg7: memref<1x128xf32, #tpu.memory_space<vmem>>, %arg8: memref<2x128xf32, #tpu.memory_space<vmem>>) attributes {dimension_semantics = [#tpu.dimension_semantics<parallel>], iteration_bounds = array<i64: 1>, scalar_prefetch = 0 : i64, scratch_operands = 0 : i64, tpu.core_type = #tpu.core_type<tc>, window_params = [{transform_indices = @transform_0, window_bounds = array<i64: 2, 7, 7, 8>}, {pipeline_mode = #tpu.pipeline_mode<synchronous>, transform_indices = @transform_1, window_bounds = array<i64: 8, 128>}, {pipeline_mode = #tpu.pipeline_mode<synchronous>, transform_indices = @transform_2, window_bounds = array<i64: 1, 128>}, {pipeline_mode = #tpu.pipeline_mode<synchronous>, transform_indices = @transform_3, window_bounds = array<i64: 1, 128>}, {pipeline_mode = #tpu.pipeline_mode<synchronous>, transform_indices = @transform_4, window_bounds = array<i64: 512, 768>}, {pipeline_mode = #tpu.pipeline_mode<synchronous>, transform_indices = @transform_5, window_bounds = array<i64: 768, 128>}, {pipeline_mode = #tpu.pipeline_mode<synchronous>, transform_indices = @transform_6, window_bounds = array<i64: 1, 128>}, {transform_indices = @transform_7, window_bounds = array<i64: 2, 128>}]} {
    %c0 = arith.constant 0 : index
    %c0_0 = arith.constant 0 : index
    %c0_1 = arith.constant 0 : index
    %c0_2 = arith.constant 0 : index
    %0 = vector.load %arg1[%c0, %c0_0, %c0_1, %c0_2] : memref<2x7x7x8xbf16, #tpu.memory_space<vmem>>, vector<2x7x7x8xbf16>
    %1 = arith.extf %0 : vector<2x7x7x8xbf16> to vector<2x7x7x8xf32>
    %cst = arith.constant 0.000000e+00 : f32
    %2 = vector.broadcast %cst : f32 to vector<2x7x7x8xf32>
    %3 = arith.maximumf %1, %2 : vector<2x7x7x8xf32>
    %4 = vector.extract_strided_slice %3 {offsets = [0, 2, 0, 0], sizes = [2, 1, 7, 8], strides = [1, 1, 1, 1]} : vector<2x7x7x8xf32> to vector<2x1x7x8xf32>
    %5 = vector.shape_cast %4 : vector<2x1x7x8xf32> to vector<2x7x8xf32>
    %6 = vector.extract_strided_slice %3 {offsets = [0, 3, 0, 0], sizes = [2, 1, 7, 8], strides = [1, 1, 1, 1]} : vector<2x7x7x8xf32> to vector<2x1x7x8xf32>
    %7 = vector.shape_cast %6 : vector<2x1x7x8xf32> to vector<2x7x8xf32>
    %8 = arith.addf %5, %7 : vector<2x7x8xf32>
    %9 = vector.extract_strided_slice %3 {offsets = [0, 4, 0, 0], sizes = [2, 1, 7, 8], strides = [1, 1, 1, 1]} : vector<2x7x7x8xf32> to vector<2x1x7x8xf32>
    %10 = vector.shape_cast %9 : vector<2x1x7x8xf32> to vector<2x7x8xf32>
    %11 = arith.addf %8, %10 : vector<2x7x8xf32>
    %12 = vector.extract_strided_slice %3 {offsets = [0, 0, 0, 0], sizes = [2, 1, 7, 8], strides = [1, 1, 1, 1]} : vector<2x7x7x8xf32> to vector<2x1x7x8xf32>
    %13 = vector.shape_cast %12 : vector<2x1x7x8xf32> to vector<2x7x8xf32>
    %14 = arith.addf %11, %13 : vector<2x7x8xf32>
    %15 = vector.extract_strided_slice %3 {offsets = [0, 1, 0, 0], sizes = [2, 1, 7, 8], strides = [1, 1, 1, 1]} : vector<2x7x7x8xf32> to vector<2x1x7x8xf32>
    %16 = vector.shape_cast %15 : vector<2x1x7x8xf32> to vector<2x7x8xf32>
    %17 = arith.addf %14, %16 : vector<2x7x8xf32>
    %18 = vector.extract_strided_slice %3 {offsets = [0, 5, 0, 0], sizes = [2, 1, 7, 8], strides = [1, 1, 1, 1]} : vector<2x7x7x8xf32> to vector<2x1x7x8xf32>
    %19 = vector.shape_cast %18 : vector<2x1x7x8xf32> to vector<2x7x8xf32>
    %20 = arith.addf %11, %19 : vector<2x7x8xf32>
    %21 = vector.extract_strided_slice %3 {offsets = [0, 6, 0, 0], sizes = [2, 1, 7, 8], strides = [1, 1, 1, 1]} : vector<2x7x7x8xf32> to vector<2x1x7x8xf32>
    %22 = vector.shape_cast %21 : vector<2x1x7x8xf32> to vector<2x7x8xf32>
    %23 = arith.addf %20, %22 : vector<2x7x8xf32>
    %24 = vector.extract_strided_slice %17 {offsets = [0, 0, 0], sizes = [2, 5, 8], strides = [1, 1, 1]} : vector<2x7x8xf32> to vector<2x5x8xf32>
    %cst_3 = arith.constant dense<0.000000e+00> : vector<2x8xf32>
    %25 = vector.multi_reduction <add>, %24, %cst_3 [1] : vector<2x5x8xf32> to vector<2x8xf32>
    %26 = vector.extract_strided_slice %17 {offsets = [0, 2, 0], sizes = [2, 5, 8], strides = [1, 1, 1]} : vector<2x7x8xf32> to vector<2x5x8xf32>
    %cst_4 = arith.constant dense<0.000000e+00> : vector<2x8xf32>
    %27 = vector.multi_reduction <add>, %26, %cst_4 [1] : vector<2x5x8xf32> to vector<2x8xf32>
    %28 = vector.extract_strided_slice %23 {offsets = [0, 0, 0], sizes = [2, 5, 8], strides = [1, 1, 1]} : vector<2x7x8xf32> to vector<2x5x8xf32>
    %cst_5 = arith.constant dense<0.000000e+00> : vector<2x8xf32>
    %29 = vector.multi_reduction <add>, %28, %cst_5 [1] : vector<2x5x8xf32> to vector<2x8xf32>
    %30 = vector.extract_strided_slice %23 {offsets = [0, 2, 0], sizes = [2, 5, 8], strides = [1, 1, 1]} : vector<2x7x8xf32> to vector<2x5x8xf32>
    %cst_6 = arith.constant dense<0.000000e+00> : vector<2x8xf32>
    %31 = vector.multi_reduction <add>, %30, %cst_6 [1] : vector<2x5x8xf32> to vector<2x8xf32>
    %32 = tpu.concatenate %25, %27, %29, %31 in 0 : vector<2x8xf32>, vector<2x8xf32>, vector<2x8xf32>, vector<2x8xf32> -> vector<8x8xf32>
    %33 = arith.truncf %32 : vector<8x8xf32> to vector<8x8xbf16>
    %c0_7 = arith.constant 0 : index
    %c0_8 = arith.constant 0 : index
    %34 = vector.load %arg2[%c0_7, %c0_8] : memref<8x128xbf16, #tpu.memory_space<vmem>>, vector<8x128xbf16>
    %cst_9 = arith.constant dense<0.000000e+00> : vector<8x128xf32>
    %35 = tpu.matmul %33, %34, %cst_9 {dimension_numbers = #tpu.dot_dimension_numbers<[1], [0], [0], [1], [0, 0, 1, 1], [], []>} : vector<8x8xbf16>, vector<8x128xbf16>, vector<8x128xf32> -> vector<8x128xf32>
    %c0_10 = arith.constant 0 : index
    %c0_11 = arith.constant 0 : index
    %36 = vector.load %arg3[%c0_10, %c0_11] : memref<1x128xf32, #tpu.memory_space<vmem>>, vector<1x128xf32>
    %37 = vector.broadcast %36 : vector<1x128xf32> to vector<8x128xf32>
    %38 = arith.mulf %35, %37 : vector<8x128xf32>
    %c0_12 = arith.constant 0 : index
    %c0_13 = arith.constant 0 : index
    %39 = vector.load %arg4[%c0_12, %c0_13] : memref<1x128xf32, #tpu.memory_space<vmem>>, vector<1x128xf32>
    %40 = vector.broadcast %39 : vector<1x128xf32> to vector<8x128xf32>
    %41 = arith.addf %38, %40 : vector<8x128xf32>
    %cst_14 = arith.constant 0.000000e+00 : f32
    %42 = vector.broadcast %cst_14 : f32 to vector<8x128xf32>
    %43 = arith.maximumf %41, %42 : vector<8x128xf32>
    %44 = arith.truncf %43 : vector<8x128xf32> to vector<8x128xbf16>
    %45 = vector.extract_strided_slice %44 {offsets = [0, 0], sizes = [2, 128], strides = [1, 1]} : vector<8x128xbf16> to vector<2x128xbf16>
    %46 = vector.extract_strided_slice %44 {offsets = [2, 0], sizes = [2, 128], strides = [1, 1]} : vector<8x128xbf16> to vector<2x128xbf16>
    %47 = vector.extract_strided_slice %44 {offsets = [4, 0], sizes = [2, 128], strides = [1, 1]} : vector<8x128xbf16> to vector<2x128xbf16>
    %48 = vector.extract_strided_slice %44 {offsets = [6, 0], sizes = [2, 128], strides = [1, 1]} : vector<8x128xbf16> to vector<2x128xbf16>
    %49 = tpu.concatenate %45, %46, %47, %48 in 1 : vector<2x128xbf16>, vector<2x128xbf16>, vector<2x128xbf16>, vector<2x128xbf16> -> vector<2x512xbf16>
    %c0_15 = arith.constant 0 : index
    %c0_16 = arith.constant 0 : index
    %50 = vector.load %arg5[%c0_15, %c0_16] : memref<512x768xbf16, #tpu.memory_space<vmem>>, vector<512x768xbf16>
    %cst_17 = arith.constant dense<0.000000e+00> : vector<2x768xf32>
    %51 = tpu.matmul %49, %50, %cst_17 {dimension_numbers = #tpu.dot_dimension_numbers<[1], [0], [0], [1], [0, 0, 1, 1], [], []>} : vector<2x512xbf16>, vector<512x768xbf16>, vector<2x768xf32> -> vector<2x768xf32>
    %cst_18 = arith.constant 0.000000e+00 : f32
    %52 = vector.broadcast %cst_18 : f32 to vector<2x768xf32>
    %53 = arith.maximumf %51, %52 : vector<2x768xf32>
    %54 = arith.truncf %53 : vector<2x768xf32> to vector<2x768xbf16>
    %c0_19 = arith.constant 0 : index
    %c0_20 = arith.constant 0 : index
    %55 = vector.load %arg6[%c0_19, %c0_20] : memref<768x128xbf16, #tpu.memory_space<vmem>>, vector<768x128xbf16>
    %cst_21 = arith.constant dense<0.000000e+00> : vector<2x128xf32>
    %56 = tpu.matmul %54, %55, %cst_21 {dimension_numbers = #tpu.dot_dimension_numbers<[1], [0], [0], [1], [0, 0, 1, 1], [], []>} : vector<2x768xbf16>, vector<768x128xbf16>, vector<2x128xf32> -> vector<2x128xf32>
    %c0_22 = arith.constant 0 : index
    %c0_23 = arith.constant 0 : index
    %57 = vector.load %arg7[%c0_22, %c0_23] : memref<1x128xf32, #tpu.memory_space<vmem>>, vector<1x128xf32>
    %58 = vector.broadcast %57 : vector<1x128xf32> to vector<2x128xf32>
    %59 = arith.addf %56, %58 : vector<2x128xf32>
    %c0_24 = arith.constant 0 : index
    %c0_25 = arith.constant 0 : index
    %60 = vector.load %arg8[%c0_24, %c0_25] : memref<2x128xf32, #tpu.memory_space<vmem>>, vector<2x128xf32>
    tpu.vector_store %arg8[%c0_24, %c0_25], %59 {strides = array<i32>} : memref<2x128xf32, #tpu.memory_space<vmem>>, vector<2x128xf32>,
    return
  }
  func.func @transform_0(%arg0: i32) -> (i32, i32, i32, i32) {
    %c0_i32 = arith.constant 0 : i32
    %c0_i32_0 = arith.constant 0 : i32
    %c0_i32_1 = arith.constant 0 : i32
    %c0_i32_2 = arith.constant 0 : i32
    return %arg0, %c0_i32, %c0_i32_0, %c0_i32_1 : i32, i32, i32, i32
  }
  func.func @transform_1(%arg0: i32) -> (i32, i32) {
    %c0_i32 = arith.constant 0 : i32
    %c0_i32_0 = arith.constant 0 : i32
    %c0_i32_1 = arith.constant 0 : i32
    return %c0_i32, %c0_i32_0 : i32, i32
  }
  func.func @transform_2(%arg0: i32) -> (i32, i32) {
    %c0_i32 = arith.constant 0 : i32
    %c0_i32_0 = arith.constant 0 : i32
    %c0_i32_1 = arith.constant 0 : i32
    return %c0_i32, %c0_i32_0 : i32, i32
  }
  func.func @transform_3(%arg0: i32) -> (i32, i32) {
    %c0_i32 = arith.constant 0 : i32
    %c0_i32_0 = arith.constant 0 : i32
    %c0_i32_1 = arith.constant 0 : i32
    return %c0_i32, %c0_i32_0 : i32, i32
  }
  func.func @transform_4(%arg0: i32) -> (i32, i32) {
    %c0_i32 = arith.constant 0 : i32
    %c0_i32_0 = arith.constant 0 : i32
    %c0_i32_1 = arith.constant 0 : i32
    return %c0_i32, %c0_i32_0 : i32, i32
  }
  func.func @transform_5(%arg0: i32) -> (i32, i32) {
    %c0_i32 = arith.constant 0 : i32
    %c0_i32_0 = arith.constant 0 : i32
    %c0_i32_1 = arith.constant 0 : i32
    return %c0_i32, %c0_i32_0 : i32, i32
  }
  func.func @transform_6(%arg0: i32) -> (i32, i32) {
    %c0_i32 = arith.constant 0 : i32
    %c0_i32_0 = arith.constant 0 : i32
    %c0_i32_1 = arith.constant 0 : i32
    return %c0_i32, %c0_i32_0 : i32, i32
  }
  func.func @transform_7(%arg0: i32) -> (i32, i32) {
    %c0_i32 = arith.constant 0 : i32
    %c0_i32_0 = arith.constant 0 : i32
    return %arg0, %c0_i32 : i32, i32
  }
}

</mosaic_0001>

<llo_original>
// kernel: tpu_custom_call.1
$region0: #{tpu_custom_call.1}
  #allocation0 [shape = 'u32[]', space=smem, size = 0x4, offset = 0x4, fixed_abs, tag = 'smem constant byte address 0x4 - core index']
  #allocation1 [shape = 'u32[144,128]{1,0:T(1,128)}', space=vmem, size = 0x12000, scoped, tag = 'internal scratch']
  %s0 = inlined_call_operand.vmem [shape: bf16[2,7,7,8], index: 0, kind: input, shape index: {}]
  %s1 = inlined_call_operand.vmem [shape: bf16[8,128], index: 1, kind: input, shape index: {}]
  %s2 = inlined_call_operand.vmem [shape: f32[1,128], index: 2, kind: input, shape index: {}]
  %s3 = inlined_call_operand.vmem [shape: f32[1,128], index: 3, kind: input, shape index: {}]
  %s4 = inlined_call_operand.hbm [shape: bf16[512,768], index: 4, kind: input, shape index: {}]
  %s5 = inlined_call_operand.hbm [shape: bf16[768,128], index: 5, kind: input, shape index: {}]
  %s6 = inlined_call_operand.vmem [shape: f32[1,128], index: 6, kind: input, shape index: {}]
  %s7 = inlined_call_operand.hbm [shape: f32[2,128], index: 7, kind: output, shape index: {}]
  %s8 = sld [smem:[#allocation0]]
  $region46: #{tpu_custom_call.1} parent=0
    _
  %s10 = ssub.s32 1, %s8
  %s11 = scalar_select 0, %s10, %s8
  $region1: #{tpu_custom_call.1} parent=0
    #allocation2 [shape = 'u8[786432]{0}', space=vmem, size = 0xc0000, scoped, tag = 'input window, operand 4, single buffered']
    #allocation3 [shape = 's32[1]{0}', space=sflag, size = 0x4, scoped, tag = 'scoped memory for tpu_custom_call.1']
    #allocation4 [shape = 's32[1]{0}', space=sflag, size = 0x4, scoped, tag = 'scoped memory for tpu_custom_call.1']
    #allocation5 [shape = 'u8[196608]{0}', space=vmem, size = 0x30000, scoped, tag = 'input window, operand 5, single buffered']
    #allocation6 [shape = 's32[1]{0}', space=sflag, size = 0x4, scoped, tag = 'scoped memory for tpu_custom_call.1']
    #allocation7 [shape = 'u8[1024]{0}', space=vmem, size = 0x400, scoped, tag = 'output window, operand 0, single buffered']
    %12 = vsyncpa [#allocation3], 0
    %13 = vsyncpa [#allocation6], 0
    %14 = vsyncpa [#allocation4], 0
    // Predicated region
    $region2: #{tpu_custom_call.1} parent=1 // pred_check
      _
    $region3: #{tpu_custom_call.1} parent=1 // pred_check_branch
      %16 = sbr.rel (0) target = $region5
    $region4: #{tpu_custom_call.1} parent=1 // pred_region
      _
    $region5: #{tpu_custom_call.1} parent=1 // pred_fallthru
      _
    // Predicated region
    $region6: #{tpu_custom_call.1} parent=1 // pred_check
      _
    $region7: #{tpu_custom_call.1} parent=1 // pred_check_branch
      %18 = sbr.rel (0) target = $region9
    $region8: #{tpu_custom_call.1} parent=1 // pred_region
      _
    $region9: #{tpu_custom_call.1} parent=1 // pred_fallthru
      _
    // Predicated region
    $region10: #{tpu_custom_call.1} parent=1 // pred_check
      _
    $region11: #{tpu_custom_call.1} parent=1 // pred_check_branch
      %20 = sbr.rel (0) target = $region13
    $region12: #{tpu_custom_call.1} parent=1 // pred_region
      _
    $region13: #{tpu_custom_call.1} parent=1 // pred_fallthru
      _
    // Predicated region
    $region14: #{tpu_custom_call.1} parent=1 // pred_check
      _
    $region15: #{tpu_custom_call.1} parent=1 // pred_check_branch
      %22 = sbr.rel (0) target = $region17
    $region16: #{tpu_custom_call.1} parent=1 // pred_region
      _
    $region17: #{tpu_custom_call.1} parent=1 // pred_fallthru
      _
    // Predicated region
    $region18: #{tpu_custom_call.1} parent=1 // pred_check
      _
    $region19: #{tpu_custom_call.1} parent=1 // pred_check_branch
      %24 = sbr.rel (0) target = $region21
    $region20: #{tpu_custom_call.1} parent=1 // pred_region
      %s26 = ssub.s32 24576, 24576
      %27 = vsyncadd [#allocation3], %s26
      %s28 = sshll.u32 [#allocation2], 4
      %s29 = int_to_ptr.vmem [resolvable:$true] %s28
      %34 = dma.hbm_to_vmem [thread:$0]  %s4, 24576, %s29, [#allocation3], 384, 384, 24
    $region21: #{tpu_custom_call.1} parent=1 // pred_fallthru
      _
    // Predicated region
    $region22: #{tpu_custom_call.1} parent=1 // pred_check
      _
    $region23: #{tpu_custom_call.1} parent=1 // pred_check_branch
      %36 = sbr.rel (0) target = $region25
    $region24: #{tpu_custom_call.1} parent=1 // pred_region
      %s38 = ssub.s32 6144, 6144
      %39 = vsyncadd [#allocation6], %s38
      %s40 = sshll.u32 [#allocation5], 4
      %s41 = int_to_ptr.vmem [resolvable:$true] %s40
      %46 = dma.hbm_to_vmem [thread:$0]  %s5, 6144, %s41, [#allocation6], 64, 64, 4
    $region25: #{tpu_custom_call.1} parent=1 // pred_fallthru
      _
    // Predicated region
    $region26: #{tpu_custom_call.1} parent=1 // pred_check
      _
    $region27: #{tpu_custom_call.1} parent=1 // pred_check_branch
      %48 = sbr.rel (0) target = $region29
    $region28: #{tpu_custom_call.1} parent=1 // pred_region
      _
    $region29: #{tpu_custom_call.1} parent=1 // pred_fallthru
      _
    // Predicated region
    $region30: #{tpu_custom_call.1} parent=1 // pred_check
      _
    $region31: #{tpu_custom_call.1} parent=1 // pred_check_branch
      %50 = sbr.rel (0) target = $region33
    $region32: #{tpu_custom_call.1} parent=1 // pred_region
      %51 = dma.done [#allocation3], 24576
    $region33: #{tpu_custom_call.1} parent=1 // pred_fallthru
      _
    // Predicated region
    $region34: #{tpu_custom_call.1} parent=1 // pred_check
      _
    $region35: #{tpu_custom_call.1} parent=1 // pred_check_branch
      %53 = sbr.rel (0) target = $region37
    $region36: #{tpu_custom_call.1} parent=1 // pred_region
      %54 = dma.done [#allocation6], 6144
    $region37: #{tpu_custom_call.1} parent=1 // pred_fallthru
      _
    %v56 = vld [vmem:[%s0] sm:$0xf]
    %v57 = vld [vmem:[%s0 + $0x4] sm:$0xf]
    %v58 = vld [vmem:[%s0 + $0x8] sm:$0xf]
    %v59 = vld [vmem:[%s0 + $0xc] sm:$0xf]
    %v60 = vld [vmem:[%s0 + $0x10] sm:$0xf]
    %v61 = vld [vmem:[%s0 + $0x14] sm:$0xf]
    %v62 = vld [vmem:[%s0 + $0x18] sm:$0xf]
    %v63 = vld [vmem:[%s0 + $0x1c] sm:$0xf]
    %v64 = vld [vmem:[%s0 + $0x20] sm:$0xf]
    %v65 = vld [vmem:[%s0 + $0x24] sm:$0xf]
    %v66 = vld [vmem:[%s0 + $0x28] sm:$0xf]
    %v67 = vld [vmem:[%s0 + $0x2c] sm:$0xf]
    %v68 = vld [vmem:[%s0 + $0x30] sm:$0xf]
    %v69 = vld [vmem:[%s0 + $0x34] sm:$0xf]
    %v70 = vunpack.c.l.bf16 %v56
    %v71 = vunpack.c.l.bf16 %v57
    %v72 = vunpack.c.l.bf16 %v58
    %v73 = vunpack.c.l.bf16 %v59
    %v74 = vunpack.c.l.bf16 %v60
    %v75 = vunpack.c.l.bf16 %v61
    %v76 = vunpack.c.l.bf16 %v62
    %v77 = vunpack.c.l.bf16 %v63
    %v78 = vunpack.c.l.bf16 %v64
    %v79 = vunpack.c.l.bf16 %v65
    %v80 = vunpack.c.l.bf16 %v66
    %v81 = vunpack.c.l.bf16 %v67
    %v82 = vunpack.c.l.bf16 %v68
    %v83 = vunpack.c.l.bf16 %v69
    %v84 = vmax.f32 %v70, 0.0
    %v85 = vmax.f32 %v71, 0.0
    %v86 = vmax.f32 %v72, 0.0
    %v87 = vmax.f32 %v73, 0.0
    %v88 = vmax.f32 %v74, 0.0
    %v89 = vmax.f32 %v75, 0.0
    %v90 = vmax.f32 %v76, 0.0
    %v91 = vmax.f32 %v77, 0.0
    %v92 = vmax.f32 %v78, 0.0
    %v93 = vmax.f32 %v79, 0.0
    %v94 = vmax.f32 %v80, 0.0
    %v95 = vmax.f32 %v81, 0.0
    %v96 = vmax.f32 %v82, 0.0
    %v97 = vmax.f32 %v83, 0.0
    %v98 = vadd.f32 %v86, %v87
    %v99 = vadd.f32 %v93, %v94
    %v100 = vadd.f32 %v98, %v88
    %v101 = vadd.f32 %v99, %v95
    %v102 = vadd.f32 %v100, %v84
    %v103 = vadd.f32 %v101, %v91
    %v104 = vadd.f32 %v102, %v85
    %v105 = vadd.f32 %v103, %v92
    %v106 = vadd.f32 %v100, %v89
    %v107 = vadd.f32 %v101, %v96
    %v108 = vadd.f32 %v106, %v90
    %v109 = vadd.f32 %v107, %v97
    %vm110 = vcmask 61440
    %v111 = vsel %vm110, %v104, 0.0
    %v112 = vrot.slane %v111, 4
    %v113 = vadd.f32 %v111, %v112
    %v114 = vrot.slane %v113, 2
    %v115 = vadd.f32 %v113, %v114
    %v116 = vrot.slane %v115, 1
    %v117 = vadd.f32 %v115, %v116
    %v118 = vsel %vm110, %v105, 0.0
    %v119 = vrot.slane %v118, 4
    %v120 = vadd.f32 %v118, %v119
    %v121 = vrot.slane %v120, 2
    %v122 = vadd.f32 %v120, %v121
    %v123 = vrot.slane %v122, 1
    %v124 = vadd.f32 %v122, %v123
    %v127 = vrot.slane %v104, 2
    %v128 = vrot.slane %v105, 2
    %v131 = vsel %vm110, %v127, 0.0
    %v132 = vrot.slane %v131, 4
    %v133 = vadd.f32 %v131, %v132
    %v134 = vrot.slane %v133, 2
    %v135 = vadd.f32 %v133, %v134
    %v136 = vrot.slane %v135, 1
    %v137 = vadd.f32 %v135, %v136
    %v138 = vsel %vm110, %v128, 0.0
    %v139 = vrot.slane %v138, 4
    %v140 = vadd.f32 %v138, %v139
    %v141 = vrot.slane %v140, 2
    %v142 = vadd.f32 %v140, %v141
    %v143 = vrot.slane %v142, 1
    %v144 = vadd.f32 %v142, %v143
    %v145 = vsel %vm110, %v108, 0.0
    %v146 = vrot.slane %v145, 4
    %v147 = vadd.f32 %v145, %v146
    %v148 = vrot.slane %v147, 2
    %v149 = vadd.f32 %v147, %v148
    %v150 = vrot.slane %v149, 1
    %v151 = vadd.f32 %v149, %v150
    %v152 = vsel %vm110, %v109, 0.0
    %v153 = vrot.slane %v152, 4
    %v154 = vadd.f32 %v152, %v153
    %v155 = vrot.slane %v154, 2
    %v156 = vadd.f32 %v154, %v155
    %v157 = vrot.slane %v156, 1
    %v158 = vadd.f32 %v156, %v157
    %v161 = vrot.slane %v108, 2
    %v162 = vrot.slane %v109, 2
    %v165 = vsel %vm110, %v161, 0.0
    %v166 = vrot.slane %v165, 4
    %v167 = vadd.f32 %v165, %v166
    %v168 = vrot.slane %v167, 2
    %v169 = vadd.f32 %v167, %v168
    %v170 = vrot.slane %v169, 1
    %v171 = vadd.f32 %v169, %v170
    %v172 = vsel %vm110, %v162, 0.0
    %v173 = vrot.slane %v172, 4
    %v174 = vadd.f32 %v172, %v173
    %v175 = vrot.slane %v174, 2
    %v176 = vadd.f32 %v174, %v175
    %v177 = vrot.slane %v176, 1
    %v178 = vadd.f32 %v176, %v177
    %vm181 = vcmask 1041409
    %v182 = vsel %vm181, %v124, %v117
    %vm186 = vcmask 1043459
    %v187 = vsel %vm186, %v144, %v137
    %vm191 = vcmask 1045509
    %v192 = vsel %vm191, %v158, %v151
    %vm196 = vcmask 1047559
    %v197 = vsel %vm196, %v178, %v171
    %vm199 = vcmask 1041408
    %v200 = vsel %vm199, %v182, %v187
    %vm201 = vcmask 1043456
    %v202 = vsel %vm201, %v200, %v192
    %vm203 = vcmask 1045504
    %v204 = vsel %vm203, %v202, %v197
    %v205 = vpack.c.bf16 %v204, %v204
    %v206 = vld [vmem:[%s1] sm:$0xf]
    %vm207 = vcmask 64512
    %v209 = vsel %vm207, %v205, 0
    %v212 = vsel %vm201, %v206, 0
    %214 = vmatprep.subr.bf16.mxu0 0
    %215 = vmatpush1.bf16.msra.mxu0 0
    %216 = vmatprep.subr.bf16.mxu0 0
    %217 = vmatpush1.bf16.msra.mxu0 0
    %218 = vmatprep.subr.bf16.mxu0 0
    %219 = vmatpush1.bf16.msra.mxu0 0
    %220 = vmatprep.subr.bf16.mxu0 0
    %221 = vmatpush1.bf16.msra.mxu0 0
    %222 = vmatprep.subr.bf16.mxu0 0
    %223 = vmatpush1.bf16.msra.mxu0 0
    %224 = vmatprep.subr.bf16.mxu0 0
    %225 = vmatpush1.bf16.msra.mxu0 0
    %226 = vmatprep.subr.bf16.mxu0 0
    %227 = vmatpush1.bf16.msra.mxu0 0
    %228 = vmatprep.subr.bf16.mxu0 0
    %229 = vmatpush1.bf16.msra.mxu0 %v212
    %230 = vmatprep.subr.bf16.mxu0 0
    %231 = vmatpush2.bf16.msra.mxu0 0
    %232 = vmatprep.subr.bf16.mxu0 0
    %233 = vmatpush2.bf16.msra.mxu0 0
    %234 = vmatprep.subr.bf16.mxu0 0
    %235 = vmatpush2.bf16.msra.mxu0 0
    %236 = vmatprep.subr.bf16.mxu0 0
    %237 = vmatpush2.bf16.msra.mxu0 0
    %238 = vmatprep.subr.bf16.mxu0 0
    %239 = vmatpush2.bf16.msra.mxu0 0
    %240 = vmatprep.subr.bf16.mxu0 0
    %241 = vmatpush2.bf16.msra.mxu0 0
    %242 = vmatprep.subr.bf16.mxu0 0
    %243 = vmatpush2.bf16.msra.mxu0 0
    %244 = vmatprep.subr.bf16.mxu0 0
    %245 = vmatpush2.bf16.msra.mxu0 0
    %246 = vmatprep.mubr.bf16.mxu0 0
    %247 = vmatmul.mubr.bf16.gmra.mxu0 %v209
    %v248 = vpop.f32.mrf.mxu0
    %v249 = vadd.f32 0.0, %v248
    %v250 = vpop.f32.mrf.mxu0
    %v251 = vpop.f32.mrf.mxu0
    %v252 = vpop.f32.mrf.mxu0
    %253 = vdwg.mxu0
    %v254 = vld [vmem:[%s2] sm:$0x1]
    %v256 = vlaneseq
    %v257 = vshrl.u32 %v256, 7
    %v258 = vsub.s32 0, %v257
    %v259 = vrot.slane %v254, %v258
    %v261 = vmul.f32 %v249, %v259
    %v262 = vld [vmem:[%s3] sm:$0x1]
    %v264 = vlaneseq
    %v265 = vshrl.u32 %v264, 7
    %v266 = vsub.s32 0, %v265
    %v267 = vrot.slane %v262, %v266
    %v269 = vadd.f32 %v261, %v267
    %v270 = vmax.f32 %v269, 0.0
    %v271 = vpack.c.bf16 %v270, %v270
    %v273 = vrot.slane %v271, 1
    %v275 = vrot.slane %v271, 2
    %v277 = vrot.slane %v271, 3
    %v279 = vld [vmem:[#allocation2] sm:$0xff]
    %v280 = vld [vmem:[#allocation2 + $0x8] sm:$0xff]
    %v281 = vld [vmem:[#allocation2 + $0x10] sm:$0xff]
    %v282 = vld [vmem:[#allocation2 + $0x18] sm:$0xff]
    %v283 = vld [vmem:[#allocation2 + $0x20] sm:$0xff]
    %v284 = vld [vmem:[#allocation2 + $0x28] sm:$0xff]
    %v285 = vld [vmem:[#allocation2 + $0x30] sm:$0xff]
    %v286 = vld [vmem:[#allocation2 + $0x38] sm:$0xff]
    %v287 = vld [vmem:[#allocation2 + $0x40] sm:$0xff]
    %v288 = vld [vmem:[#allocation2 + $0x48] sm:$0xff]
    %v289 = vld [vmem:[#allocation2 + $0x50] sm:$0xff]
    %v290 = vld [vmem:[#allocation2 + $0x58] sm:$0xff]
    %v291 = vld [vmem:[#allocation2 + $0x60] sm:$0xff]
    %v292 = vld [vmem:[#allocation2 + $0x68] sm:$0xff]
    %v293 = vld [vmem:[#allocation2 + $0x70] sm:$0xff]
    %v294 = vld [vmem:[#allocation2 + $0x78] sm:$0xff]
    %v295 = vld [vmem:[#allocation2 + $0x80] sm:$0xff]
    %v296 = vld [vmem:[#allocation2 + $0x88] sm:$0xff]
    %v297 = vld [vmem:[#allocation2 + $0x90] sm:$0xff]
    %v298 = vld [vmem:[#allocation2 + $0x98] sm:$0xff]
    %v299 = vld [vmem:[#allocation2 + $0xa0] sm:$0xff]
    %v300 = vld [vmem:[#allocation2 + $0xa8] sm:$0xff]
    %v301 = vld [vmem:[#allocation2 + $0xb0] sm:$0xff]
    %v302 = vld [vmem:[#allocation2 + $0xb8] sm:$0xff]
    %v303 = vld [vmem:[#allocation2 + $0xc0] sm:$0xff]
    %v304 = vld [vmem:[#allocation2 + $0xc8] sm:$0xff]
    %v305 = vld [vmem:[#allocation2 + $0xd0] sm:$0xff]
    %v306 = vld [vmem:[#allocation2 + $0xd8] sm:$0xff]
    %v307 = vld [vmem:[#allocation2 + $0xe0] sm:$0xff]
    %v308 = vld [vmem:[#allocation2 + $0xe8] sm:$0xff]
    %v309 = vld [vmem:[#allocation2 + $0xf0] sm:$0xff]
    %v310 = vld [vmem:[#allocation2 + $0xf8] sm:$0xff]
    %v311 = vld [vmem:[#allocation2 + $0x100] sm:$0xff]
    %v312 = vld [vmem:[#allocation2 + $0x108] sm:$0xff]
    %v313 = vld [vmem:[#allocation2 + $0x110] sm:$0xff]
    %v314 = vld [vmem:[#allocation2 + $0x118] sm:$0xff]
    %v315 = vld [vmem:[#allocation2 + $0x120] sm:$0xff]
    %v316 = vld [vmem:[#allocation2 + $0x128] sm:$0xff]
    %v317 = vld [vmem:[#allocation2 + $0x130] sm:$0xff]
    %v318 = vld [vmem:[#allocation2 + $0x138] sm:$0xff]
    %v319 = vld [vmem:[#allocation2 + $0x140] sm:$0xff]
    %v320 = vld [vmem:[#allocation2 + $0x148] sm:$0xff]
    %v321 = vld [vmem:[#allocation2 + $0x150] sm:$0xff]
    %v322 = vld [vmem:[#allocation2 + $0x158] sm:$0xff]
    %v323 = vld [vmem:[#allocation2 + $0x160] sm:$0xff]
    %v324 = vld [vmem:[#allocation2 + $0x168] sm:$0xff]
    %v325 = vld [vmem:[#allocation2 + $0x170] sm:$0xff]
    %v326 = vld [vmem:[#allocation2 + $0x178] sm:$0xff]
    %v327 = vld [vmem:[#allocation2 + $0x180] sm:$0xff]
    %v328 = vld [vmem:[#allocation2 + $0x188] sm:$0xff]
    %v329 = vld [vmem:[#allocation2 + $0x190] sm:$0xff]
    %v330 = vld [vmem:[#allocation2 + $0x198] sm:$0xff]
    %v331 = vld [vmem:[#allocation2 + $0x1a0] sm:$0xff]
    %v332 = vld [vmem:[#allocation2 + $0x1a8] sm:$0xff]
    %v333 = vld [vmem:[#allocation2 + $0x1b0] sm:$0xff]
    %v334 = vld [vmem:[#allocation2 + $0x1b8] sm:$0xff]
    %v335 = vld [vmem:[#allocation2 + $0x1c0] sm:$0xff]
    %v336 = vld [vmem:[#allocation2 + $0x1c8] sm:$0xff]
    %v337 = vld [vmem:[#allocation2 + $0x1d0] sm:$0xff]
    %v338 = vld [vmem:[#allocation2 + $0x1d8] sm:$0xff]
    %v339 = vld [vmem:[#allocation2 + $0x1e0] sm:$0xff]
    %v340 = vld [vmem:[#allocation2 + $0x1e8] sm:$0xff]
    %v341 = vld [vmem:[#allocation2 + $0x1f0] sm:$0xff]
    %v342 = vld [vmem:[#allocation2 + $0x1f8] sm:$0xff]
    %v343 = vld [vmem:[#allocation2 + $0x200] sm:$0xff]
    %v344 = vld [vmem:[#allocation2 + $0x208] sm:$0xff]
    %v345 = vld [vmem:[#allocation2 + $0x210] sm:$0xff]
    %v346 = vld [vmem:[#allocation2 + $0x218] sm:$0xff]
    %v347 = vld [vmem:[#allocation2 + $0x220] sm:$0xff]
    %v348 = vld [vmem:[#allocation2 + $0x228] sm:$0xff]
    %v349 = vld [vmem:[#allocation2 + $0x230] sm:$0xff]
    %v350 = vld [vmem:[#allocation2 + $0x238] sm:$0xff]
    %v351 = vld [vmem:[#allocation2 + $0x240] sm:$0xff]
    %v352 = vld [vmem:[#allocation2 + $0x248] sm:$0xff]
    %v353 = vld [vmem:[#allocation2 + $0x250] sm:$0xff]
    %v354 = vld [vmem:[#allocation2 + $0x258] sm:$0xff]
    %v355 = vld [vmem:[#allocation2 + $0x260] sm:$0xff]
    %v356 = vld [vmem:[#allocation2 + $0x268] sm:$0xff]
    %v357 = vld [vmem:[#allocation2 + $0x270] sm:$0xff]
    %v358 = vld [vmem:[#allocation2 + $0x278] sm:$0xff]
    %v359 = vld [vmem:[#allocation2 + $0x280] sm:$0xff]
    %v360 = vld [vmem:[#allocation2 + $0x288] sm:$0xff]
    %v361 = vld [vmem:[#allocation2 + $0x290] sm:$0xff]
    %v362 = vld [vmem:[#allocation2 + $0x298] sm:$0xff]
    %v363 = vld [vmem:[#allocation2 + $0x2a0] sm:$0xff]
    %v364 = vld [vmem:[#allocation2 + $0x2a8] sm:$0xff]
    %v365 = vld [vmem:[#allocation2 + $0x2b0] sm:$0xff]
    %v366 = vld [vmem:[#allocation2 + $0x2b8] sm:$0xff]
    %v367 = vld [vmem:[#allocation2 + $0x2c0] sm:$0xff]
    %v368 = vld [vmem:[#allocation2 + $0x2c8] sm:$0xff]
    %v369 = vld [vmem:[#allocation2 + $0x2d0] sm:$0xff]
    %v370 = vld [vmem:[#allocation2 + $0x2d8] sm:$0xff]
    %v371 = vld [vmem:[#allocation2 + $0x2e0] sm:$0xff]
    %v372 = vld [vmem:[#allocation2 + $0x2e8] sm:$0xff]
    %v373 = vld [vmem:[#allocation2 + $0x2f0] sm:$0xff]
    %v374 = vld [vmem:[#allocation2 + $0x2f8] sm:$0xff]
    %v375 = vld [vmem:[#allocation2 + $0x300] sm:$0xff]
    %v376 = vld [vmem:[#allocation2 + $0x308] sm:$0xff]
    %v377 = vld [vmem:[#allocation2 + $0x310] sm:$0xff]
    %v378 = vld [vmem:[#allocation2 + $0x318] sm:$0xff]
    %v379 = vld [vmem:[#allocation2 + $0x320] sm:$0xff]
    %v380 = vld [vmem:[#allocation2 + $0x328] sm:$0xff]
    %v381 = vld [vmem:[#allocation2 + $0x330] sm:$0xff]
    %v382 = vld [vmem:[#allocation2 + $0x338] sm:$0xff]
    %v383 = vld [vmem:[#allocation2 + $0x340] sm:$0xff]
    %v384 = vld [vmem:[#allocation2 + $0x348] sm:$0xff]
    %v385 = vld [vmem:[#allocation2 + $0x350] sm:$0xff]
    %v386 = vld [vmem:[#allocation2 + $0x358] sm:$0xff]
    %v387 = vld [vmem:[#allocation2 + $0x360] sm:$0xff]
    %v388 = vld [vmem:[#allocation2 + $0x368] sm:$0xff]
    %v389 = vld [vmem:[#allocation2 + $0x370] sm:$0xff]
    %v390 = vld [vmem:[#allocation2 + $0x378] sm:$0xff]
    %v391 = vld [vmem:[#allocation2 + $0x380] sm:$0xff]
    %v392 = vld [vmem:[#allocation2 + $0x388] sm:$0xff]
    %v393 = vld [vmem:[#allocation2 + $0x390] sm:$0xff]
    %v394 = vld [vmem:[#allocation2 + $0x398] sm:$0xff]
    %v395 = vld [vmem:[#allocation2 + $0x3a0] sm:$0xff]
    %v396 = vld [vmem:[#allocation2 + $0x3a8] sm:$0xff]
    %v397 = vld [vmem:[#allocation2 + $0x3b0] sm:$0xff]
    %v398 = vld [vmem:[#allocation2 + $0x3b8] sm:$0xff]
    %v399 = vld [vmem:[#allocation2 + $0x3c0] sm:$0xff]
    %v400 = vld [vmem:[#allocation2 + $0x3c8] sm:$0xff]
    %v401 = vld [vmem:[#allocation2 + $0x3d0] sm:$0xff]
    %v402 = vld [vmem:[#allocation2 + $0x3d8] sm:$0xff]
    %v403 = vld [vmem:[#allocation2 + $0x3e0] sm:$0xff]
    %v404 = vld [vmem:[#allocation2 + $0x3e8] sm:$0xff]
    %v405 = vld [vmem:[#allocation2 + $0x3f0] sm:$0xff]
    %v406 = vld [vmem:[#allocation2 + $0x3f8] sm:$0xff]
    %v407 = vld [vmem:[#allocation2 + $0x400] sm:$0xff]
    %v408 = vld [vmem:[#allocation2 + $0x408] sm:$0xff]
    %v409 = vld [vmem:[#allocation2 + $0x410] sm:$0xff]
    %v410 = vld [vmem:[#allocation2 + $0x418] sm:$0xff]
    %v411 = vld [vmem:[#allocation2 + $0x420] sm:$0xff]
    %v412 = vld [vmem:[#allocation2 + $0x428] sm:$0xff]
    %v413 = vld [vmem:[#allocation2 + $0x430] sm:$0xff]
    %v414 = vld [vmem:[#allocation2 + $0x438] sm:$0xff]
    %v415 = vld [vmem:[#allocation2 + $0x440] sm:$0xff]
    %v416 = vld [vmem:[#allocation2 + $0x448] sm:$0xff]
    %v417 = vld [vmem:[#allocation2 + $0x450] sm:$0xff]
    %v418 = vld [vmem:[#allocation2 + $0x458] sm:$0xff]
    %v419 = vld [vmem:[#allocation2 + $0x460] sm:$0xff]
    %v420 = vld [vmem:[#allocation2 + $0x468] sm:$0xff]
    %v421 = vld [vmem:[#allocation2 + $0x470] sm:$0xff]
    %v422 = vld [vmem:[#allocation2 + $0x478] sm:$0xff]
    %v423 = vld [vmem:[#allocation2 + $0x480] sm:$0xff]
    %v424 = vld [vmem:[#allocation2 + $0x488] sm:$0xff]
    %v425 = vld [vmem:[#allocation2 + $0x490] sm:$0xff]
    %v426 = vld [vmem:[#allocation2 + $0x498] sm:$0xff]
    %v427 = vld [vmem:[#allocation2 + $0x4a0] sm:$0xff]
    %v428 = vld [vmem:[#allocation2 + $0x4a8] sm:$0xff]
    %v429 = vld [vmem:[#allocation2 + $0x4b0] sm:$0xff]
    %v430 = vld [vmem:[#allocation2 + $0x4b8] sm:$0xff]
    %v431 = vld [vmem:[#allocation2 + $0x4c0] sm:$0xff]
    %v432 = vld [vmem:[#allocation2 + $0x4c8] sm:$0xff]
    %v433 = vld [vmem:[#allocation2 + $0x4d0] sm:$0xff]
    %v434 = vld [vmem:[#allocation2 + $0x4d8] sm:$0xff]
    %v435 = vld [vmem:[#allocation2 + $0x4e0] sm:$0xff]
    %v436 = vld [vmem:[#allocation2 + $0x4e8] sm:$0xff]
    %v437 = vld [vmem:[#allocation2 + $0x4f0] sm:$0xff]
    %v438 = vld [vmem:[#allocation2 + $0x4f8] sm:$0xff]
    %v439 = vld [vmem:[#allocation2 + $0x500] sm:$0xff]
    %v440 = vld [vmem:[#allocation2 + $0x508] sm:$0xff]
    %v441 = vld [vmem:[#allocation2 + $0x510] sm:$0xff]
    %v442 = vld [vmem:[#allocation2 + $0x518] sm:$0xff]
    %v443 = vld [vmem:[#allocation2 + $0x520] sm:$0xff]
    %v444 = vld [vmem:[#allocation2 + $0x528] sm:$0xff]
    %v445 = vld [vmem:[#allocation2 + $0x530] sm:$0xff]
    %v446 = vld [vmem:[#allocation2 + $0x538] sm:$0xff]
    %v447 = vld [vmem:[#allocation2 + $0x540] sm:$0xff]
    %v448 = vld [vmem:[#allocation2 + $0x548] sm:$0xff]
    %v449 = vld [vmem:[#allocation2 + $0x550] sm:$0xff]
    %v450 = vld [vmem:[#allocation2 + $0x558] sm:$0xff]
    %v451 = vld [vmem:[#allocation2 + $0x560] sm:$0xff]
    %v452 = vld [vmem:[#allocation2 + $0x568] sm:$0xff]
    %v453 = vld [vmem:[#allocation2 + $0x570] sm:$0xff]
    %v454 = vld [vmem:[#allocation2 + $0x578] sm:$0xff]
    %v455 = vld [vmem:[#allocation2 + $0x580] sm:$0xff]
    %v456 = vld [vmem:[#allocation2 + $0x588] sm:$0xff]
    %v457 = vld [vmem:[#allocation2 + $0x590] sm:$0xff]
    %v458 = vld [vmem:[#allocation2 + $0x598] sm:$0xff]
    %v459 = vld [vmem:[#allocation2 + $0x5a0] sm:$0xff]
    %v460 = vld [vmem:[#allocation2 + $0x5a8] sm:$0xff]
    %v461 = vld [vmem:[#allocation2 + $0x5b0] sm:$0xff]
    %v462 = vld [vmem:[#allocation2 + $0x5b8] sm:$0xff]
    %v463 = vld [vmem:[#allocation2 + $0x5c0] sm:$0xff]
    %v464 = vld [vmem:[#allocation2 + $0x5c8] sm:$0xff]
    %v465 = vld [vmem:[#allocation2 + $0x5d0] sm:$0xff]
    %v466 = vld [vmem:[#allocation2 + $0x5d8] sm:$0xff]
    %v467 = vld [vmem:[#allocation2 + $0x5e0] sm:$0xff]
    %v468 = vld [vmem:[#allocation2 + $0x5e8] sm:$0xff]
    %v469 = vld [vmem:[#allocation2 + $0x5f0] sm:$0xff]
    %v470 = vld [vmem:[#allocation2 + $0x5f8] sm:$0xff]
    %v663 = vunpack.c.l.b16 %v279
    %v664 = vunpack.c.h.b16 %v279
    %v665 = vunpack.c.l.b16 %v280
    %v666 = vunpack.c.h.b16 %v280
    %v667 = vunpack.c.l.b16 %v281
    %v668 = vunpack.c.h.b16 %v281
    %v669 = vunpack.c.l.b16 %v282
    %v670 = vunpack.c.h.b16 %v282
    %v671 = vunpack.c.l.b16 %v283
    %v672 = vunpack.c.h.b16 %v283
    %v673 = vunpack.c.l.b16 %v284
    %v674 = vunpack.c.h.b16 %v284
    %v675 = vunpack.c.l.b16 %v285
    %v676 = vunpack.c.h.b16 %v285
    %v677 = vunpack.c.l.b16 %v286
    %v678 = vunpack.c.h.b16 %v286
    %v679 = vunpack.c.l.b16 %v287
    %v680 = vunpack.c.h.b16 %v287
    %v681 = vunpack.c.l.b16 %v288
    %v682 = vunpack.c.h.b16 %v288
    %v683 = vunpack.c.l.b16 %v289
    %v684 = vunpack.c.h.b16 %v289
    %v685 = vunpack.c.l.b16 %v290
    %v686 = vunpack.c.h.b16 %v290
    %v687 = vunpack.c.l.b16 %v291
    %v688 = vunpack.c.h.b16 %v291
    %v689 = vunpack.c.l.b16 %v292
    %v690 = vunpack.c.h.b16 %v292
    %v691 = vunpack.c.l.b16 %v293
    %v692 = vunpack.c.h.b16 %v293
    %v693 = vunpack.c.l.b16 %v294
    %v694 = vunpack.c.h.b16 %v294
    %v695 = vunpack.c.l.b16 %v295
    %v696 = vunpack.c.h.b16 %v295
    %v697 = vunpack.c.l.b16 %v296
    %v698 = vunpack.c.h.b16 %v296
    %v699 = vunpack.c.l.b16 %v297
    %v700 = vunpack.c.h.b16 %v297
    %v701 = vunpack.c.l.b16 %v298
    %v702 = vunpack.c.h.b16 %v298
    %v703 = vunpack.c.l.b16 %v299
    %v704 = vunpack.c.h.b16 %v299
    %v705 = vunpack.c.l.b16 %v300
    %v706 = vunpack.c.h.b16 %v300
    %v707 = vunpack.c.l.b16 %v301
    %v708 = vunpack.c.h.b16 %v301
    %v709 = vunpack.c.l.b16 %v302
    %v710 = vunpack.c.h.b16 %v302
    %v711 = vunpack.c.l.b16 %v303
    %v712 = vunpack.c.h.b16 %v303
    %v713 = vunpack.c.l.b16 %v304
    %v714 = vunpack.c.h.b16 %v304
    %v715 = vunpack.c.l.b16 %v305
    %v716 = vunpack.c.h.b16 %v305
    %v717 = vunpack.c.l.b16 %v306
    %v718 = vunpack.c.h.b16 %v306
    %v719 = vunpack.c.l.b16 %v307
    %v720 = vunpack.c.h.b16 %v307
    %v721 = vunpack.c.l.b16 %v308
    %v722 = vunpack.c.h.b16 %v308
    %v723 = vunpack.c.l.b16 %v309
    %v724 = vunpack.c.h.b16 %v309
    %v725 = vunpack.c.l.b16 %v310
    %v726 = vunpack.c.h.b16 %v310
    %v727 = vunpack.c.l.b16 %v311
    %v728 = vunpack.c.h.b16 %v311
    %v729 = vunpack.c.l.b16 %v312
    %v730 = vunpack.c.h.b16 %v312
    %v731 = vunpack.c.l.b16 %v313
    %v732 = vunpack.c.h.b16 %v313
    %v733 = vunpack.c.l.b16 %v314
    %v734 = vunpack.c.h.b16 %v314
    %v735 = vunpack.c.l.b16 %v315
    %v736 = vunpack.c.h.b16 %v315
    %v737 = vunpack.c.l.b16 %v316
    %v738 = vunpack.c.h.b16 %v316
    %v739 = vunpack.c.l.b16 %v317
    %v740 = vunpack.c.h.b16 %v317
    %v741 = vunpack.c.l.b16 %v318
    %v742 = vunpack.c.h.b16 %v318
    %v743 = vunpack.c.l.b16 %v319
    %v744 = vunpack.c.h.b16 %v319
    %v745 = vunpack.c.l.b16 %v320
    %v746 = vunpack.c.h.b16 %v320
    %v747 = vunpack.c.l.b16 %v321
    %v748 = vunpack.c.h.b16 %v321
    %v749 = vunpack.c.l.b16 %v322
    %v750 = vunpack.c.h.b16 %v322
    %v751 = vunpack.c.l.b16 %v323
    %v752 = vunpack.c.h.b16 %v323
    %v753 = vunpack.c.l.b16 %v324
    %v754 = vunpack.c.h.b16 %v324
    %v755 = vunpack.c.l.b16 %v325
    %v756 = vunpack.c.h.b16 %v325
    %v757 = vunpack.c.l.b16 %v326
    %v758 = vunpack.c.h.b16 %v326
    %v759 = vunpack.c.l.b16 %v327
    %v760 = vunpack.c.h.b16 %v327
    %v761 = vunpack.c.l.b16 %v328
    %v762 = vunpack.c.h.b16 %v328
    %v763 = vunpack.c.l.b16 %v329
    %v764 = vunpack.c.h.b16 %v329
    %v765 = vunpack.c.l.b16 %v330
    %v766 = vunpack.c.h.b16 %v330
    %v767 = vunpack.c.l.b16 %v331
    %v768 = vunpack.c.h.b16 %v331
    %v769 = vunpack.c.l.b16 %v332
    %v770 = vunpack.c.h.b16 %v332
    %v771 = vunpack.c.l.b16 %v333
    %v772 = vunpack.c.h.b16 %v333
    %v773 = vunpack.c.l.b16 %v334
    %v774 = vunpack.c.h.b16 %v334
    %v775 = vunpack.c.l.b16 %v335
    %v776 = vunpack.c.h.b16 %v335
    %v777 = vunpack.c.l.b16 %v336
    %v778 = vunpack.c.h.b16 %v336
    %v779 = vunpack.c.l.b16 %v337
    %v780 = vunpack.c.h.b16 %v337
    %v781 = vunpack.c.l.b16 %v338
    %v782 = vunpack.c.h.b16 %v338
    %v783 = vunpack.c.l.b16 %v339
    %v784 = vunpack.c.h.b16 %v339
    %v785 = vunpack.c.l.b16 %v340
    %v786 = vunpack.c.h.b16 %v340
    %v787 = vunpack.c.l.b16 %v341
    %v788 = vunpack.c.h.b16 %v341
    %v789 = vunpack.c.l.b16 %v342
    %v790 = vunpack.c.h.b16 %v342
    %v791 = vunpack.c.l.b16 %v343
    %v792 = vunpack.c.h.b16 %v343
    %v793 = vunpack.c.l.b16 %v344
    %v794 = vunpack.c.h.b16 %v344
    %v795 = vunpack.c.l.b16 %v345
    %v796 = vunpack.c.h.b16 %v345
    %v797 = vunpack.c.l.b16 %v346
    %v798 = vunpack.c.h.b16 %v346
    %v799 = vunpack.c.l.b16 %v347
    %v800 = vunpack.c.h.b16 %v347
    %v801 = vunpack.c.l.b16 %v348
    %v802 = vunpack.c.h.b16 %v348
    %v803 = vunpack.c.l.b16 %v349
    %v804 = vunpack.c.h.b16 %v349
    %v805 = vunpack.c.l.b16 %v350
    %v806 = vunpack.c.h.b16 %v350
    %v807 = vunpack.c.l.b16 %v351
    %v808 = vunpack.c.h.b16 %v351
    %v809 = vunpack.c.l.b16 %v352
    %v810 = vunpack.c.h.b16 %v352
    %v811 = vunpack.c.l.b16 %v353
    %v812 = vunpack.c.h.b16 %v353
    %v813 = vunpack.c.l.b16 %v354
    %v814 = vunpack.c.h.b16 %v354
    %v815 = vunpack.c.l.b16 %v355
    %v816 = vunpack.c.h.b16 %v355
    %v817 = vunpack.c.l.b16 %v356
    %v818 = vunpack.c.h.b16 %v356
    %v819 = vunpack.c.l.b16 %v357
    %v820 = vunpack.c.h.b16 %v357
    %v821 = vunpack.c.l.b16 %v358
    %v822 = vunpack.c.h.b16 %v358
    %v823 = vunpack.c.l.b16 %v359
    %v824 = vunpack.c.h.b16 %v359
    %v825 = vunpack.c.l.b16 %v360
    %v826 = vunpack.c.h.b16 %v360
    %v827 = vunpack.c.l.b16 %v361
    %v828 = vunpack.c.h.b16 %v361
    %v829 = vunpack.c.l.b16 %v362
    %v830 = vunpack.c.h.b16 %v362
    %v831 = vunpack.c.l.b16 %v363
    %v832 = vunpack.c.h.b16 %v363
    %v833 = vunpack.c.l.b16 %v364
    %v834 = vunpack.c.h.b16 %v364
    %v835 = vunpack.c.l.b16 %v365
    %v836 = vunpack.c.h.b16 %v365
    %v837 = vunpack.c.l.b16 %v366
    %v838 = vunpack.c.h.b16 %v366
    %v839 = vunpack.c.l.b16 %v367
    %v840 = vunpack.c.h.b16 %v367
    %v841 = vunpack.c.l.b16 %v368
    %v842 = vunpack.c.h.b16 %v368
    %v843 = vunpack.c.l.b16 %v369
    %v844 = vunpack.c.h.b16 %v369
    %v845 = vunpack.c.l.b16 %v370
    %v846 = vunpack.c.h.b16 %v370
    %v847 = vunpack.c.l.b16 %v371
    %v848 = vunpack.c.h.b16 %v371
    %v849 = vunpack.c.l.b16 %v372
    %v850 = vunpack.c.h.b16 %v372
    %v851 = vunpack.c.l.b16 %v373
    %v852 = vunpack.c.h.b16 %v373
    %v853 = vunpack.c.l.b16 %v374
    %v854 = vunpack.c.h.b16 %v374
    %v855 = vunpack.c.l.b16 %v375
    %v856 = vunpack.c.h.b16 %v375
    %v857 = vunpack.c.l.b16 %v376
    %v858 = vunpack.c.h.b16 %v376
    %v859 = vunpack.c.l.b16 %v377
    %v860 = vunpack.c.h.b16 %v377
    %v861 = vunpack.c.l.b16 %v378
    %v862 = vunpack.c.h.b16 %v378
    %v863 = vunpack.c.l.b16 %v379
    %v864 = vunpack.c.h.b16 %v379
    %v865 = vunpack.c.l.b16 %v380
    %v866 = vunpack.c.h.b16 %v380
    %v867 = vunpack.c.l.b16 %v381
    %v868 = vunpack.c.h.b16 %v381
    %v869 = vunpack.c.l.b16 %v382
    %v870 = vunpack.c.h.b16 %v382
    %v871 = vunpack.c.l.b16 %v383
    %v872 = vunpack.c.h.b16 %v383
    %v873 = vunpack.c.l.b16 %v384
    %v874 = vunpack.c.h.b16 %v384
    %v875 = vunpack.c.l.b16 %v385
    %v876 = vunpack.c.h.b16 %v385
    %v877 = vunpack.c.l.b16 %v386
    %v878 = vunpack.c.h.b16 %v386
    %v879 = vunpack.c.l.b16 %v387
    %v880 = vunpack.c.h.b16 %v387
    %v881 = vunpack.c.l.b16 %v388
    %v882 = vunpack.c.h.b16 %v388
    %v883 = vunpack.c.l.b16 %v389
    %v884 = vunpack.c.h.b16 %v389
    %v885 = vunpack.c.l.b16 %v390
    %v886 = vunpack.c.h.b16 %v390
    %v887 = vunpack.c.l.b16 %v391
    %v888 = vunpack.c.h.b16 %v391
    %v889 = vunpack.c.l.b16 %v392
    %v890 = vunpack.c.h.b16 %v392
    %v891 = vunpack.c.l.b16 %v393
    %v892 = vunpack.c.h.b16 %v393
    %v893 = vunpack.c.l.b16 %v394
    %v894 = vunpack.c.h.b16 %v394
    %v895 = vunpack.c.l.b16 %v395
    %v896 = vunpack.c.h.b16 %v395
    %v897 = vunpack.c.l.b16 %v396
    %v898 = vunpack.c.h.b16 %v396
    %v899 = vunpack.c.l.b16 %v397
    %v900 = vunpack.c.h.b16 %v397
    %v901 = vunpack.c.l.b16 %v398
    %v902 = vunpack.c.h.b16 %v398
    %v903 = vunpack.c.l.b16 %v399
    %v904 = vunpack.c.h.b16 %v399
    %v905 = vunpack.c.l.b16 %v400
    %v906 = vunpack.c.h.b16 %v400
    %v907 = vunpack.c.l.b16 %v401
    %v908 = vunpack.c.h.b16 %v401
    %v909 = vunpack.c.l.b16 %v402
    %v910 = vunpack.c.h.b16 %v402
    %v911 = vunpack.c.l.b16 %v403
    %v912 = vunpack.c.h.b16 %v403
    %v913 = vunpack.c.l.b16 %v404
    %v914 = vunpack.c.h.b16 %v404
    %v915 = vunpack.c.l.b16 %v405
    %v916 = vunpack.c.h.b16 %v405
    %v917 = vunpack.c.l.b16 %v406
    %v918 = vunpack.c.h.b16 %v406
    %v919 = vunpack.c.l.b16 %v407
    %v920 = vunpack.c.h.b16 %v407
    %v921 = vunpack.c.l.b16 %v408
    %v922 = vunpack.c.h.b16 %v408
    %v923 = vunpack.c.l.b16 %v409
    %v924 = vunpack.c.h.b16 %v409
    %v925 = vunpack.c.l.b16 %v410
    %v926 = vunpack.c.h.b16 %v410
    %v927 = vunpack.c.l.b16 %v411
    %v928 = vunpack.c.h.b16 %v411
    %v929 = vunpack.c.l.b16 %v412
    %v930 = vunpack.c.h.b16 %v412
    %v931 = vunpack.c.l.b16 %v413
    %v932 = vunpack.c.h.b16 %v413
    %v933 = vunpack.c.l.b16 %v414
    %v934 = vunpack.c.h.b16 %v414
    %v935 = vunpack.c.l.b16 %v415
    %v936 = vunpack.c.h.b16 %v415
    %v937 = vunpack.c.l.b16 %v416
    %v938 = vunpack.c.h.b16 %v416
    %v939 = vunpack.c.l.b16 %v417
    %v940 = vunpack.c.h.b16 %v417
    %v941 = vunpack.c.l.b16 %v418
    %v942 = vunpack.c.h.b16 %v418
    %v943 = vunpack.c.l.b16 %v419
    %v944 = vunpack.c.h.b16 %v419
    %v945 = vunpack.c.l.b16 %v420
    %v946 = vunpack.c.h.b16 %v420
    %v947 = vunpack.c.l.b16 %v421
    %v948 = vunpack.c.h.b16 %v421
    %v949 = vunpack.c.l.b16 %v422
    %v950 = vunpack.c.h.b16 %v422
    %v951 = vunpack.c.l.b16 %v423
    %v952 = vunpack.c.h.b16 %v423
    %v953 = vunpack.c.l.b16 %v424
    %v954 = vunpack.c.h.b16 %v424
    %v955 = vunpack.c.l.b16 %v425
    %v956 = vunpack.c.h.b16 %v425
    %v957 = vunpack.c.l.b16 %v426
    %v958 = vunpack.c.h.b16 %v426
    %v959 = vunpack.c.l.b16 %v427
    %v960 = vunpack.c.h.b16 %v427
    %v961 = vunpack.c.l.b16 %v428
    %v962 = vunpack.c.h.b16 %v428
    %v963 = vunpack.c.l.b16 %v429
    %v964 = vunpack.c.h.b16 %v429
    %v965 = vunpack.c.l.b16 %v430
    %v966 = vunpack.c.h.b16 %v430
    %v967 = vunpack.c.l.b16 %v431
    %v968 = vunpack.c.h.b16 %v431
    %v969 = vunpack.c.l.b16 %v432
    %v970 = vunpack.c.h.b16 %v432
    %v971 = vunpack.c.l.b16 %v433
    %v972 = vunpack.c.h.b16 %v433
    %v973 = vunpack.c.l.b16 %v434
    %v974 = vunpack.c.h.b16 %v434
    %v975 = vunpack.c.l.b16 %v435
    %v976 = vunpack.c.h.b16 %v435
    %v977 = vunpack.c.l.b16 %v436
    %v978 = vunpack.c.h.b16 %v436
    %v979 = vunpack.c.l.b16 %v437
    %v980 = vunpack.c.h.b16 %v437
    %v981 = vunpack.c.l.b16 %v438
    %v982 = vunpack.c.h.b16 %v438
    %v983 = vunpack.c.l.b16 %v439
    %v984 = vunpack.c.h.b16 %v439
    %v985 = vunpack.c.l.b16 %v440
    %v986 = vunpack.c.h.b16 %v440
    %v987 = vunpack.c.l.b16 %v441
    %v988 = vunpack.c.h.b16 %v441
    %v989 = vunpack.c.l.b16 %v442
    %v990 = vunpack.c.h.b16 %v442
    %v991 = vunpack.c.l.b16 %v443
    %v992 = vunpack.c.h.b16 %v443
    %v993 = vunpack.c.l.b16 %v444
    %v994 = vunpack.c.h.b16 %v444
    %v995 = vunpack.c.l.b16 %v445
    %v996 = vunpack.c.h.b16 %v445
    %v997 = vunpack.c.l.b16 %v446
    %v998 = vunpack.c.h.b16 %v446
    %v999 = vunpack.c.l.b16 %v447
    %v1000 = vunpack.c.h.b16 %v447
    %v1001 = vunpack.c.l.b16 %v448
    %v1002 = vunpack.c.h.b16 %v448
    %v1003 = vunpack.c.l.b16 %v449
    %v1004 = vunpack.c.h.b16 %v449
    %v1005 = vunpack.c.l.b16 %v450
    %v1006 = vunpack.c.h.b16 %v450
    %v1007 = vunpack.c.l.b16 %v451
    %v1008 = vunpack.c.h.b16 %v451
    %v1009 = vunpack.c.l.b16 %v452
    %v1010 = vunpack.c.h.b16 %v452
    %v1011 = vunpack.c.l.b16 %v453
    %v1012 = vunpack.c.h.b16 %v453
    %v1013 = vunpack.c.l.b16 %v454
    %v1014 = vunpack.c.h.b16 %v454
    %v1015 = vunpack.c.l.b16 %v455
    %v1016 = vunpack.c.h.b16 %v455
    %v1017 = vunpack.c.l.b16 %v456
    %v1018 = vunpack.c.h.b16 %v456
    %v1019 = vunpack.c.l.b16 %v457
    %v1020 = vunpack.c.h.b16 %v457
    %v1021 = vunpack.c.l.b16 %v458
    %v1022 = vunpack.c.h.b16 %v458
    %v1023 = vunpack.c.l.b16 %v459
    %v1024 = vunpack.c.h.b16 %v459
    %v1025 = vunpack.c.l.b16 %v460
    %v1026 = vunpack.c.h.b16 %v460
    %v1027 = vunpack.c.l.b16 %v461
    %v1028 = vunpack.c.h.b16 %v461
    %v1029 = vunpack.c.l.b16 %v462
    %v1030 = vunpack.c.h.b16 %v462
    %v1031 = vunpack.c.l.b16 %v463
    %v1032 = vunpack.c.h.b16 %v463
    %v1033 = vunpack.c.l.b16 %v464
    %v1034 = vunpack.c.h.b16 %v464
    %v1035 = vunpack.c.l.b16 %v465
    %v1036 = vunpack.c.h.b16 %v465
    %v1037 = vunpack.c.l.b16 %v466
    %v1038 = vunpack.c.h.b16 %v466
    %v1039 = vunpack.c.l.b16 %v467
    %v1040 = vunpack.c.h.b16 %v467
    %v1041 = vunpack.c.l.b16 %v468
    %v1042 = vunpack.c.h.b16 %v468
    %v1043 = vunpack.c.l.b16 %v469
    %v1044 = vunpack.c.h.b16 %v469
    %v1045 = vunpack.c.l.b16 %v470
    %v1046 = vunpack.c.h.b16 %v470
    %v1047 = vpack.c.b16 %v669, %v663
    %v1048 = vpack.c.b16 %v670, %v664
    %v1049 = vpack.c.b16 %v671, %v665
    %v1050 = vpack.c.b16 %v672, %v666
    %v1051 = vpack.c.b16 %v673, %v667
    %v1052 = vpack.c.b16 %v674, %v668
    %v1053 = vpack.c.b16 %v681, %v675
    %v1054 = vpack.c.b16 %v682, %v676
    %v1055 = vpack.c.b16 %v683, %v677
    %v1056 = vpack.c.b16 %v684, %v678
    %v1057 = vpack.c.b16 %v685, %v679
    %v1058 = vpack.c.b16 %v686, %v680
    %v1059 = vpack.c.b16 %v693, %v687
    %v1060 = vpack.c.b16 %v694, %v688
    %v1061 = vpack.c.b16 %v695, %v689
    %v1062 = vpack.c.b16 %v696, %v690
    %v1063 = vpack.c.b16 %v697, %v691
    %v1064 = vpack.c.b16 %v698, %v692
    %v1065 = vpack.c.b16 %v705, %v699
    %v1066 = vpack.c.b16 %v706, %v700
    %v1067 = vpack.c.b16 %v707, %v701
    %v1068 = vpack.c.b16 %v708, %v702
    %v1069 = vpack.c.b16 %v709, %v703
    %v1070 = vpack.c.b16 %v710, %v704
    %v1071 = vpack.c.b16 %v717, %v711
    %v1072 = vpack.c.b16 %v718, %v712
    %v1073 = vpack.c.b16 %v719, %v713
    %v1074 = vpack.c.b16 %v720, %v714
    %v1075 = vpack.c.b16 %v721, %v715
    %v1076 = vpack.c.b16 %v722, %v716
    %v1077 = vpack.c.b16 %v729, %v723
    %v1078 = vpack.c.b16 %v730, %v724
    %v1079 = vpack.c.b16 %v731, %v725
    %v1080 = vpack.c.b16 %v732, %v726
    %v1081 = vpack.c.b16 %v733, %v727
    %v1082 = vpack.c.b16 %v734, %v728
    %v1083 = vpack.c.b16 %v741, %v735
    %v1084 = vpack.c.b16 %v742, %v736
    %v1085 = vpack.c.b16 %v743, %v737
    %v1086 = vpack.c.b16 %v744, %v738
    %v1087 = vpack.c.b16 %v745, %v739
    %v1088 = vpack.c.b16 %v746, %v740
    %v1089 = vpack.c.b16 %v753, %v747
    %v1090 = vpack.c.b16 %v754, %v748
    %v1091 = vpack.c.b16 %v755, %v749
    %v1092 = vpack.c.b16 %v756, %v750
    %v1093 = vpack.c.b16 %v757, %v751
    %v1094 = vpack.c.b16 %v758, %v752
    %v1095 = vpack.c.b16 %v765, %v759
    %v1096 = vpack.c.b16 %v766, %v760
    %v1097 = vpack.c.b16 %v767, %v761
    %v1098 = vpack.c.b16 %v768, %v762
    %v1099 = vpack.c.b16 %v769, %v763
    %v1100 = vpack.c.b16 %v770, %v764
    %v1101 = vpack.c.b16 %v777, %v771
    %v1102 = vpack.c.b16 %v778, %v772
    %v1103 = vpack.c.b16 %v779, %v773
    %v1104 = vpack.c.b16 %v780, %v774
    %v1105 = vpack.c.b16 %v781, %v775
    %v1106 = vpack.c.b16 %v782, %v776
    %v1107 = vpack.c.b16 %v789, %v783
    %v1108 = vpack.c.b16 %v790, %v784
    %v1109 = vpack.c.b16 %v791, %v785
    %v1110 = vpack.c.b16 %v792, %v786
    %v1111 = vpack.c.b16 %v793, %v787
    %v1112 = vpack.c.b16 %v794, %v788
    %v1113 = vpack.c.b16 %v801, %v795
    %v1114 = vpack.c.b16 %v802, %v796
    %v1115 = vpack.c.b16 %v803, %v797
    %v1116 = vpack.c.b16 %v804, %v798
    %v1117 = vpack.c.b16 %v805, %v799
    %v1118 = vpack.c.b16 %v806, %v800
    %v1119 = vpack.c.b16 %v813, %v807
    %v1120 = vpack.c.b16 %v814, %v808
    %v1121 = vpack.c.b16 %v815, %v809
    %v1122 = vpack.c.b16 %v816, %v810
    %v1123 = vpack.c.b16 %v817, %v811
    %v1124 = vpack.c.b16 %v818, %v812
    %v1125 = vpack.c.b16 %v825, %v819
    %v1126 = vpack.c.b16 %v826, %v820
    %v1127 = vpack.c.b16 %v827, %v821
    %v1128 = vpack.c.b16 %v828, %v822
    %v1129 = vpack.c.b16 %v829, %v823
    %v1130 = vpack.c.b16 %v830, %v824
    %v1131 = vpack.c.b16 %v837, %v831
    %v1132 = vpack.c.b16 %v838, %v832
    %v1133 = vpack.c.b16 %v839, %v833
    %v1134 = vpack.c.b16 %v840, %v834
    %v1135 = vpack.c.b16 %v841, %v835
    %v1136 = vpack.c.b16 %v842, %v836
    %v1137 = vpack.c.b16 %v849, %v843
    %v1138 = vpack.c.b16 %v850, %v844
    %v1139 = vpack.c.b16 %v851, %v845
    %v1140 = vpack.c.b16 %v852, %v846
    %v1141 = vpack.c.b16 %v853, %v847
    %v1142 = vpack.c.b16 %v854, %v848
    %v1143 = vpack.c.b16 %v861, %v855
    %v1144 = vpack.c.b16 %v862, %v856
    %v1145 = vpack.c.b16 %v863, %v857
    %v1146 = vpack.c.b16 %v864, %v858
    %v1147 = vpack.c.b16 %v865, %v859
    %v1148 = vpack.c.b16 %v866, %v860
    %v1149 = vpack.c.b16 %v873, %v867
    %v1150 = vpack.c.b16 %v874, %v868
    %v1151 = vpack.c.b16 %v875, %v869
    %v1152 = vpack.c.b16 %v876, %v870
    %v1153 = vpack.c.b16 %v877, %v871
    %v1154 = vpack.c.b16 %v878, %v872
    %v1155 = vpack.c.b16 %v885, %v879
    %v1156 = vpack.c.b16 %v886, %v880
    %v1157 = vpack.c.b16 %v887, %v881
    %v1158 = vpack.c.b16 %v888, %v882
    %v1159 = vpack.c.b16 %v889, %v883
    %v1160 = vpack.c.b16 %v890, %v884
    %v1161 = vpack.c.b16 %v897, %v891
    %v1162 = vpack.c.b16 %v898, %v892
    %v1163 = vpack.c.b16 %v899, %v893
    %v1164 = vpack.c.b16 %v900, %v894
    %v1165 = vpack.c.b16 %v901, %v895
    %v1166 = vpack.c.b16 %v902, %v896
    %v1167 = vpack.c.b16 %v909, %v903
    %v1168 = vpack.c.b16 %v910, %v904
    %v1169 = vpack.c.b16 %v911, %v905
    %v1170 = vpack.c.b16 %v912, %v906
    %v1171 = vpack.c.b16 %v913, %v907
    %v1172 = vpack.c.b16 %v914, %v908
    %v1173 = vpack.c.b16 %v921, %v915
    %v1174 = vpack.c.b16 %v922, %v916
    %v1175 = vpack.c.b16 %v923, %v917
    %v1176 = vpack.c.b16 %v924, %v918
    %v1177 = vpack.c.b16 %v925, %v919
    %v1178 = vpack.c.b16 %v926, %v920
    %v1179 = vpack.c.b16 %v933, %v927
    %v1180 = vpack.c.b16 %v934, %v928
    %v1181 = vpack.c.b16 %v935, %v929
    %v1182 = vpack.c.b16 %v936, %v930
    %v1183 = vpack.c.b16 %v937, %v931
    %v1184 = vpack.c.b16 %v938, %v932
    %v1185 = vpack.c.b16 %v945, %v939
    %v1186 = vpack.c.b16 %v946, %v940
    %v1187 = vpack.c.b16 %v947, %v941
    %v1188 = vpack.c.b16 %v948, %v942
    %v1189 = vpack.c.b16 %v949, %v943
    %v1190 = vpack.c.b16 %v950, %v944
    %v1191 = vpack.c.b16 %v957, %v951
    %v1192 = vpack.c.b16 %v958, %v952
    %v1193 = vpack.c.b16 %v959, %v953
    %v1194 = vpack.c.b16 %v960, %v954
    %v1195 = vpack.c.b16 %v961, %v955
    %v1196 = vpack.c.b16 %v962, %v956
    %v1197 = vpack.c.b16 %v969, %v963
    %v1198 = vpack.c.b16 %v970, %v964
    %v1199 = vpack.c.b16 %v971, %v965
    %v1200 = vpack.c.b16 %v972, %v966
    %v1201 = vpack.c.b16 %v973, %v967
    %v1202 = vpack.c.b16 %v974, %v968
    %v1203 = vpack.c.b16 %v981, %v975
    %v1204 = vpack.c.b16 %v982, %v976
    %v1205 = vpack.c.b16 %v983, %v977
    %v1206 = vpack.c.b16 %v984, %v978
    %v1207 = vpack.c.b16 %v985, %v979
    %v1208 = vpack.c.b16 %v986, %v980
    %v1209 = vpack.c.b16 %v993, %v987
    %v1210 = vpack.c.b16 %v994, %v988
    %v1211 = vpack.c.b16 %v995, %v989
    %v1212 = vpack.c.b16 %v996, %v990
    %v1213 = vpack.c.b16 %v997, %v991
    %v1214 = vpack.c.b16 %v998, %v992
    %v1215 = vpack.c.b16 %v1005, %v999
    %v1216 = vpack.c.b16 %v1006, %v1000
    %v1217 = vpack.c.b16 %v1007, %v1001
    %v1218 = vpack.c.b16 %v1008, %v1002
    %v1219 = vpack.c.b16 %v1009, %v1003
    %v1220 = vpack.c.b16 %v1010, %v1004
    %v1221 = vpack.c.b16 %v1017, %v1011
    %v1222 = vpack.c.b16 %v1018, %v1012
    %v1223 = vpack.c.b16 %v1019, %v1013
    %v1224 = vpack.c.b16 %v1020, %v1014
    %v1225 = vpack.c.b16 %v1021, %v1015
    %v1226 = vpack.c.b16 %v1022, %v1016
    %v1227 = vpack.c.b16 %v1029, %v1023
    %v1228 = vpack.c.b16 %v1030, %v1024
    %v1229 = vpack.c.b16 %v1031, %v1025
    %v1230 = vpack.c.b16 %v1032, %v1026
    %v1231 = vpack.c.b16 %v1033, %v1027
    %v1232 = vpack.c.b16 %v1034, %v1028
    %v1233 = vpack.c.b16 %v1041, %v1035
    %v1234 = vpack.c.b16 %v1042, %v1036
    %v1235 = vpack.c.b16 %v1043, %v1037
    %v1236 = vpack.c.b16 %v1044, %v1038
    %v1237 = vpack.c.b16 %v1045, %v1039
    %v1238 = vpack.c.b16 %v1046, %v1040
    %1431 = vmatprep.subr.bf16.mxu0 %v1090
    %1432 = vmatpush1.bf16.msra.mxu0 %v1089
    %1433 = vmatprep.subr.bf16.mxu0 %v1084
    %1434 = vmatpush1.bf16.msra.mxu0 %v1083
    %1435 = vmatprep.subr.bf16.mxu0 %v1078
    %1436 = vmatpush1.bf16.msra.mxu0 %v1077
    %1437 = vmatprep.subr.bf16.mxu0 %v1072
    %1438 = vmatpush1.bf16.msra.mxu0 %v1071
    %1439 = vmatprep.subr.bf16.mxu0 %v1066
    %1440 = vmatpush1.bf16.msra.mxu0 %v1065
    %1441 = vmatprep.subr.bf16.mxu0 %v1060
    %1442 = vmatpush1.bf16.msra.mxu0 %v1059
    %1443 = vmatprep.subr.bf16.mxu0 %v1054
    %1444 = vmatpush1.bf16.msra.mxu0 %v1053
    %1445 = vmatprep.subr.bf16.mxu0 %v1048
    %1446 = vmatpush1.bf16.msra.mxu0 %v1047
    %1447 = vmatprep.subr.bf16.mxu0 %v1138
    %1448 = vmatpush2.bf16.msra.mxu0 %v1137
    %1449 = vmatprep.subr.bf16.mxu0 %v1132
    %1450 = vmatpush2.bf16.msra.mxu0 %v1131
    %1451 = vmatprep.subr.bf16.mxu0 %v1126
    %1452 = vmatpush2.bf16.msra.mxu0 %v1125
    %1453 = vmatprep.subr.bf16.mxu0 %v1120
    %1454 = vmatpush2.bf16.msra.mxu0 %v1119
    %1455 = vmatprep.subr.bf16.mxu0 %v1114
    %1456 = vmatpush2.bf16.msra.mxu0 %v1113
    %1457 = vmatprep.subr.bf16.mxu0 %v1108
    %1458 = vmatpush2.bf16.msra.mxu0 %v1107
    %1459 = vmatprep.subr.bf16.mxu0 %v1102
    %1460 = vmatpush2.bf16.msra.mxu0 %v1101
    %1461 = vmatprep.subr.bf16.mxu0 %v1096
    %1462 = vmatpush2.bf16.msra.mxu0 %v1095
    %1463 = vmatprep.mubr.bf16.mxu0 %v273
    %1464 = vmatmul.mubr.bf16.gmra.mxu0 %v271
    %v1465 = vpop.f32.mrf.mxu0
    %v1466 = vadd.f32 0.0, %v1465
    %v1467 = vpop.f32.mrf.mxu0
    %v1468 = vadd.f32 0.0, %v1467
    %v1469 = vpop.f32.mrf.mxu0
    %v1470 = vpop.f32.mrf.mxu0
    %1471 = vdwg.mxu0
    %1472 = vmatprep.subr.bf16.mxu0 %v1186
    %1473 = vmatpush1.bf16.msra.mxu0 %v1185
    %1474 = vmatprep.subr.bf16.mxu0 %v1180
    %1475 = vmatpush1.bf16.msra.mxu0 %v1179
    %1476 = vmatprep.subr.bf16.mxu0 %v1174
    %1477 = vmatpush1.bf16.msra.mxu0 %v1173
    %1478 = vmatprep.subr.bf16.mxu0 %v1168
    %1479 = vmatpush1.bf16.msra.mxu0 %v1167
    %1480 = vmatprep.subr.bf16.mxu0 %v1162
    %1481 = vmatpush1.bf16.msra.mxu0 %v1161
    %1482 = vmatprep.subr.bf16.mxu0 %v1156
    %1483 = vmatpush1.bf16.msra.mxu0 %v1155
    %1484 = vmatprep.subr.bf16.mxu0 %v1150
    %1485 = vmatpush1.bf16.msra.mxu0 %v1149
    %1486 = vmatprep.subr.bf16.mxu0 %v1144
    %1487 = vmatpush1.bf16.msra.mxu0 %v1143
    %1488 = vmatprep.subr.bf16.mxu0 %v1234
    %1489 = vmatpush2.bf16.msra.mxu0 %v1233
    %1490 = vmatprep.subr.bf16.mxu0 %v1228
    %1491 = vmatpush2.bf16.msra.mxu0 %v1227
    %1492 = vmatprep.subr.bf16.mxu0 %v1222
    %1493 = vmatpush2.bf16.msra.mxu0 %v1221
    %1494 = vmatprep.subr.bf16.mxu0 %v1216
    %1495 = vmatpush2.bf16.msra.mxu0 %v1215
    %1496 = vmatprep.subr.bf16.mxu0 %v1210
    %1497 = vmatpush2.bf16.msra.mxu0 %v1209
    %1498 = vmatprep.subr.bf16.mxu0 %v1204
    %1499 = vmatpush2.bf16.msra.mxu0 %v1203
    %1500 = vmatprep.subr.bf16.mxu0 %v1198
    %1501 = vmatpush2.bf16.msra.mxu0 %v1197
    %1502 = vmatprep.subr.bf16.mxu0 %v1192
    %1503 = vmatpush2.bf16.msra.mxu0 %v1191
    %1504 = vmatprep.mubr.bf16.mxu0 %v277
    %1505 = vmatmul.mubr.bf16.gmra.mxu0 %v275
    %v1506 = vpop.f32.mrf.mxu0
    %v1507 = vadd.f32 %v1466, %v1506
    %v1508 = vpop.f32.mrf.mxu0
    %v1509 = vadd.f32 %v1468, %v1508
    %v1510 = vpop.f32.mrf.mxu0
    %v1511 = vpop.f32.mrf.mxu0
    %1512 = vdwg.mxu0
    %1513 = vmatprep.subr.bf16.mxu0 %v1092
    %1514 = vmatpush1.bf16.msra.mxu0 %v1091
    %1515 = vmatprep.subr.bf16.mxu0 %v1086
    %1516 = vmatpush1.bf16.msra.mxu0 %v1085
    %1517 = vmatprep.subr.bf16.mxu0 %v1080
    %1518 = vmatpush1.bf16.msra.mxu0 %v1079
    %1519 = vmatprep.subr.bf16.mxu0 %v1074
    %1520 = vmatpush1.bf16.msra.mxu0 %v1073
    %1521 = vmatprep.subr.bf16.mxu0 %v1068
    %1522 = vmatpush1.bf16.msra.mxu0 %v1067
    %1523 = vmatprep.subr.bf16.mxu0 %v1062
    %1524 = vmatpush1.bf16.msra.mxu0 %v1061
    %1525 = vmatprep.subr.bf16.mxu0 %v1056
    %1526 = vmatpush1.bf16.msra.mxu0 %v1055
    %1527 = vmatprep.subr.bf16.mxu0 %v1050
    %1528 = vmatpush1.bf16.msra.mxu0 %v1049
    %1529 = vmatprep.subr.bf16.mxu0 %v1140
    %1530 = vmatpush2.bf16.msra.mxu0 %v1139
    %1531 = vmatprep.subr.bf16.mxu0 %v1134
    %1532 = vmatpush2.bf16.msra.mxu0 %v1133
    %1533 = vmatprep.subr.bf16.mxu0 %v1128
    %1534 = vmatpush2.bf16.msra.mxu0 %v1127
    %1535 = vmatprep.subr.bf16.mxu0 %v1122
    %1536 = vmatpush2.bf16.msra.mxu0 %v1121
    %1537 = vmatprep.subr.bf16.mxu0 %v1116
    %1538 = vmatpush2.bf16.msra.mxu0 %v1115
    %1539 = vmatprep.subr.bf16.mxu0 %v1110
    %1540 = vmatpush2.bf16.msra.mxu0 %v1109
    %1541 = vmatprep.subr.bf16.mxu0 %v1104
    %1542 = vmatpush2.bf16.msra.mxu0 %v1103
    %1543 = vmatprep.subr.bf16.mxu0 %v1098
    %1544 = vmatpush2.bf16.msra.mxu0 %v1097
    %1545 = vmatprep.mubr.bf16.mxu0 %v273
    %1546 = vmatmul.mubr.bf16.gmra.mxu0 %v271
    %v1547 = vpop.f32.mrf.mxu0
    %v1548 = vadd.f32 0.0, %v1547
    %v1549 = vpop.f32.mrf.mxu0
    %v1550 = vadd.f32 0.0, %v1549
    %v1551 = vpop.f32.mrf.mxu0
    %v1552 = vpop.f32.mrf.mxu0
    %1553 = vdwg.mxu0
    %1554 = vmatprep.subr.bf16.mxu0 %v1188
    %1555 = vmatpush1.bf16.msra.mxu0 %v1187
    %1556 = vmatprep.subr.bf16.mxu0 %v1182
    %1557 = vmatpush1.bf16.msra.mxu0 %v1181
    %1558 = vmatprep.subr.bf16.mxu0 %v1176
    %1559 = vmatpush1.bf16.msra.mxu0 %v1175
    %1560 = vmatprep.subr.bf16.mxu0 %v1170
    %1561 = vmatpush1.bf16.msra.mxu0 %v1169
    %1562 = vmatprep.subr.bf16.mxu0 %v1164
    %1563 = vmatpush1.bf16.msra.mxu0 %v1163
    %1564 = vmatprep.subr.bf16.mxu0 %v1158
    %1565 = vmatpush1.bf16.msra.mxu0 %v1157
    %1566 = vmatprep.subr.bf16.mxu0 %v1152
    %1567 = vmatpush1.bf16.msra.mxu0 %v1151
    %1568 = vmatprep.subr.bf16.mxu0 %v1146
    %1569 = vmatpush1.bf16.msra.mxu0 %v1145
    %1570 = vmatprep.subr.bf16.mxu0 %v1236
    %1571 = vmatpush2.bf16.msra.mxu0 %v1235
    %1572 = vmatprep.subr.bf16.mxu0 %v1230
    %1573 = vmatpush2.bf16.msra.mxu0 %v1229
    %1574 = vmatprep.subr.bf16.mxu0 %v1224
    %1575 = vmatpush2.bf16.msra.mxu0 %v1223
    %1576 = vmatprep.subr.bf16.mxu0 %v1218
    %1577 = vmatpush2.bf16.msra.mxu0 %v1217
    %1578 = vmatprep.subr.bf16.mxu0 %v1212
    %1579 = vmatpush2.bf16.msra.mxu0 %v1211
    %1580 = vmatprep.subr.bf16.mxu0 %v1206
    %1581 = vmatpush2.bf16.msra.mxu0 %v1205
    %1582 = vmatprep.subr.bf16.mxu0 %v1200
    %1583 = vmatpush2.bf16.msra.mxu0 %v1199
    %1584 = vmatprep.subr.bf16.mxu0 %v1194
    %1585 = vmatpush2.bf16.msra.mxu0 %v1193
    %1586 = vmatprep.mubr.bf16.mxu0 %v277
    %1587 = vmatmul.mubr.bf16.gmra.mxu0 %v275
    %v1588 = vpop.f32.mrf.mxu0
    %v1589 = vadd.f32 %v1548, %v1588
    %v1590 = vpop.f32.mrf.mxu0
    %v1591 = vadd.f32 %v1550, %v1590
    %v1592 = vpop.f32.mrf.mxu0
    %v1593 = vpop.f32.mrf.mxu0
    %1594 = vdwg.mxu0
    %1595 = vmatprep.subr.bf16.mxu0 %v1094
    %1596 = vmatpush1.bf16.msra.mxu0 %v1093
    %1597 = vmatprep.subr.bf16.mxu0 %v1088
    %1598 = vmatpush1.bf16.msra.mxu0 %v1087
    %1599 = vmatprep.subr.bf16.mxu0 %v1082
    %1600 = vmatpush1.bf16.msra.mxu0 %v1081
    %1601 = vmatprep.subr.bf16.mxu0 %v1076
    %1602 = vmatpush1.bf16.msra.mxu0 %v1075
    %1603 = vmatprep.subr.bf16.mxu0 %v1070
    %1604 = vmatpush1.bf16.msra.mxu0 %v1069
    %1605 = vmatprep.subr.bf16.mxu0 %v1064
    %1606 = vmatpush1.bf16.msra.mxu0 %v1063
    %1607 = vmatprep.subr.bf16.mxu0 %v1058
    %1608 = vmatpush1.bf16.msra.mxu0 %v1057
    %1609 = vmatprep.subr.bf16.mxu0 %v1052
    %1610 = vmatpush1.bf16.msra.mxu0 %v1051
    %1611 = vmatprep.subr.bf16.mxu0 %v1142
    %1612 = vmatpush2.bf16.msra.mxu0 %v1141
    %1613 = vmatprep.subr.bf16.mxu0 %v1136
    %1614 = vmatpush2.bf16.msra.mxu0 %v1135
    %1615 = vmatprep.subr.bf16.mxu0 %v1130
    %1616 = vmatpush2.bf16.msra.mxu0 %v1129
    %1617 = vmatprep.subr.bf16.mxu0 %v1124
    %1618 = vmatpush2.bf16.msra.mxu0 %v1123
    %1619 = vmatprep.subr.bf16.mxu0 %v1118
    %1620 = vmatpush2.bf16.msra.mxu0 %v1117
    %1621 = vmatprep.subr.bf16.mxu0 %v1112
    %1622 = vmatpush2.bf16.msra.mxu0 %v1111
    %1623 = vmatprep.subr.bf16.mxu0 %v1106
    %1624 = vmatpush2.bf16.msra.mxu0 %v1105
    %1625 = vmatprep.subr.bf16.mxu0 %v1100
    %1626 = vmatpush2.bf16.msra.mxu0 %v1099
    %1627 = vmatprep.mubr.bf16.mxu0 %v273
    %1628 = vmatmul.mubr.bf16.gmra.mxu0 %v271
    %v1629 = vpop.f32.mrf.mxu0
    %v1630 = vadd.f32 0.0, %v1629
    %v1631 = vpop.f32.mrf.mxu0
    %v1632 = vadd.f32 0.0, %v1631
    %v1633 = vpop.f32.mrf.mxu0
    %v1634 = vpop.f32.mrf.mxu0
    %1635 = vdwg.mxu0
    %1636 = vmatprep.subr.bf16.mxu0 %v1190
    %1637 = vmatpush1.bf16.msra.mxu0 %v1189
    %1638 = vmatprep.subr.bf16.mxu0 %v1184
    %1639 = vmatpush1.bf16.msra.mxu0 %v1183
    %1640 = vmatprep.subr.bf16.mxu0 %v1178
    %1641 = vmatpush1.bf16.msra.mxu0 %v1177
    %1642 = vmatprep.subr.bf16.mxu0 %v1172
    %1643 = vmatpush1.bf16.msra.mxu0 %v1171
    %1644 = vmatprep.subr.bf16.mxu0 %v1166
    %1645 = vmatpush1.bf16.msra.mxu0 %v1165
    %1646 = vmatprep.subr.bf16.mxu0 %v1160
    %1647 = vmatpush1.bf16.msra.mxu0 %v1159
    %1648 = vmatprep.subr.bf16.mxu0 %v1154
    %1649 = vmatpush1.bf16.msra.mxu0 %v1153
    %1650 = vmatprep.subr.bf16.mxu0 %v1148
    %1651 = vmatpush1.bf16.msra.mxu0 %v1147
    %1652 = vmatprep.subr.bf16.mxu0 %v1238
    %1653 = vmatpush2.bf16.msra.mxu0 %v1237
    %1654 = vmatprep.subr.bf16.mxu0 %v1232
    %1655 = vmatpush2.bf16.msra.mxu0 %v1231
    %1656 = vmatprep.subr.bf16.mxu0 %v1226
    %1657 = vmatpush2.bf16.msra.mxu0 %v1225
    %1658 = vmatprep.subr.bf16.mxu0 %v1220
    %1659 = vmatpush2.bf16.msra.mxu0 %v1219
    %1660 = vmatprep.subr.bf16.mxu0 %v1214
    %1661 = vmatpush2.bf16.msra.mxu0 %v1213
    %1662 = vmatprep.subr.bf16.mxu0 %v1208
    %1663 = vmatpush2.bf16.msra.mxu0 %v1207
    %1664 = vmatprep.subr.bf16.mxu0 %v1202
    %1665 = vmatpush2.bf16.msra.mxu0 %v1201
    %1666 = vmatprep.subr.bf16.mxu0 %v1196
    %1667 = vmatpush2.bf16.msra.mxu0 %v1195
    %1668 = vmatprep.mubr.bf16.mxu0 %v277
    %1669 = vmatmul.mubr.bf16.gmra.mxu0 %v275
    %v1670 = vpop.f32.mrf.mxu0
    %v1671 = vadd.f32 %v1630, %v1670
    %v1672 = vpop.f32.mrf.mxu0
    %v1673 = vadd.f32 %v1632, %v1672
    %v1674 = vpop.f32.mrf.mxu0
    %v1675 = vpop.f32.mrf.mxu0
    %1676 = vdwg.mxu0
    %v1677 = vmax.f32 %v1507, 0.0
    %v1678 = vmax.f32 %v1509, 0.0
    %v1679 = vmax.f32 %v1589, 0.0
    %v1680 = vmax.f32 %v1591, 0.0
    %v1681 = vmax.f32 %v1671, 0.0
    %v1682 = vmax.f32 %v1673, 0.0
    %v1683 = vpack.c.bf16 %v1677, %v1677
    %v1684 = vpack.c.bf16 %v1678, %v1678
    %v1685 = vpack.c.bf16 %v1679, %v1679
    %v1686 = vpack.c.bf16 %v1680, %v1680
    %v1687 = vpack.c.bf16 %v1681, %v1681
    %v1688 = vpack.c.bf16 %v1682, %v1682
    %v1689 = vld [vmem:[#allocation5] sm:$0xf]
    %v1690 = vld [vmem:[#allocation5 + $0x4] sm:$0xf]
    %v1691 = vld [vmem:[#allocation5 + $0x8] sm:$0xf]
    %v1692 = vld [vmem:[#allocation5 + $0xc] sm:$0xf]
    %v1693 = vld [vmem:[#allocation5 + $0x10] sm:$0xf]
    %v1694 = vld [vmem:[#allocation5 + $0x14] sm:$0xf]
    %v1695 = vld [vmem:[#allocation5 + $0x18] sm:$0xf]
    %v1696 = vld [vmem:[#allocation5 + $0x1c] sm:$0xf]
    %v1697 = vld [vmem:[#allocation5 + $0x20] sm:$0xf]
    %v1698 = vld [vmem:[#allocation5 + $0x24] sm:$0xf]
    %v1699 = vld [vmem:[#allocation5 + $0x28] sm:$0xf]
    %v1700 = vld [vmem:[#allocation5 + $0x2c] sm:$0xf]
    %v1701 = vld [vmem:[#allocation5 + $0x30] sm:$0xf]
    %v1702 = vld [vmem:[#allocation5 + $0x34] sm:$0xf]
    %v1703 = vld [vmem:[#allocation5 + $0x38] sm:$0xf]
    %v1704 = vld [vmem:[#allocation5 + $0x3c] sm:$0xf]
    %v1705 = vld [vmem:[#allocation5 + $0x40] sm:$0xf]
    %v1706 = vld [vmem:[#allocation5 + $0x44] sm:$0xf]
    %v1707 = vld [vmem:[#allocation5 + $0x48] sm:$0xf]
    %v1708 = vld [vmem:[#allocation5 + $0x4c] sm:$0xf]
    %v1709 = vld [vmem:[#allocation5 + $0x50] sm:$0xf]
    %v1710 = vld [vmem:[#allocation5 + $0x54] sm:$0xf]
    %v1711 = vld [vmem:[#allocation5 + $0x58] sm:$0xf]
    %v1712 = vld [vmem:[#allocation5 + $0x5c] sm:$0xf]
    %v1713 = vld [vmem:[#allocation5 + $0x60] sm:$0xf]
    %v1714 = vld [vmem:[#allocation5 + $0x64] sm:$0xf]
    %v1715 = vld [vmem:[#allocation5 + $0x68] sm:$0xf]
    %v1716 = vld [vmem:[#allocation5 + $0x6c] sm:$0xf]
    %v1717 = vld [vmem:[#allocation5 + $0x70] sm:$0xf]
    %v1718 = vld [vmem:[#allocation5 + $0x74] sm:$0xf]
    %v1719 = vld [vmem:[#allocation5 + $0x78] sm:$0xf]
    %v1720 = vld [vmem:[#allocation5 + $0x7c] sm:$0xf]
    %v1721 = vld [vmem:[#allocation5 + $0x80] sm:$0xf]
    %v1722 = vld [vmem:[#allocation5 + $0x84] sm:$0xf]
    %v1723 = vld [vmem:[#allocation5 + $0x88] sm:$0xf]
    %v1724 = vld [vmem:[#allocation5 + $0x8c] sm:$0xf]
    %v1725 = vld [vmem:[#allocation5 + $0x90] sm:$0xf]
    %v1726 = vld [vmem:[#allocation5 + $0x94] sm:$0xf]
    %v1727 = vld [vmem:[#allocation5 + $0x98] sm:$0xf]
    %v1728 = vld [vmem:[#allocation5 + $0x9c] sm:$0xf]
    %v1729 = vld [vmem:[#allocation5 + $0xa0] sm:$0xf]
    %v1730 = vld [vmem:[#allocation5 + $0xa4] sm:$0xf]
    %v1731 = vld [vmem:[#allocation5 + $0xa8] sm:$0xf]
    %v1732 = vld [vmem:[#allocation5 + $0xac] sm:$0xf]
    %v1733 = vld [vmem:[#allocation5 + $0xb0] sm:$0xf]
    %v1734 = vld [vmem:[#allocation5 + $0xb4] sm:$0xf]
    %v1735 = vld [vmem:[#allocation5 + $0xb8] sm:$0xf]
    %v1736 = vld [vmem:[#allocation5 + $0xbc] sm:$0xf]
    %v1737 = vld [vmem:[#allocation5 + $0xc0] sm:$0xf]
    %v1738 = vld [vmem:[#allocation5 + $0xc4] sm:$0xf]
    %v1739 = vld [vmem:[#allocation5 + $0xc8] sm:$0xf]
    %v1740 = vld [vmem:[#allocation5 + $0xcc] sm:$0xf]
    %v1741 = vld [vmem:[#allocation5 + $0xd0] sm:$0xf]
    %v1742 = vld [vmem:[#allocation5 + $0xd4] sm:$0xf]
    %v1743 = vld [vmem:[#allocation5 + $0xd8] sm:$0xf]
    %v1744 = vld [vmem:[#allocation5 + $0xdc] sm:$0xf]
    %v1745 = vld [vmem:[#allocation5 + $0xe0] sm:$0xf]
    %v1746 = vld [vmem:[#allocation5 + $0xe4] sm:$0xf]
    %v1747 = vld [vmem:[#allocation5 + $0xe8] sm:$0xf]
    %v1748 = vld [vmem:[#allocation5 + $0xec] sm:$0xf]
    %v1749 = vld [vmem:[#allocation5 + $0xf0] sm:$0xf]
    %v1750 = vld [vmem:[#allocation5 + $0xf4] sm:$0xf]
    %v1751 = vld [vmem:[#allocation5 + $0xf8] sm:$0xf]
    %v1752 = vld [vmem:[#allocation5 + $0xfc] sm:$0xf]
    %v1753 = vld [vmem:[#allocation5 + $0x100] sm:$0xf]
    %v1754 = vld [vmem:[#allocation5 + $0x104] sm:$0xf]
    %v1755 = vld [vmem:[#allocation5 + $0x108] sm:$0xf]
    %v1756 = vld [vmem:[#allocation5 + $0x10c] sm:$0xf]
    %v1757 = vld [vmem:[#allocation5 + $0x110] sm:$0xf]
    %v1758 = vld [vmem:[#allocation5 + $0x114] sm:$0xf]
    %v1759 = vld [vmem:[#allocation5 + $0x118] sm:$0xf]
    %v1760 = vld [vmem:[#allocation5 + $0x11c] sm:$0xf]
    %v1761 = vld [vmem:[#allocation5 + $0x120] sm:$0xf]
    %v1762 = vld [vmem:[#allocation5 + $0x124] sm:$0xf]
    %v1763 = vld [vmem:[#allocation5 + $0x128] sm:$0xf]
    %v1764 = vld [vmem:[#allocation5 + $0x12c] sm:$0xf]
    %v1765 = vld [vmem:[#allocation5 + $0x130] sm:$0xf]
    %v1766 = vld [vmem:[#allocation5 + $0x134] sm:$0xf]
    %v1767 = vld [vmem:[#allocation5 + $0x138] sm:$0xf]
    %v1768 = vld [vmem:[#allocation5 + $0x13c] sm:$0xf]
    %v1769 = vld [vmem:[#allocation5 + $0x140] sm:$0xf]
    %v1770 = vld [vmem:[#allocation5 + $0x144] sm:$0xf]
    %v1771 = vld [vmem:[#allocation5 + $0x148] sm:$0xf]
    %v1772 = vld [vmem:[#allocation5 + $0x14c] sm:$0xf]
    %v1773 = vld [vmem:[#allocation5 + $0x150] sm:$0xf]
    %v1774 = vld [vmem:[#allocation5 + $0x154] sm:$0xf]
    %v1775 = vld [vmem:[#allocation5 + $0x158] sm:$0xf]
    %v1776 = vld [vmem:[#allocation5 + $0x15c] sm:$0xf]
    %v1777 = vld [vmem:[#allocation5 + $0x160] sm:$0xf]
    %v1778 = vld [vmem:[#allocation5 + $0x164] sm:$0xf]
    %v1779 = vld [vmem:[#allocation5 + $0x168] sm:$0xf]
    %v1780 = vld [vmem:[#allocation5 + $0x16c] sm:$0xf]
    %v1781 = vld [vmem:[#allocation5 + $0x170] sm:$0xf]
    %v1782 = vld [vmem:[#allocation5 + $0x174] sm:$0xf]
    %v1783 = vld [vmem:[#allocation5 + $0x178] sm:$0xf]
    %v1784 = vld [vmem:[#allocation5 + $0x17c] sm:$0xf]
    %v1785 = vld [vmem:[%s6] sm:$0x1]
    %v1787 = vlaneseq
    %v1788 = vshrl.u32 %v1787, 7
    %v1789 = vsub.s32 0, %v1788
    %v1790 = vrot.slane %v1785, %v1789
    %v1888 = vunpack.c.l.b16 %v1689
    %v1889 = vunpack.c.l.b16 %v1690
    %v1890 = vunpack.c.l.b16 %v1691
    %v1891 = vunpack.c.l.b16 %v1692
    %v1892 = vunpack.c.l.b16 %v1693
    %v1893 = vunpack.c.l.b16 %v1694
    %v1894 = vunpack.c.l.b16 %v1695
    %v1895 = vunpack.c.l.b16 %v1696
    %v1896 = vunpack.c.l.b16 %v1697
    %v1897 = vunpack.c.l.b16 %v1698
    %v1898 = vunpack.c.l.b16 %v1699
    %v1899 = vunpack.c.l.b16 %v1700
    %v1900 = vunpack.c.l.b16 %v1701
    %v1901 = vunpack.c.l.b16 %v1702
    %v1902 = vunpack.c.l.b16 %v1703
    %v1903 = vunpack.c.l.b16 %v1704
    %v1904 = vunpack.c.l.b16 %v1705
    %v1905 = vunpack.c.l.b16 %v1706
    %v1906 = vunpack.c.l.b16 %v1707
    %v1907 = vunpack.c.l.b16 %v1708
    %v1908 = vunpack.c.l.b16 %v1709
    %v1909 = vunpack.c.l.b16 %v1710
    %v1910 = vunpack.c.l.b16 %v1711
    %v1911 = vunpack.c.l.b16 %v1712
    %v1912 = vunpack.c.l.b16 %v1713
    %v1913 = vunpack.c.l.b16 %v1714
    %v1914 = vunpack.c.l.b16 %v1715
    %v1915 = vunpack.c.l.b16 %v1716
    %v1916 = vunpack.c.l.b16 %v1717
    %v1917 = vunpack.c.l.b16 %v1718
    %v1918 = vunpack.c.l.b16 %v1719
    %v1919 = vunpack.c.l.b16 %v1720
    %v1920 = vunpack.c.l.b16 %v1721
    %v1921 = vunpack.c.l.b16 %v1722
    %v1922 = vunpack.c.l.b16 %v1723
    %v1923 = vunpack.c.l.b16 %v1724
    %v1924 = vunpack.c.l.b16 %v1725
    %v1925 = vunpack.c.l.b16 %v1726
    %v1926 = vunpack.c.l.b16 %v1727
    %v1927 = vunpack.c.l.b16 %v1728
    %v1928 = vunpack.c.l.b16 %v1729
    %v1929 = vunpack.c.l.b16 %v1730
    %v1930 = vunpack.c.l.b16 %v1731
    %v1931 = vunpack.c.l.b16 %v1732
    %v1932 = vunpack.c.l.b16 %v1733
    %v1933 = vunpack.c.l.b16 %v1734
    %v1934 = vunpack.c.l.b16 %v1735
    %v1935 = vunpack.c.l.b16 %v1736
    %v1936 = vunpack.c.l.b16 %v1737
    %v1937 = vunpack.c.l.b16 %v1738
    %v1938 = vunpack.c.l.b16 %v1739
    %v1939 = vunpack.c.l.b16 %v1740
    %v1940 = vunpack.c.l.b16 %v1741
    %v1941 = vunpack.c.l.b16 %v1742
    %v1942 = vunpack.c.l.b16 %v1743
    %v1943 = vunpack.c.l.b16 %v1744
    %v1944 = vunpack.c.l.b16 %v1745
    %v1945 = vunpack.c.l.b16 %v1746
    %v1946 = vunpack.c.l.b16 %v1747
    %v1947 = vunpack.c.l.b16 %v1748
    %v1948 = vunpack.c.l.b16 %v1749
    %v1949 = vunpack.c.l.b16 %v1750
    %v1950 = vunpack.c.l.b16 %v1751
    %v1951 = vunpack.c.l.b16 %v1752
    %v1952 = vunpack.c.l.b16 %v1753
    %v1953 = vunpack.c.l.b16 %v1754
    %v1954 = vunpack.c.l.b16 %v1755
    %v1955 = vunpack.c.l.b16 %v1756
    %v1956 = vunpack.c.l.b16 %v1757
    %v1957 = vunpack.c.l.b16 %v1758
    %v1958 = vunpack.c.l.b16 %v1759
    %v1959 = vunpack.c.l.b16 %v1760
    %v1960 = vunpack.c.l.b16 %v1761
    %v1961 = vunpack.c.l.b16 %v1762
    %v1962 = vunpack.c.l.b16 %v1763
    %v1963 = vunpack.c.l.b16 %v1764
    %v1964 = vunpack.c.l.b16 %v1765
    %v1965 = vunpack.c.l.b16 %v1766
    %v1966 = vunpack.c.l.b16 %v1767
    %v1967 = vunpack.c.l.b16 %v1768
    %v1968 = vunpack.c.l.b16 %v1769
    %v1969 = vunpack.c.l.b16 %v1770
    %v1970 = vunpack.c.l.b16 %v1771
    %v1971 = vunpack.c.l.b16 %v1772
    %v1972 = vunpack.c.l.b16 %v1773
    %v1973 = vunpack.c.l.b16 %v1774
    %v1974 = vunpack.c.l.b16 %v1775
    %v1975 = vunpack.c.l.b16 %v1776
    %v1976 = vunpack.c.l.b16 %v1777
    %v1977 = vunpack.c.l.b16 %v1778
    %v1978 = vunpack.c.l.b16 %v1779
    %v1979 = vunpack.c.l.b16 %v1780
    %v1980 = vunpack.c.l.b16 %v1781
    %v1981 = vunpack.c.l.b16 %v1782
    %v1982 = vunpack.c.l.b16 %v1783
    %v1983 = vunpack.c.l.b16 %v1784
    %v1984 = vpack.c.b16 %v1889, %v1888
    %v1985 = vpack.c.b16 %v1891, %v1890
    %v1986 = vpack.c.b16 %v1893, %v1892
    %v1987 = vpack.c.b16 %v1895, %v1894
    %v1988 = vpack.c.b16 %v1897, %v1896
    %v1989 = vpack.c.b16 %v1899, %v1898
    %v1990 = vpack.c.b16 %v1901, %v1900
    %v1991 = vpack.c.b16 %v1903, %v1902
    %v1992 = vpack.c.b16 %v1905, %v1904
    %v1993 = vpack.c.b16 %v1907, %v1906
    %v1994 = vpack.c.b16 %v1909, %v1908
    %v1995 = vpack.c.b16 %v1911, %v1910
    %v1996 = vpack.c.b16 %v1913, %v1912
    %v1997 = vpack.c.b16 %v1915, %v1914
    %v1998 = vpack.c.b16 %v1917, %v1916
    %v1999 = vpack.c.b16 %v1919, %v1918
    %v2000 = vpack.c.b16 %v1921, %v1920
    %v2001 = vpack.c.b16 %v1923, %v1922
    %v2002 = vpack.c.b16 %v1925, %v1924
    %v2003 = vpack.c.b16 %v1927, %v1926
    %v2004 = vpack.c.b16 %v1929, %v1928
    %v2005 = vpack.c.b16 %v1931, %v1930
    %v2006 = vpack.c.b16 %v1933, %v1932
    %v2007 = vpack.c.b16 %v1935, %v1934
    %v2008 = vpack.c.b16 %v1937, %v1936
    %v2009 = vpack.c.b16 %v1939, %v1938
    %v2010 = vpack.c.b16 %v1941, %v1940
    %v2011 = vpack.c.b16 %v1943, %v1942
    %v2012 = vpack.c.b16 %v1945, %v1944
    %v2013 = vpack.c.b16 %v1947, %v1946
    %v2014 = vpack.c.b16 %v1949, %v1948
    %v2015 = vpack.c.b16 %v1951, %v1950
    %v2016 = vpack.c.b16 %v1953, %v1952
    %v2017 = vpack.c.b16 %v1955, %v1954
    %v2018 = vpack.c.b16 %v1957, %v1956
    %v2019 = vpack.c.b16 %v1959, %v1958
    %v2020 = vpack.c.b16 %v1961, %v1960
    %v2021 = vpack.c.b16 %v1963, %v1962
    %v2022 = vpack.c.b16 %v1965, %v1964
    %v2023 = vpack.c.b16 %v1967, %v1966
    %v2024 = vpack.c.b16 %v1969, %v1968
    %v2025 = vpack.c.b16 %v1971, %v1970
    %v2026 = vpack.c.b16 %v1973, %v1972
    %v2027 = vpack.c.b16 %v1975, %v1974
    %v2028 = vpack.c.b16 %v1977, %v1976
    %v2029 = vpack.c.b16 %v1979, %v1978
    %v2030 = vpack.c.b16 %v1981, %v1980
    %v2031 = vpack.c.b16 %v1983, %v1982
    %2080 = vmatprep.subr.bf16.mxu0 0
    %2081 = vmatpush1.bf16.msra.mxu0 %v1991
    %2082 = vmatprep.subr.bf16.mxu0 0
    %2083 = vmatpush1.bf16.msra.mxu0 %v1990
    %2084 = vmatprep.subr.bf16.mxu0 0
    %2085 = vmatpush1.bf16.msra.mxu0 %v1989
    %2086 = vmatprep.subr.bf16.mxu0 0
    %2087 = vmatpush1.bf16.msra.mxu0 %v1988
    %2088 = vmatprep.subr.bf16.mxu0 0
    %2089 = vmatpush1.bf16.msra.mxu0 %v1987
    %2090 = vmatprep.subr.bf16.mxu0 0
    %2091 = vmatpush1.bf16.msra.mxu0 %v1986
    %2092 = vmatprep.subr.bf16.mxu0 0
    %2093 = vmatpush1.bf16.msra.mxu0 %v1985
    %2094 = vmatprep.subr.bf16.mxu0 0
    %2095 = vmatpush1.bf16.msra.mxu0 %v1984
    %2096 = vmatprep.subr.bf16.mxu0 0
    %2097 = vmatpush2.bf16.msra.mxu0 %v1999
    %2098 = vmatprep.subr.bf16.mxu0 0
    %2099 = vmatpush2.bf16.msra.mxu0 %v1998
    %2100 = vmatprep.subr.bf16.mxu0 0
    %2101 = vmatpush2.bf16.msra.mxu0 %v1997
    %2102 = vmatprep.subr.bf16.mxu0 0
    %2103 = vmatpush2.bf16.msra.mxu0 %v1996
    %2104 = vmatprep.subr.bf16.mxu0 0
    %2105 = vmatpush2.bf16.msra.mxu0 %v1995
    %2106 = vmatprep.subr.bf16.mxu0 0
    %2107 = vmatpush2.bf16.msra.mxu0 %v1994
    %2108 = vmatprep.subr.bf16.mxu0 0
    %2109 = vmatpush2.bf16.msra.mxu0 %v1993
    %2110 = vmatprep.subr.bf16.mxu0 0
    %2111 = vmatpush2.bf16.msra.mxu0 %v1992
    %2112 = vmatprep.mubr.bf16.mxu0 %v1684
    %2113 = vmatmul.mubr.bf16.gmra.mxu0 %v1683
    %v2114 = vpop.f32.mrf.mxu0
    %v2115 = vadd.f32 %v1790, %v2114
    %v2116 = vpop.f32.mrf.mxu0
    %v2117 = vpop.f32.mrf.mxu0
    %v2118 = vpop.f32.mrf.mxu0
    %2119 = vdwg.mxu0
    %2120 = vmatprep.subr.bf16.mxu0 0
    %2121 = vmatpush1.bf16.msra.mxu0 %v2007
    %2122 = vmatprep.subr.bf16.mxu0 0
    %2123 = vmatpush1.bf16.msra.mxu0 %v2006
    %2124 = vmatprep.subr.bf16.mxu0 0
    %2125 = vmatpush1.bf16.msra.mxu0 %v2005
    %2126 = vmatprep.subr.bf16.mxu0 0
    %2127 = vmatpush1.bf16.msra.mxu0 %v2004
    %2128 = vmatprep.subr.bf16.mxu0 0
    %2129 = vmatpush1.bf16.msra.mxu0 %v2003
    %2130 = vmatprep.subr.bf16.mxu0 0
    %2131 = vmatpush1.bf16.msra.mxu0 %v2002
    %2132 = vmatprep.subr.bf16.mxu0 0
    %2133 = vmatpush1.bf16.msra.mxu0 %v2001
    %2134 = vmatprep.subr.bf16.mxu0 0
    %2135 = vmatpush1.bf16.msra.mxu0 %v2000
    %2136 = vmatprep.subr.bf16.mxu0 0
    %2137 = vmatpush2.bf16.msra.mxu0 %v2015
    %2138 = vmatprep.subr.bf16.mxu0 0
    %2139 = vmatpush2.bf16.msra.mxu0 %v2014
    %2140 = vmatprep.subr.bf16.mxu0 0
    %2141 = vmatpush2.bf16.msra.mxu0 %v2013
    %2142 = vmatprep.subr.bf16.mxu0 0
    %2143 = vmatpush2.bf16.msra.mxu0 %v2012
    %2144 = vmatprep.subr.bf16.mxu0 0
    %2145 = vmatpush2.bf16.msra.mxu0 %v2011
    %2146 = vmatprep.subr.bf16.mxu0 0
    %2147 = vmatpush2.bf16.msra.mxu0 %v2010
    %2148 = vmatprep.subr.bf16.mxu0 0
    %2149 = vmatpush2.bf16.msra.mxu0 %v2009
    %2150 = vmatprep.subr.bf16.mxu0 0
    %2151 = vmatpush2.bf16.msra.mxu0 %v2008
    %2152 = vmatprep.mubr.bf16.mxu0 %v1686
    %2153 = vmatmul.mubr.bf16.gmra.mxu0 %v1685
    %v2154 = vpop.f32.mrf.mxu0
    %v2155 = vadd.f32 %v2115, %v2154
    %v2156 = vpop.f32.mrf.mxu0
    %v2157 = vpop.f32.mrf.mxu0
    %v2158 = vpop.f32.mrf.mxu0
    %2159 = vdwg.mxu0
    %2160 = vmatprep.subr.bf16.mxu0 0
    %2161 = vmatpush1.bf16.msra.mxu0 %v2023
    %2162 = vmatprep.subr.bf16.mxu0 0
    %2163 = vmatpush1.bf16.msra.mxu0 %v2022
    %2164 = vmatprep.subr.bf16.mxu0 0
    %2165 = vmatpush1.bf16.msra.mxu0 %v2021
    %2166 = vmatprep.subr.bf16.mxu0 0
    %2167 = vmatpush1.bf16.msra.mxu0 %v2020
    %2168 = vmatprep.subr.bf16.mxu0 0
    %2169 = vmatpush1.bf16.msra.mxu0 %v2019
    %2170 = vmatprep.subr.bf16.mxu0 0
    %2171 = vmatpush1.bf16.msra.mxu0 %v2018
    %2172 = vmatprep.subr.bf16.mxu0 0
    %2173 = vmatpush1.bf16.msra.mxu0 %v2017
    %2174 = vmatprep.subr.bf16.mxu0 0
    %2175 = vmatpush1.bf16.msra.mxu0 %v2016
    %2176 = vmatprep.subr.bf16.mxu0 0
    %2177 = vmatpush2.bf16.msra.mxu0 %v2031
    %2178 = vmatprep.subr.bf16.mxu0 0
    %2179 = vmatpush2.bf16.msra.mxu0 %v2030
    %2180 = vmatprep.subr.bf16.mxu0 0
    %2181 = vmatpush2.bf16.msra.mxu0 %v2029
    %2182 = vmatprep.subr.bf16.mxu0 0
    %2183 = vmatpush2.bf16.msra.mxu0 %v2028
    %2184 = vmatprep.subr.bf16.mxu0 0
    %2185 = vmatpush2.bf16.msra.mxu0 %v2027
    %2186 = vmatprep.subr.bf16.mxu0 0
    %2187 = vmatpush2.bf16.msra.mxu0 %v2026
    %2188 = vmatprep.subr.bf16.mxu0 0
    %2189 = vmatpush2.bf16.msra.mxu0 %v2025
    %2190 = vmatprep.subr.bf16.mxu0 0
    %2191 = vmatpush2.bf16.msra.mxu0 %v2024
    %2192 = vmatprep.mubr.bf16.mxu0 %v1688
    %2193 = vmatmul.mubr.bf16.gmra.mxu0 %v1687
    %v2194 = vpop.f32.mrf.mxu0
    %v2195 = vadd.f32 %v2155, %v2194
    %v2196 = vpop.f32.mrf.mxu0
    %v2197 = vpop.f32.mrf.mxu0
    %v2198 = vpop.f32.mrf.mxu0
    %2199 = vdwg.mxu0
    %2200 = vst [vmem:[#allocation7] sm:$0x3] %v2195
    // Predicated region
    $region38: #{tpu_custom_call.1} parent=1 // pred_check
      _
    $region39: #{tpu_custom_call.1} parent=1 // pred_check_branch
      %2202 = sbr.rel (0) target = $region41
    $region40: #{tpu_custom_call.1} parent=1 // pred_region
      %s2204 = ssub.s32 32, 32
      %2205 = vsyncadd [#allocation4], %s2204
      %s2207 = sshll.u32 [#allocation7], 4
      %s2208 = int_to_ptr.vmem [resolvable:$true] %s2207
      %2210 = dma.vmem_to_hbm [thread:$0]  %s2208, 32, %s7, [#allocation4]
    $region41: #{tpu_custom_call.1} parent=1 // pred_fallthru
      _
    // Predicated region
    $region42: #{tpu_custom_call.1} parent=1 // pred_check
      _
    $region43: #{tpu_custom_call.1} parent=1 // pred_check_branch
      %2212 = sbr.rel (0) target = $region45
    $region44: #{tpu_custom_call.1} parent=1 // pred_region
      %2213 = dma.done [#allocation4], 32
    $region45: #{tpu_custom_call.1} parent=1 // pred_fallthru
      _
    %2214 = vsyncpa [#allocation3], 1
    %2215 = vsyncpa [#allocation6], 1
    %2216 = vsyncpa [#allocation4], 1

// kernel: tpu_custom_call.1
$region0: #{tpu_custom_call.1}
  #allocation0 [shape = 'u32[]', space=smem, size = 0x4, offset = 0x4, fixed_abs, tag = 'smem constant byte address 0x4 - core index']
  #allocation1 [shape = 'u32[144,128]{1,0:T(1,128)}', space=vmem, size = 0x12000, scoped, tag = 'internal scratch']
  %s0 = inlined_call_operand.vmem [shape: bf16[2,7,7,8], index: 0, kind: input, shape index: {}]
  %s1 = inlined_call_operand.vmem [shape: bf16[8,128], index: 1, kind: input, shape index: {}]
  %s2 = inlined_call_operand.vmem [shape: f32[1,128], index: 2, kind: input, shape index: {}]
  %s3 = inlined_call_operand.vmem [shape: f32[1,128], index: 3, kind: input, shape index: {}]
  %s4 = inlined_call_operand.hbm [shape: bf16[512,768], index: 4, kind: input, shape index: {}]
  %s5 = inlined_call_operand.hbm [shape: bf16[768,128], index: 5, kind: input, shape index: {}]
  %s6 = inlined_call_operand.vmem [shape: f32[1,128], index: 6, kind: input, shape index: {}]
  %s7 = inlined_call_operand.hbm [shape: f32[2,128], index: 7, kind: output, shape index: {}]
  %s8 = sld [smem:[#allocation0]]
  $region46: #{tpu_custom_call.1} parent=0
    _
  %s10 = ssub.s32 1, %s8
  %s11 = scalar_select 0, %s10, %s8
  $region1: #{tpu_custom_call.1} parent=0
    #allocation2 [shape = 'u8[786432]{0}', space=vmem, size = 0xc0000, scoped, tag = 'input window, operand 4, single buffered']
    #allocation3 [shape = 's32[1]{0}', space=sflag, size = 0x4, scoped, tag = 'scoped memory for tpu_custom_call.1']
    #allocation4 [shape = 's32[1]{0}', space=sflag, size = 0x4, scoped, tag = 'scoped memory for tpu_custom_call.1']
    #allocation5 [shape = 'u8[196608]{0}', space=vmem, size = 0x30000, scoped, tag = 'input window, operand 5, single buffered']
    #allocation6 [shape = 's32[1]{0}', space=sflag, size = 0x4, scoped, tag = 'scoped memory for tpu_custom_call.1']
    #allocation7 [shape = 'u8[1024]{0}', space=vmem, size = 0x400, scoped, tag = 'output window, operand 0, single buffered']
    %12 = vsyncpa [#allocation3], 0
    %13 = vsyncpa [#allocation6], 0
    %14 = vsyncpa [#allocation4], 0
    // Predicated region
    $region2: #{tpu_custom_call.1} parent=1 // pred_check
      _
    $region3: #{tpu_custom_call.1} parent=1 // pred_check_branch
      %16 = sbr.rel (0) target = $region5
    $region4: #{tpu_custom_call.1} parent=1 // pred_region
      _
    $region5: #{tpu_custom_call.1} parent=1 // pred_fallthru
      _
    // Predicated region
    $region6: #{tpu_custom_call.1} parent=1 // pred_check
      _
    $region7: #{tpu_custom_call.1} parent=1 // pred_check_branch
      %18 = sbr.rel (0) target = $region9
    $region8: #{tpu_custom_call.1} parent=1 // pred_region
      _
    $region9: #{tpu_custom_call.1} parent=1 // pred_fallthru
      _
    // Predicated region
    $region10: #{tpu_custom_call.1} parent=1 // pred_check
      _
    $region11: #{tpu_custom_call.1} parent=1 // pred_check_branch
      %20 = sbr.rel (0) target = $region13
    $region12: #{tpu_custom_call.1} parent=1 // pred_region
      _
    $region13: #{tpu_custom_call.1} parent=1 // pred_fallthru
      _
    // Predicated region
    $region14: #{tpu_custom_call.1} parent=1 // pred_check
      _
    $region15: #{tpu_custom_call.1} parent=1 // pred_check_branch
      %22 = sbr.rel (0) target = $region17
    $region16: #{tpu_custom_call.1} parent=1 // pred_region
      _
    $region17: #{tpu_custom_call.1} parent=1 // pred_fallthru
      _
    // Predicated region
    $region18: #{tpu_custom_call.1} parent=1 // pred_check
      _
    $region19: #{tpu_custom_call.1} parent=1 // pred_check_branch
      %24 = sbr.rel (0) target = $region21
    $region20: #{tpu_custom_call.1} parent=1 // pred_region
      %s26 = ssub.s32 24576, 24576
      %27 = vsyncadd [#allocation3], %s26
      %s28 = sshll.u32 [#allocation2], 4
      %s29 = int_to_ptr.vmem [resolvable:$true] %s28
      %34 = dma.hbm_to_vmem [thread:$0]  %s4, 24576, %s29, [#allocation3], 384, 384, 24
    $region21: #{tpu_custom_call.1} parent=1 // pred_fallthru
      _
    // Predicated region
    $region22: #{tpu_custom_call.1} parent=1 // pred_check
      _
    $region23: #{tpu_custom_call.1} parent=1 // pred_check_branch
      %36 = sbr.rel (0) target = $region25
    $region24: #{tpu_custom_call.1} parent=1 // pred_region
      %s38 = ssub.s32 6144, 6144
      %39 = vsyncadd [#allocation6], %s38
      %s40 = sshll.u32 [#allocation5], 4
      %s41 = int_to_ptr.vmem [resolvable:$true] %s40
      %46 = dma.hbm_to_vmem [thread:$0]  %s5, 6144, %s41, [#allocation6], 64, 64, 4
    $region25: #{tpu_custom_call.1} parent=1 // pred_fallthru
      _
    // Predicated region
    $region26: #{tpu_custom_call.1} parent=1 // pred_check
      _
    $region27: #{tpu_custom_call.1} parent=1 // pred_check_branch
      %48 = sbr.rel (0) target = $region29
    $region28: #{tpu_custom_call.1} parent=1 // pred_region
      _
    $region29: #{tpu_custom_call.1} parent=1 // pred_fallthru
      _
    // Predicated region
    $region30: #{tpu_custom_call.1} parent=1 // pred_check
      _
    $region31: #{tpu_custom_call.1} parent=1 // pred_check_branch
      %50 = sbr.rel (0) target = $region33
    $region32: #{tpu_custom_call.1} parent=1 // pred_region
      %51 = dma.done [#allocation3], 24576
    $region33: #{tpu_custom_call.1} parent=1 // pred_fallthru
      _
    // Predicated region
    $region34: #{tpu_custom_call.1} parent=1 // pred_check
      _
    $region35: #{tpu_custom_call.1} parent=1 // pred_check_branch
      %53 = sbr.rel (0) target = $region37
    $region36: #{tpu_custom_call.1} parent=1 // pred_region
      %54 = dma.done [#allocation6], 6144
    $region37: #{tpu_custom_call.1} parent=1 // pred_fallthru
      _
    %v56 = vld [vmem:[%s0] sm:$0xf]
    %v57 = vld [vmem:[%s0 + $0x4] sm:$0xf]
    %v58 = vld [vmem:[%s0 + $0x8] sm:$0xf]
    %v59 = vld [vmem:[%s0 + $0xc] sm:$0xf]
    %v60 = vld [vmem:[%s0 + $0x10] sm:$0xf]
    %v61 = vld [vmem:[%s0 + $0x14] sm:$0xf]
    %v62 = vld [vmem:[%s0 + $0x18] sm:$0xf]
    %v63 = vld [vmem:[%s0 + $0x1c] sm:$0xf]
    %v64 = vld [vmem:[%s0 + $0x20] sm:$0xf]
    %v65 = vld [vmem:[%s0 + $0x24] sm:$0xf]
    %v66 = vld [vmem:[%s0 + $0x28] sm:$0xf]
    %v67 = vld [vmem:[%s0 + $0x2c] sm:$0xf]
    %v68 = vld [vmem:[%s0 + $0x30] sm:$0xf]
    %v69 = vld [vmem:[%s0 + $0x34] sm:$0xf]
    %v70 = vunpack.c.l.bf16 %v56
    %v71 = vunpack.c.l.bf16 %v57
    %v72 = vunpack.c.l.bf16 %v58
    %v73 = vunpack.c.l.bf16 %v59
    %v74 = vunpack.c.l.bf16 %v60
    %v75 = vunpack.c.l.bf16 %v61
    %v76 = vunpack.c.l.bf16 %v62
    %v77 = vunpack.c.l.bf16 %v63
    %v78 = vunpack.c.l.bf16 %v64
    %v79 = vunpack.c.l.bf16 %v65
    %v80 = vunpack.c.l.bf16 %v66
    %v81 = vunpack.c.l.bf16 %v67
    %v82 = vunpack.c.l.bf16 %v68
    %v83 = vunpack.c.l.bf16 %v69
    %v84 = vmax.f32 %v70, 0.0
    %v85 = vmax.f32 %v71, 0.0
    %v86 = vmax.f32 %v72, 0.0
    %v87 = vmax.f32 %v73, 0.0
    %v88 = vmax.f32 %v74, 0.0
    %v89 = vmax.f32 %v75, 0.0
    %v90 = vmax.f32 %v76, 0.0
    %v91 = vmax.f32 %v77, 0.0
    %v92 = vmax.f32 %v78, 0.0
    %v93 = vmax.f32 %v79, 0.0
    %v94 = vmax.f32 %v80, 0.0
    %v95 = vmax.f32 %v81, 0.0
    %v96 = vmax.f32 %v82, 0.0
    %v97 = vmax.f32 %v83, 0.0
    %v98 = vadd.f32 %v86, %v87
    %v99 = vadd.f32 %v93, %v94
    %v100 = vadd.f32 %v98, %v88
    %v101 = vadd.f32 %v99, %v95
    %v102 = vadd.f32 %v100, %v84
    %v103 = vadd.f32 %v101, %v91
    %v104 = vadd.f32 %v102, %v85
    %v105 = vadd.f32 %v103, %v92
    %v106 = vadd.f32 %v100, %v89
    %v107 = vadd.f32 %v101, %v96
    %v108 = vadd.f32 %v106, %v90
    %v109 = vadd.f32 %v107, %v97
    %vm110 = vcmask 61440
    %v111 = vsel %vm110, %v104, 0.0
    %v112 = vrot.slane %v111, 4
    %v113 = vadd.f32 %v111, %v112
    %v114 = vrot.slane %v113, 2
    %v115 = vadd.f32 %v113, %v114
    %v116 = vrot.slane %v115, 1
    %v117 = vadd.f32 %v115, %v116
    %v118 = vsel %vm110, %v105, 0.0
    %v119 = vrot.slane %v118, 4
    %v120 = vadd.f32 %v118, %v119
    %v121 = vrot.slane %v120, 2
    %v122 = vadd.f32 %v120, %v121
    %v123 = vrot.slane %v122, 1
    %v124 = vadd.f32 %v122, %v123
    %v127 = vrot.slane %v104, 2
    %v128 = vrot.slane %v105, 2
    %v131 = vsel %vm110, %v127, 0.0
    %v132 = vrot.slane %v131, 4
    %v133 = vadd.f32 %v131, %v132
    %v134 = vrot.slane %v133, 2
    %v135 = vadd.f32 %v133, %v134
    %v136 = vrot.slane %v135, 1
    %v137 = vadd.f32 %v135, %v136
    %v138 = vsel %vm110, %v128, 0.0
    %v139 = vrot.slane %v138, 4
    %v140 = vadd.f32 %v138, %v139
    %v141 = vrot.slane %v140, 2
    %v142 = vadd.f32 %v140, %v141
    %v143 = vrot.slane %v142, 1
    %v144 = vadd.f32 %v142, %v143
    %v145 = vsel %vm110, %v108, 0.0
    %v146 = vrot.slane %v145, 4
    %v147 = vadd.f32 %v145, %v146
    %v148 = vrot.slane %v147, 2
    %v149 = vadd.f32 %v147, %v148
    %v150 = vrot.slane %v149, 1
    %v151 = vadd.f32 %v149, %v150
    %v152 = vsel %vm110, %v109, 0.0
    %v153 = vrot.slane %v152, 4
    %v154 = vadd.f32 %v152, %v153
    %v155 = vrot.slane %v154, 2
    %v156 = vadd.f32 %v154, %v155
    %v157 = vrot.slane %v156, 1
    %v158 = vadd.f32 %v156, %v157
    %v161 = vrot.slane %v108, 2
    %v162 = vrot.slane %v109, 2
    %v165 = vsel %vm110, %v161, 0.0
    %v166 = vrot.slane %v165, 4
    %v167 = vadd.f32 %v165, %v166
    %v168 = vrot.slane %v167, 2
    %v169 = vadd.f32 %v167, %v168
    %v170 = vrot.slane %v169, 1
    %v171 = vadd.f32 %v169, %v170
    %v172 = vsel %vm110, %v162, 0.0
    %v173 = vrot.slane %v172, 4
    %v174 = vadd.f32 %v172, %v173
    %v175 = vrot.slane %v174, 2
    %v176 = vadd.f32 %v174, %v175
    %v177 = vrot.slane %v176, 1
    %v178 = vadd.f32 %v176, %v177
    %vm181 = vcmask 1041409
    %v182 = vsel %vm181, %v124, %v117
    %vm186 = vcmask 1043459
    %v187 = vsel %vm186, %v144, %v137
    %vm191 = vcmask 1045509
    %v192 = vsel %vm191, %v158, %v151
    %vm196 = vcmask 1047559
    %v197 = vsel %vm196, %v178, %v171
    %vm199 = vcmask 1041408
    %v200 = vsel %vm199, %v182, %v187
    %vm201 = vcmask 1043456
    %v202 = vsel %vm201, %v200, %v192
    %vm203 = vcmask 1045504
    %v204 = vsel %vm203, %v202, %v197
    %v205 = vpack.c.bf16 %v204, %v204
    %v206 = vld [vmem:[%s1] sm:$0xf]
    %vm207 = vcmask 64512
    %v209 = vsel %vm207, %v205, 0
    %v212 = vsel %vm201, %v206, 0
    %214 = vmatprep.subr.bf16.mxu0 0
    %215 = vmatpush1.bf16.msra.mxu0 0
    %216 = vmatprep.subr.bf16.mxu0 0
    %217 = vmatpush1.bf16.msra.mxu0 0
    %218 = vmatprep.subr.bf16.mxu0 0
    %219 = vmatpush1.bf16.msra.mxu0 0
    %220 = vmatprep.subr.bf16.mxu0 0
    %221 = vmatpush1.bf16.msra.mxu0 0
    %222 = vmatprep.subr.bf16.mxu0 0
    %223 = vmatpush1.bf16.msra.mxu0 0
    %224 = vmatprep.subr.bf16.mxu0 0
    %225 = vmatpush1.bf16.msra.mxu0 0
    %226 = vmatprep.subr.bf16.mxu0 0
    %227 = vmatpush1.bf16.msra.mxu0 0
    %228 = vmatprep.subr.bf16.mxu0 0
    %229 = vmatpush1.bf16.msra.mxu0 %v212
    %230 = vmatprep.subr.bf16.mxu0 0
    %231 = vmatpush2.bf16.msra.mxu0 0
    %232 = vmatprep.subr.bf16.mxu0 0
    %233 = vmatpush2.bf16.msra.mxu0 0
    %234 = vmatprep.subr.bf16.mxu0 0
    %235 = vmatpush2.bf16.msra.mxu0 0
    %236 = vmatprep.subr.bf16.mxu0 0
    %237 = vmatpush2.bf16.msra.mxu0 0
    %238 = vmatprep.subr.bf16.mxu0 0
    %239 = vmatpush2.bf16.msra.mxu0 0
    %240 = vmatprep.subr.bf16.mxu0 0
    %241 = vmatpush2.bf16.msra.mxu0 0
    %242 = vmatprep.subr.bf16.mxu0 0
    %243 = vmatpush2.bf16.msra.mxu0 0
    %244 = vmatprep.subr.bf16.mxu0 0
    %245 = vmatpush2.bf16.msra.mxu0 0
    %246 = vmatprep.mubr.bf16.mxu0 0
    %247 = vmatmul.mubr.bf16.gmra.mxu0 %v209
    %v248 = vpop.f32.mrf.mxu0
    %v249 = vadd.f32 0.0, %v248
    %v250 = vpop.f32.mrf.mxu0
    %v251 = vpop.f32.mrf.mxu0
    %v252 = vpop.f32.mrf.mxu0
    %253 = vdwg.mxu0
    %v254 = vld [vmem:[%s2] sm:$0x1]
    %v256 = vlaneseq
    %v257 = vshrl.u32 %v256, 7
    %v258 = vsub.s32 0, %v257
    %v259 = vrot.slane %v254, %v258
    %v261 = vmul.f32 %v249, %v259
    %v262 = vld [vmem:[%s3] sm:$0x1]
    %v264 = vlaneseq
    %v265 = vshrl.u32 %v264, 7
    %v266 = vsub.s32 0, %v265
    %v267 = vrot.slane %v262, %v266
    %v269 = vadd.f32 %v261, %v267
    %v270 = vmax.f32 %v269, 0.0
    %v271 = vpack.c.bf16 %v270, %v270
    %v273 = vrot.slane %v271, 1
    %v275 = vrot.slane %v271, 2
    %v277 = vrot.slane %v271, 3
    %v279 = vld [vmem:[#allocation2] sm:$0xff]
    %v280 = vld [vmem:[#allocation2 + $0x8] sm:$0xff]
    %v281 = vld [vmem:[#allocation2 + $0x10] sm:$0xff]
    %v282 = vld [vmem:[#allocation2 + $0x18] sm:$0xff]
    %v283 = vld [vmem:[#allocation2 + $0x20] sm:$0xff]
    %v284 = vld [vmem:[#allocation2 + $0x28] sm:$0xff]
    %v285 = vld [vmem:[#allocation2 + $0x30] sm:$0xff]
    %v286 = vld [vmem:[#allocation2 + $0x38] sm:$0xff]
    %v287 = vld [vmem:[#allocation2 + $0x40] sm:$0xff]
    %v288 = vld [vmem:[#allocation2 + $0x48] sm:$0xff]
    %v289 = vld [vmem:[#allocation2 + $0x50] sm:$0xff]
    %v290 = vld [vmem:[#allocation2 + $0x58] sm:$0xff]
    %v291 = vld [vmem:[#allocation2 + $0x60] sm:$0xff]
    %v292 = vld [vmem:[#allocation2 + $0x68] sm:$0xff]
    %v293 = vld [vmem:[#allocation2 + $0x70] sm:$0xff]
    %v294 = vld [vmem:[#allocation2 + $0x78] sm:$0xff]
    %v295 = vld [vmem:[#allocation2 + $0x80] sm:$0xff]
    %v296 = vld [vmem:[#allocation2 + $0x88] sm:$0xff]
    %v297 = vld [vmem:[#allocation2 + $0x90] sm:$0xff]
    %v298 = vld [vmem:[#allocation2 + $0x98] sm:$0xff]
    %v299 = vld [vmem:[#allocation2 + $0xa0] sm:$0xff]
    %v300 = vld [vmem:[#allocation2 + $0xa8] sm:$0xff]
    %v301 = vld [vmem:[#allocation2 + $0xb0] sm:$0xff]
    %v302 = vld [vmem:[#allocation2 + $0xb8] sm:$0xff]
    %v303 = vld [vmem:[#allocation2 + $0xc0] sm:$0xff]
    %v304 = vld [vmem:[#allocation2 + $0xc8] sm:$0xff]
    %v305 = vld [vmem:[#allocation2 + $0xd0] sm:$0xff]
    %v306 = vld [vmem:[#allocation2 + $0xd8] sm:$0xff]
    %v307 = vld [vmem:[#allocation2 + $0xe0] sm:$0xff]
    %v308 = vld [vmem:[#allocation2 + $0xe8] sm:$0xff]
    %v309 = vld [vmem:[#allocation2 + $0xf0] sm:$0xff]
    %v310 = vld [vmem:[#allocation2 + $0xf8] sm:$0xff]
    %v311 = vld [vmem:[#allocation2 + $0x100] sm:$0xff]
    %v312 = vld [vmem:[#allocation2 + $0x108] sm:$0xff]
    %v313 = vld [vmem:[#allocation2 + $0x110] sm:$0xff]
    %v314 = vld [vmem:[#allocation2 + $0x118] sm:$0xff]
    %v315 = vld [vmem:[#allocation2 + $0x120] sm:$0xff]
    %v316 = vld [vmem:[#allocation2 + $0x128] sm:$0xff]
    %v317 = vld [vmem:[#allocation2 + $0x130] sm:$0xff]
    %v318 = vld [vmem:[#allocation2 + $0x138] sm:$0xff]
    %v319 = vld [vmem:[#allocation2 + $0x140] sm:$0xff]
    %v320 = vld [vmem:[#allocation2 + $0x148] sm:$0xff]
    %v321 = vld [vmem:[#allocation2 + $0x150] sm:$0xff]
    %v322 = vld [vmem:[#allocation2 + $0x158] sm:$0xff]
    %v323 = vld [vmem:[#allocation2 + $0x160] sm:$0xff]
    %v324 = vld [vmem:[#allocation2 + $0x168] sm:$0xff]
    %v325 = vld [vmem:[#allocation2 + $0x170] sm:$0xff]
    %v326 = vld [vmem:[#allocation2 + $0x178] sm:$0xff]
    %v327 = vld [vmem:[#allocation2 + $0x180] sm:$0xff]
    %v328 = vld [vmem:[#allocation2 + $0x188] sm:$0xff]
    %v329 = vld [vmem:[#allocation2 + $0x190] sm:$0xff]
    %v330 = vld [vmem:[#allocation2 + $0x198] sm:$0xff]
    %v331 = vld [vmem:[#allocation2 + $0x1a0] sm:$0xff]
    %v332 = vld [vmem:[#allocation2 + $0x1a8] sm:$0xff]
    %v333 = vld [vmem:[#allocation2 + $0x1b0] sm:$0xff]
    %v334 = vld [vmem:[#allocation2 + $0x1b8] sm:$0xff]
    %v335 = vld [vmem:[#allocation2 + $0x1c0] sm:$0xff]
    %v336 = vld [vmem:[#allocation2 + $0x1c8] sm:$0xff]
    %v337 = vld [vmem:[#allocation2 + $0x1d0] sm:$0xff]
    %v338 = vld [vmem:[#allocation2 + $0x1d8] sm:$0xff]
    %v339 = vld [vmem:[#allocation2 + $0x1e0] sm:$0xff]
    %v340 = vld [vmem:[#allocation2 + $0x1e8] sm:$0xff]
    %v341 = vld [vmem:[#allocation2 + $0x1f0] sm:$0xff]
    %v342 = vld [vmem:[#allocation2 + $0x1f8] sm:$0xff]
    %v343 = vld [vmem:[#allocation2 + $0x200] sm:$0xff]
    %v344 = vld [vmem:[#allocation2 + $0x208] sm:$0xff]
    %v345 = vld [vmem:[#allocation2 + $0x210] sm:$0xff]
    %v346 = vld [vmem:[#allocation2 + $0x218] sm:$0xff]
    %v347 = vld [vmem:[#allocation2 + $0x220] sm:$0xff]
    %v348 = vld [vmem:[#allocation2 + $0x228] sm:$0xff]
    %v349 = vld [vmem:[#allocation2 + $0x230] sm:$0xff]
    %v350 = vld [vmem:[#allocation2 + $0x238] sm:$0xff]
    %v351 = vld [vmem:[#allocation2 + $0x240] sm:$0xff]
    %v352 = vld [vmem:[#allocation2 + $0x248] sm:$0xff]
    %v353 = vld [vmem:[#allocation2 + $0x250] sm:$0xff]
    %v354 = vld [vmem:[#allocation2 + $0x258] sm:$0xff]
    %v355 = vld [vmem:[#allocation2 + $0x260] sm:$0xff]
    %v356 = vld [vmem:[#allocation2 + $0x268] sm:$0xff]
    %v357 = vld [vmem:[#allocation2 + $0x270] sm:$0xff]
    %v358 = vld [vmem:[#allocation2 + $0x278] sm:$0xff]
    %v359 = vld [vmem:[#allocation2 + $0x280] sm:$0xff]
    %v360 = vld [vmem:[#allocation2 + $0x288] sm:$0xff]
    %v361 = vld [vmem:[#allocation2 + $0x290] sm:$0xff]
    %v362 = vld [vmem:[#allocation2 + $0x298] sm:$0xff]
    %v363 = vld [vmem:[#allocation2 + $0x2a0] sm:$0xff]
    %v364 = vld [vmem:[#allocation2 + $0x2a8] sm:$0xff]
    %v365 = vld [vmem:[#allocation2 + $0x2b0] sm:$0xff]
    %v366 = vld [vmem:[#allocation2 + $0x2b8] sm:$0xff]
    %v367 = vld [vmem:[#allocation2 + $0x2c0] sm:$0xff]
    %v368 = vld [vmem:[#allocation2 + $0x2c8] sm:$0xff]
    %v369 = vld [vmem:[#allocation2 + $0x2d0] sm:$0xff]
    %v370 = vld [vmem:[#allocation2 + $0x2d8] sm:$0xff]
    %v371 = vld [vmem:[#allocation2 + $0x2e0] sm:$0xff]
    %v372 = vld [vmem:[#allocation2 + $0x2e8] sm:$0xff]
    %v373 = vld [vmem:[#allocation2 + $0x2f0] sm:$0xff]
    %v374 = vld [vmem:[#allocation2 + $0x2f8] sm:$0xff]
    %v375 = vld [vmem:[#allocation2 + $0x300] sm:$0xff]
    %v376 = vld [vmem:[#allocation2 + $0x308] sm:$0xff]
    %v377 = vld [vmem:[#allocation2 + $0x310] sm:$0xff]
    %v378 = vld [vmem:[#allocation2 + $0x318] sm:$0xff]
    %v379 = vld [vmem:[#allocation2 + $0x320] sm:$0xff]
    %v380 = vld [vmem:[#allocation2 + $0x328] sm:$0xff]
    %v381 = vld [vmem:[#allocation2 + $0x330] sm:$0xff]
    %v382 = vld [vmem:[#allocation2 + $0x338] sm:$0xff]
    %v383 = vld [vmem:[#allocation2 + $0x340] sm:$0xff]
    %v384 = vld [vmem:[#allocation2 + $0x348] sm:$0xff]
    %v385 = vld [vmem:[#allocation2 + $0x350] sm:$0xff]
    %v386 = vld [vmem:[#allocation2 + $0x358] sm:$0xff]
    %v387 = vld [vmem:[#allocation2 + $0x360] sm:$0xff]
    %v388 = vld [vmem:[#allocation2 + $0x368] sm:$0xff]
    %v389 = vld [vmem:[#allocation2 + $0x370] sm:$0xff]
    %v390 = vld [vmem:[#allocation2 + $0x378] sm:$0xff]
    %v391 = vld [vmem:[#allocation2 + $0x380] sm:$0xff]
    %v392 = vld [vmem:[#allocation2 + $0x388] sm:$0xff]
    %v393 = vld [vmem:[#allocation2 + $0x390] sm:$0xff]
    %v394 = vld [vmem:[#allocation2 + $0x398] sm:$0xff]
    %v395 = vld [vmem:[#allocation2 + $0x3a0] sm:$0xff]
    %v396 = vld [vmem:[#allocation2 + $0x3a8] sm:$0xff]
    %v397 = vld [vmem:[#allocation2 + $0x3b0] sm:$0xff]
    %v398 = vld [vmem:[#allocation2 + $0x3b8] sm:$0xff]
    %v399 = vld [vmem:[#allocation2 + $0x3c0] sm:$0xff]
    %v400 = vld [vmem:[#allocation2 + $0x3c8] sm:$0xff]
    %v401 = vld [vmem:[#allocation2 + $0x3d0] sm:$0xff]
    %v402 = vld [vmem:[#allocation2 + $0x3d8] sm:$0xff]
    %v403 = vld [vmem:[#allocation2 + $0x3e0] sm:$0xff]
    %v404 = vld [vmem:[#allocation2 + $0x3e8] sm:$0xff]
    %v405 = vld [vmem:[#allocation2 + $0x3f0] sm:$0xff]
    %v406 = vld [vmem:[#allocation2 + $0x3f8] sm:$0xff]
    %v407 = vld [vmem:[#allocation2 + $0x400] sm:$0xff]
    %v408 = vld [vmem:[#allocation2 + $0x408] sm:$0xff]
    %v409 = vld [vmem:[#allocation2 + $0x410] sm:$0xff]
    %v410 = vld [vmem:[#allocation2 + $0x418] sm:$0xff]
    %v411 = vld [vmem:[#allocation2 + $0x420] sm:$0xff]
    %v412 = vld [vmem:[#allocation2 + $0x428] sm:$0xff]
    %v413 = vld [vmem:[#allocation2 + $0x430] sm:$0xff]
    %v414 = vld [vmem:[#allocation2 + $0x438] sm:$0xff]
    %v415 = vld [vmem:[#allocation2 + $0x440] sm:$0xff]
    %v416 = vld [vmem:[#allocation2 + $0x448] sm:$0xff]
    %v417 = vld [vmem:[#allocation2 + $0x450] sm:$0xff]
    %v418 = vld [vmem:[#allocation2 + $0x458] sm:$0xff]
    %v419 = vld [vmem:[#allocation2 + $0x460] sm:$0xff]
    %v420 = vld [vmem:[#allocation2 + $0x468] sm:$0xff]
    %v421 = vld [vmem:[#allocation2 + $0x470] sm:$0xff]
    %v422 = vld [vmem:[#allocation2 + $0x478] sm:$0xff]
    %v423 = vld [vmem:[#allocation2 + $0x480] sm:$0xff]
    %v424 = vld [vmem:[#allocation2 + $0x488] sm:$0xff]
    %v425 = vld [vmem:[#allocation2 + $0x490] sm:$0xff]
    %v426 = vld [vmem:[#allocation2 + $0x498] sm:$0xff]
    %v427 = vld [vmem:[#allocation2 + $0x4a0] sm:$0xff]
    %v428 = vld [vmem:[#allocation2 + $0x4a8] sm:$0xff]
    %v429 = vld [vmem:[#allocation2 + $0x4b0] sm:$0xff]
    %v430 = vld [vmem:[#allocation2 + $0x4b8] sm:$0xff]
    %v431 = vld [vmem:[#allocation2 + $0x4c0] sm:$0xff]
    %v432 = vld [vmem:[#allocation2 + $0x4c8] sm:$0xff]
    %v433 = vld [vmem:[#allocation2 + $0x4d0] sm:$0xff]
    %v434 = vld [vmem:[#allocation2 + $0x4d8] sm:$0xff]
    %v435 = vld [vmem:[#allocation2 + $0x4e0] sm:$0xff]
    %v436 = vld [vmem:[#allocation2 + $0x4e8] sm:$0xff]
    %v437 = vld [vmem:[#allocation2 + $0x4f0] sm:$0xff]
    %v438 = vld [vmem:[#allocation2 + $0x4f8] sm:$0xff]
    %v439 = vld [vmem:[#allocation2 + $0x500] sm:$0xff]
    %v440 = vld [vmem:[#allocation2 + $0x508] sm:$0xff]
    %v441 = vld [vmem:[#allocation2 + $0x510] sm:$0xff]
    %v442 = vld [vmem:[#allocation2 + $0x518] sm:$0xff]
    %v443 = vld [vmem:[#allocation2 + $0x520] sm:$0xff]
    %v444 = vld [vmem:[#allocation2 + $0x528] sm:$0xff]
    %v445 = vld [vmem:[#allocation2 + $0x530] sm:$0xff]
    %v446 = vld [vmem:[#allocation2 + $0x538] sm:$0xff]
    %v447 = vld [vmem:[#allocation2 + $0x540] sm:$0xff]
    %v448 = vld [vmem:[#allocation2 + $0x548] sm:$0xff]
    %v449 = vld [vmem:[#allocation2 + $0x550] sm:$0xff]
    %v450 = vld [vmem:[#allocation2 + $0x558] sm:$0xff]
    %v451 = vld [vmem:[#allocation2 + $0x560] sm:$0xff]
    %v452 = vld [vmem:[#allocation2 + $0x568] sm:$0xff]
    %v453 = vld [vmem:[#allocation2 + $0x570] sm:$0xff]
    %v454 = vld [vmem:[#allocation2 + $0x578] sm:$0xff]
    %v455 = vld [vmem:[#allocation2 + $0x580] sm:$0xff]
    %v456 = vld [vmem:[#allocation2 + $0x588] sm:$0xff]
    %v457 = vld [vmem:[#allocation2 + $0x590] sm:$0xff]
    %v458 = vld [vmem:[#allocation2 + $0x598] sm:$0xff]
    %v459 = vld [vmem:[#allocation2 + $0x5a0] sm:$0xff]
    %v460 = vld [vmem:[#allocation2 + $0x5a8] sm:$0xff]
    %v461 = vld [vmem:[#allocation2 + $0x5b0] sm:$0xff]
    %v462 = vld [vmem:[#allocation2 + $0x5b8] sm:$0xff]
    %v463 = vld [vmem:[#allocation2 + $0x5c0] sm:$0xff]
    %v464 = vld [vmem:[#allocation2 + $0x5c8] sm:$0xff]
    %v465 = vld [vmem:[#allocation2 + $0x5d0] sm:$0xff]
    %v466 = vld [vmem:[#allocation2 + $0x5d8] sm:$0xff]
    %v467 = vld [vmem:[#allocation2 + $0x5e0] sm:$0xff]
    %v468 = vld [vmem:[#allocation2 + $0x5e8] sm:$0xff]
    %v469 = vld [vmem:[#allocation2 + $0x5f0] sm:$0xff]
    %v470 = vld [vmem:[#allocation2 + $0x5f8] sm:$0xff]
    %v663 = vunpack.c.l.b16 %v279
    %v664 = vunpack.c.h.b16 %v279
    %v665 = vunpack.c.l.b16 %v280
    %v666 = vunpack.c.h.b16 %v280
    %v667 = vunpack.c.l.b16 %v281
    %v668 = vunpack.c.h.b16 %v281
    %v669 = vunpack.c.l.b16 %v282
    %v670 = vunpack.c.h.b16 %v282
    %v671 = vunpack.c.l.b16 %v283
    %v672 = vunpack.c.h.b16 %v283
    %v673 = vunpack.c.l.b16 %v284
    %v674 = vunpack.c.h.b16 %v284
    %v675 = vunpack.c.l.b16 %v285
    %v676 = vunpack.c.h.b16 %v285
    %v677 = vunpack.c.l.b16 %v286
    %v678 = vunpack.c.h.b16 %v286
    %v679 = vunpack.c.l.b16 %v287
    %v680 = vunpack.c.h.b16 %v287
    %v681 = vunpack.c.l.b16 %v288
    %v682 = vunpack.c.h.b16 %v288
    %v683 = vunpack.c.l.b16 %v289
    %v684 = vunpack.c.h.b16 %v289
    %v685 = vunpack.c.l.b16 %v290
    %v686 = vunpack.c.h.b16 %v290
    %v687 = vunpack.c.l.b16 %v291
    %v688 = vunpack.c.h.b16 %v291
    %v689 = vunpack.c.l.b16 %v292
    %v690 = vunpack.c.h.b16 %v292
    %v691 = vunpack.c.l.b16 %v293
    %v692 = vunpack.c.h.b16 %v293
    %v693 = vunpack.c.l.b16 %v294
    %v694 = vunpack.c.h.b16 %v294
    %v695 = vunpack.c.l.b16 %v295
    %v696 = vunpack.c.h.b16 %v295
    %v697 = vunpack.c.l.b16 %v296
    %v698 = vunpack.c.h.b16 %v296
    %v699 = vunpack.c.l.b16 %v297
    %v700 = vunpack.c.h.b16 %v297
    %v701 = vunpack.c.l.b16 %v298
    %v702 = vunpack.c.h.b16 %v298
    %v703 = vunpack.c.l.b16 %v299
    %v704 = vunpack.c.h.b16 %v299
    %v705 = vunpack.c.l.b16 %v300
    %v706 = vunpack.c.h.b16 %v300
    %v707 = vunpack.c.l.b16 %v301
    %v708 = vunpack.c.h.b16 %v301
    %v709 = vunpack.c.l.b16 %v302
    %v710 = vunpack.c.h.b16 %v302
    %v711 = vunpack.c.l.b16 %v303
    %v712 = vunpack.c.h.b16 %v303
    %v713 = vunpack.c.l.b16 %v304
    %v714 = vunpack.c.h.b16 %v304
    %v715 = vunpack.c.l.b16 %v305
    %v716 = vunpack.c.h.b16 %v305
    %v717 = vunpack.c.l.b16 %v306
    %v718 = vunpack.c.h.b16 %v306
    %v719 = vunpack.c.l.b16 %v307
    %v720 = vunpack.c.h.b16 %v307
    %v721 = vunpack.c.l.b16 %v308
    %v722 = vunpack.c.h.b16 %v308
    %v723 = vunpack.c.l.b16 %v309
    %v724 = vunpack.c.h.b16 %v309
    %v725 = vunpack.c.l.b16 %v310
    %v726 = vunpack.c.h.b16 %v310
    %v727 = vunpack.c.l.b16 %v311
    %v728 = vunpack.c.h.b16 %v311
    %v729 = vunpack.c.l.b16 %v312
    %v730 = vunpack.c.h.b16 %v312
    %v731 = vunpack.c.l.b16 %v313
    %v732 = vunpack.c.h.b16 %v313
    %v733 = vunpack.c.l.b16 %v314
    %v734 = vunpack.c.h.b16 %v314
    %v735 = vunpack.c.l.b16 %v315
    %v736 = vunpack.c.h.b16 %v315
    %v737 = vunpack.c.l.b16 %v316
    %v738 = vunpack.c.h.b16 %v316
    %v739 = vunpack.c.l.b16 %v317
    %v740 = vunpack.c.h.b16 %v317
    %v741 = vunpack.c.l.b16 %v318
    %v742 = vunpack.c.h.b16 %v318
    %v743 = vunpack.c.l.b16 %v319
    %v744 = vunpack.c.h.b16 %v319
    %v745 = vunpack.c.l.b16 %v320
    %v746 = vunpack.c.h.b16 %v320
    %v747 = vunpack.c.l.b16 %v321
    %v748 = vunpack.c.h.b16 %v321
    %v749 = vunpack.c.l.b16 %v322
    %v750 = vunpack.c.h.b16 %v322
    %v751 = vunpack.c.l.b16 %v323
    %v752 = vunpack.c.h.b16 %v323
    %v753 = vunpack.c.l.b16 %v324
    %v754 = vunpack.c.h.b16 %v324
    %v755 = vunpack.c.l.b16 %v325
    %v756 = vunpack.c.h.b16 %v325
    %v757 = vunpack.c.l.b16 %v326
    %v758 = vunpack.c.h.b16 %v326
    %v759 = vunpack.c.l.b16 %v327
    %v760 = vunpack.c.h.b16 %v327
    %v761 = vunpack.c.l.b16 %v328
    %v762 = vunpack.c.h.b16 %v328
    %v763 = vunpack.c.l.b16 %v329
    %v764 = vunpack.c.h.b16 %v329
    %v765 = vunpack.c.l.b16 %v330
    %v766 = vunpack.c.h.b16 %v330
    %v767 = vunpack.c.l.b16 %v331
    %v768 = vunpack.c.h.b16 %v331
    %v769 = vunpack.c.l.b16 %v332
    %v770 = vunpack.c.h.b16 %v332
    %v771 = vunpack.c.l.b16 %v333
    %v772 = vunpack.c.h.b16 %v333
    %v773 = vunpack.c.l.b16 %v334
    %v774 = vunpack.c.h.b16 %v334
    %v775 = vunpack.c.l.b16 %v335
    %v776 = vunpack.c.h.b16 %v335
    %v777 = vunpack.c.l.b16 %v336
    %v778 = vunpack.c.h.b16 %v336
    %v779 = vunpack.c.l.b16 %v337
    %v780 = vunpack.c.h.b16 %v337
    %v781 = vunpack.c.l.b16 %v338
    %v782 = vunpack.c.h.b16 %v338
    %v783 = vunpack.c.l.b16 %v339
    %v784 = vunpack.c.h.b16 %v339
    %v785 = vunpack.c.l.b16 %v340
    %v786 = vunpack.c.h.b16 %v340
    %v787 = vunpack.c.l.b16 %v341
    %v788 = vunpack.c.h.b16 %v341
    %v789 = vunpack.c.l.b16 %v342
    %v790 = vunpack.c.h.b16 %v342
    %v791 = vunpack.c.l.b16 %v343
    %v792 = vunpack.c.h.b16 %v343
    %v793 = vunpack.c.l.b16 %v344
    %v794 = vunpack.c.h.b16 %v344
    %v795 = vunpack.c.l.b16 %v345
    %v796 = vunpack.c.h.b16 %v345
    %v797 = vunpack.c.l.b16 %v346
    %v798 = vunpack.c.h.b16 %v346
    %v799 = vunpack.c.l.b16 %v347
    %v800 = vunpack.c.h.b16 %v347
    %v801 = vunpack.c.l.b16 %v348
    %v802 = vunpack.c.h.b16 %v348
    %v803 = vunpack.c.l.b16 %v349
    %v804 = vunpack.c.h.b16 %v349
    %v805 = vunpack.c.l.b16 %v350
    %v806 = vunpack.c.h.b16 %v350
    %v807 = vunpack.c.l.b16 %v351
    %v808 = vunpack.c.h.b16 %v351
    %v809 = vunpack.c.l.b16 %v352
    %v810 = vunpack.c.h.b16 %v352
    %v811 = vunpack.c.l.b16 %v353
    %v812 = vunpack.c.h.b16 %v353
    %v813 = vunpack.c.l.b16 %v354
    %v814 = vunpack.c.h.b16 %v354
    %v815 = vunpack.c.l.b16 %v355
    %v816 = vunpack.c.h.b16 %v355
    %v817 = vunpack.c.l.b16 %v356
    %v818 = vunpack.c.h.b16 %v356
    %v819 = vunpack.c.l.b16 %v357
    %v820 = vunpack.c.h.b16 %v357
    %v821 = vunpack.c.l.b16 %v358
    %v822 = vunpack.c.h.b16 %v358
    %v823 = vunpack.c.l.b16 %v359
    %v824 = vunpack.c.h.b16 %v359
    %v825 = vunpack.c.l.b16 %v360
    %v826 = vunpack.c.h.b16 %v360
    %v827 = vunpack.c.l.b16 %v361
    %v828 = vunpack.c.h.b16 %v361
    %v829 = vunpack.c.l.b16 %v362
    %v830 = vunpack.c.h.b16 %v362
    %v831 = vunpack.c.l.b16 %v363
    %v832 = vunpack.c.h.b16 %v363
    %v833 = vunpack.c.l.b16 %v364
    %v834 = vunpack.c.h.b16 %v364
    %v835 = vunpack.c.l.b16 %v365
    %v836 = vunpack.c.h.b16 %v365
    %v837 = vunpack.c.l.b16 %v366
    %v838 = vunpack.c.h.b16 %v366
    %v839 = vunpack.c.l.b16 %v367
    %v840 = vunpack.c.h.b16 %v367
    %v841 = vunpack.c.l.b16 %v368
    %v842 = vunpack.c.h.b16 %v368
    %v843 = vunpack.c.l.b16 %v369
    %v844 = vunpack.c.h.b16 %v369
    %v845 = vunpack.c.l.b16 %v370
    %v846 = vunpack.c.h.b16 %v370
    %v847 = vunpack.c.l.b16 %v371
    %v848 = vunpack.c.h.b16 %v371
    %v849 = vunpack.c.l.b16 %v372
    %v850 = vunpack.c.h.b16 %v372
    %v851 = vunpack.c.l.b16 %v373
    %v852 = vunpack.c.h.b16 %v373
    %v853 = vunpack.c.l.b16 %v374
    %v854 = vunpack.c.h.b16 %v374
    %v855 = vunpack.c.l.b16 %v375
    %v856 = vunpack.c.h.b16 %v375
    %v857 = vunpack.c.l.b16 %v376
    %v858 = vunpack.c.h.b16 %v376
    %v859 = vunpack.c.l.b16 %v377
    %v860 = vunpack.c.h.b16 %v377
    %v861 = vunpack.c.l.b16 %v378
    %v862 = vunpack.c.h.b16 %v378
    %v863 = vunpack.c.l.b16 %v379
    %v864 = vunpack.c.h.b16 %v379
    %v865 = vunpack.c.l.b16 %v380
    %v866 = vunpack.c.h.b16 %v380
    %v867 = vunpack.c.l.b16 %v381
    %v868 = vunpack.c.h.b16 %v381
    %v869 = vunpack.c.l.b16 %v382
    %v870 = vunpack.c.h.b16 %v382
    %v871 = vunpack.c.l.b16 %v383
    %v872 = vunpack.c.h.b16 %v383
    %v873 = vunpack.c.l.b16 %v384
    %v874 = vunpack.c.h.b16 %v384
    %v875 = vunpack.c.l.b16 %v385
    %v876 = vunpack.c.h.b16 %v385
    %v877 = vunpack.c.l.b16 %v386
    %v878 = vunpack.c.h.b16 %v386
    %v879 = vunpack.c.l.b16 %v387
    %v880 = vunpack.c.h.b16 %v387
    %v881 = vunpack.c.l.b16 %v388
    %v882 = vunpack.c.h.b16 %v388
    %v883 = vunpack.c.l.b16 %v389
    %v884 = vunpack.c.h.b16 %v389
    %v885 = vunpack.c.l.b16 %v390
    %v886 = vunpack.c.h.b16 %v390
    %v887 = vunpack.c.l.b16 %v391
    %v888 = vunpack.c.h.b16 %v391
    %v889 = vunpack.c.l.b16 %v392
    %v890 = vunpack.c.h.b16 %v392
    %v891 = vunpack.c.l.b16 %v393
    %v892 = vunpack.c.h.b16 %v393
    %v893 = vunpack.c.l.b16 %v394
    %v894 = vunpack.c.h.b16 %v394
    %v895 = vunpack.c.l.b16 %v395
    %v896 = vunpack.c.h.b16 %v395
    %v897 = vunpack.c.l.b16 %v396
    %v898 = vunpack.c.h.b16 %v396
    %v899 = vunpack.c.l.b16 %v397
    %v900 = vunpack.c.h.b16 %v397
    %v901 = vunpack.c.l.b16 %v398
    %v902 = vunpack.c.h.b16 %v398
    %v903 = vunpack.c.l.b16 %v399
    %v904 = vunpack.c.h.b16 %v399
    %v905 = vunpack.c.l.b16 %v400
    %v906 = vunpack.c.h.b16 %v400
    %v907 = vunpack.c.l.b16 %v401
    %v908 = vunpack.c.h.b16 %v401
    %v909 = vunpack.c.l.b16 %v402
    %v910 = vunpack.c.h.b16 %v402
    %v911 = vunpack.c.l.b16 %v403
    %v912 = vunpack.c.h.b16 %v403
    %v913 = vunpack.c.l.b16 %v404
    %v914 = vunpack.c.h.b16 %v404
    %v915 = vunpack.c.l.b16 %v405
    %v916 = vunpack.c.h.b16 %v405
    %v917 = vunpack.c.l.b16 %v406
    %v918 = vunpack.c.h.b16 %v406
    %v919 = vunpack.c.l.b16 %v407
    %v920 = vunpack.c.h.b16 %v407
    %v921 = vunpack.c.l.b16 %v408
    %v922 = vunpack.c.h.b16 %v408
    %v923 = vunpack.c.l.b16 %v409
    %v924 = vunpack.c.h.b16 %v409
    %v925 = vunpack.c.l.b16 %v410
    %v926 = vunpack.c.h.b16 %v410
    %v927 = vunpack.c.l.b16 %v411
    %v928 = vunpack.c.h.b16 %v411
    %v929 = vunpack.c.l.b16 %v412
    %v930 = vunpack.c.h.b16 %v412
    %v931 = vunpack.c.l.b16 %v413
    %v932 = vunpack.c.h.b16 %v413
    %v933 = vunpack.c.l.b16 %v414
    %v934 = vunpack.c.h.b16 %v414
    %v935 = vunpack.c.l.b16 %v415
    %v936 = vunpack.c.h.b16 %v415
    %v937 = vunpack.c.l.b16 %v416
    %v938 = vunpack.c.h.b16 %v416
    %v939 = vunpack.c.l.b16 %v417
    %v940 = vunpack.c.h.b16 %v417
    %v941 = vunpack.c.l.b16 %v418
    %v942 = vunpack.c.h.b16 %v418
    %v943 = vunpack.c.l.b16 %v419
    %v944 = vunpack.c.h.b16 %v419
    %v945 = vunpack.c.l.b16 %v420
    %v946 = vunpack.c.h.b16 %v420
    %v947 = vunpack.c.l.b16 %v421
    %v948 = vunpack.c.h.b16 %v421
    %v949 = vunpack.c.l.b16 %v422
    %v950 = vunpack.c.h.b16 %v422
    %v951 = vunpack.c.l.b16 %v423
    %v952 = vunpack.c.h.b16 %v423
    %v953 = vunpack.c.l.b16 %v424
    %v954 = vunpack.c.h.b16 %v424
    %v955 = vunpack.c.l.b16 %v425
    %v956 = vunpack.c.h.b16 %v425
    %v957 = vunpack.c.l.b16 %v426
    %v958 = vunpack.c.h.b16 %v426
    %v959 = vunpack.c.l.b16 %v427
    %v960 = vunpack.c.h.b16 %v427
    %v961 = vunpack.c.l.b16 %v428
    %v962 = vunpack.c.h.b16 %v428
    %v963 = vunpack.c.l.b16 %v429
    %v964 = vunpack.c.h.b16 %v429
    %v965 = vunpack.c.l.b16 %v430
    %v966 = vunpack.c.h.b16 %v430
    %v967 = vunpack.c.l.b16 %v431
    %v968 = vunpack.c.h.b16 %v431
    %v969 = vunpack.c.l.b16 %v432
    %v970 = vunpack.c.h.b16 %v432
    %v971 = vunpack.c.l.b16 %v433
    %v972 = vunpack.c.h.b16 %v433
    %v973 = vunpack.c.l.b16 %v434
    %v974 = vunpack.c.h.b16 %v434
    %v975 = vunpack.c.l.b16 %v435
    %v976 = vunpack.c.h.b16 %v435
    %v977 = vunpack.c.l.b16 %v436
    %v978 = vunpack.c.h.b16 %v436
    %v979 = vunpack.c.l.b16 %v437
    %v980 = vunpack.c.h.b16 %v437
    %v981 = vunpack.c.l.b16 %v438
    %v982 = vunpack.c.h.b16 %v438
    %v983 = vunpack.c.l.b16 %v439
    %v984 = vunpack.c.h.b16 %v439
    %v985 = vunpack.c.l.b16 %v440
    %v986 = vunpack.c.h.b16 %v440
    %v987 = vunpack.c.l.b16 %v441
    %v988 = vunpack.c.h.b16 %v441
    %v989 = vunpack.c.l.b16 %v442
    %v990 = vunpack.c.h.b16 %v442
    %v991 = vunpack.c.l.b16 %v443
    %v992 = vunpack.c.h.b16 %v443
    %v993 = vunpack.c.l.b16 %v444
    %v994 = vunpack.c.h.b16 %v444
    %v995 = vunpack.c.l.b16 %v445
    %v996 = vunpack.c.h.b16 %v445
    %v997 = vunpack.c.l.b16 %v446
    %v998 = vunpack.c.h.b16 %v446
    %v999 = vunpack.c.l.b16 %v447
    %v1000 = vunpack.c.h.b16 %v447
    %v1001 = vunpack.c.l.b16 %v448
    %v1002 = vunpack.c.h.b16 %v448
    %v1003 = vunpack.c.l.b16 %v449
    %v1004 = vunpack.c.h.b16 %v449
    %v1005 = vunpack.c.l.b16 %v450
    %v1006 = vunpack.c.h.b16 %v450
    %v1007 = vunpack.c.l.b16 %v451
    %v1008 = vunpack.c.h.b16 %v451
    %v1009 = vunpack.c.l.b16 %v452
    %v1010 = vunpack.c.h.b16 %v452
    %v1011 = vunpack.c.l.b16 %v453
    %v1012 = vunpack.c.h.b16 %v453
    %v1013 = vunpack.c.l.b16 %v454
    %v1014 = vunpack.c.h.b16 %v454
    %v1015 = vunpack.c.l.b16 %v455
    %v1016 = vunpack.c.h.b16 %v455
    %v1017 = vunpack.c.l.b16 %v456
    %v1018 = vunpack.c.h.b16 %v456
    %v1019 = vunpack.c.l.b16 %v457
    %v1020 = vunpack.c.h.b16 %v457
    %v1021 = vunpack.c.l.b16 %v458
    %v1022 = vunpack.c.h.b16 %v458
    %v1023 = vunpack.c.l.b16 %v459
    %v1024 = vunpack.c.h.b16 %v459
    %v1025 = vunpack.c.l.b16 %v460
    %v1026 = vunpack.c.h.b16 %v460
    %v1027 = vunpack.c.l.b16 %v461
    %v1028 = vunpack.c.h.b16 %v461
    %v1029 = vunpack.c.l.b16 %v462
    %v1030 = vunpack.c.h.b16 %v462
    %v1031 = vunpack.c.l.b16 %v463
    %v1032 = vunpack.c.h.b16 %v463
    %v1033 = vunpack.c.l.b16 %v464
    %v1034 = vunpack.c.h.b16 %v464
    %v1035 = vunpack.c.l.b16 %v465
    %v1036 = vunpack.c.h.b16 %v465
    %v1037 = vunpack.c.l.b16 %v466
    %v1038 = vunpack.c.h.b16 %v466
    %v1039 = vunpack.c.l.b16 %v467
    %v1040 = vunpack.c.h.b16 %v467
    %v1041 = vunpack.c.l.b16 %v468
    %v1042 = vunpack.c.h.b16 %v468
    %v1043 = vunpack.c.l.b16 %v469
    %v1044 = vunpack.c.h.b16 %v469
    %v1045 = vunpack.c.l.b16 %v470
    %v1046 = vunpack.c.h.b16 %v470
    %v1047 = vpack.c.b16 %v669, %v663
    %v1048 = vpack.c.b16 %v670, %v664
    %v1049 = vpack.c.b16 %v671, %v665
    %v1050 = vpack.c.b16 %v672, %v666
    %v1051 = vpack.c.b16 %v673, %v667
    %v1052 = vpack.c.b16 %v674, %v668
    %v1053 = vpack.c.b16 %v681, %v675
    %v1054 = vpack.c.b16 %v682, %v676
    %v1055 = vpack.c.b16 %v683, %v677
    %v1056 = vpack.c.b16 %v684, %v678
    %v1057 = vpack.c.b16 %v685, %v679
    %v1058 = vpack.c.b16 %v686, %v680
    %v1059 = vpack.c.b16 %v693, %v687
    %v1060 = vpack.c.b16 %v694, %v688
    %v1061 = vpack.c.b16 %v695, %v689
    %v1062 = vpack.c.b16 %v696, %v690
    %v1063 = vpack.c.b16 %v697, %v691
    %v1064 = vpack.c.b16 %v698, %v692
    %v1065 = vpack.c.b16 %v705, %v699
    %v1066 = vpack.c.b16 %v706, %v700
    %v1067 = vpack.c.b16 %v707, %v701
    %v1068 = vpack.c.b16 %v708, %v702
    %v1069 = vpack.c.b16 %v709, %v703
    %v1070 = vpack.c.b16 %v710, %v704
    %v1071 = vpack.c.b16 %v717, %v711
    %v1072 = vpack.c.b16 %v718, %v712
    %v1073 = vpack.c.b16 %v719, %v713
    %v1074 = vpack.c.b16 %v720, %v714
    %v1075 = vpack.c.b16 %v721, %v715
    %v1076 = vpack.c.b16 %v722, %v716
    %v1077 = vpack.c.b16 %v729, %v723
    %v1078 = vpack.c.b16 %v730, %v724
    %v1079 = vpack.c.b16 %v731, %v725
    %v1080 = vpack.c.b16 %v732, %v726
    %v1081 = vpack.c.b16 %v733, %v727
    %v1082 = vpack.c.b16 %v734, %v728
    %v1083 = vpack.c.b16 %v741, %v735
    %v1084 = vpack.c.b16 %v742, %v736
    %v1085 = vpack.c.b16 %v743, %v737
    %v1086 = vpack.c.b16 %v744, %v738
    %v1087 = vpack.c.b16 %v745, %v739
    %v1088 = vpack.c.b16 %v746, %v740
    %v1089 = vpack.c.b16 %v753, %v747
    %v1090 = vpack.c.b16 %v754, %v748
    %v1091 = vpack.c.b16 %v755, %v749
    %v1092 = vpack.c.b16 %v756, %v750
    %v1093 = vpack.c.b16 %v757, %v751
    %v1094 = vpack.c.b16 %v758, %v752
    %v1095 = vpack.c.b16 %v765, %v759
    %v1096 = vpack.c.b16 %v766, %v760
    %v1097 = vpack.c.b16 %v767, %v761
    %v1098 = vpack.c.b16 %v768, %v762
    %v1099 = vpack.c.b16 %v769, %v763
    %v1100 = vpack.c.b16 %v770, %v764
    %v1101 = vpack.c.b16 %v777, %v771
    %v1102 = vpack.c.b16 %v778, %v772
    %v1103 = vpack.c.b16 %v779, %v773
    %v1104 = vpack.c.b16 %v780, %v774
    %v1105 = vpack.c.b16 %v781, %v775
    %v1106 = vpack.c.b16 %v782, %v776
    %v1107 = vpack.c.b16 %v789, %v783
    %v1108 = vpack.c.b16 %v790, %v784
    %v1109 = vpack.c.b16 %v791, %v785
    %v1110 = vpack.c.b16 %v792, %v786
    %v1111 = vpack.c.b16 %v793, %v787
    %v1112 = vpack.c.b16 %v794, %v788
    %v1113 = vpack.c.b16 %v801, %v795
    %v1114 = vpack.c.b16 %v802, %v796
    %v1115 = vpack.c.b16 %v803, %v797
    %v1116 = vpack.c.b16 %v804, %v798
    %v1117 = vpack.c.b16 %v805, %v799
    %v1118 = vpack.c.b16 %v806, %v800
    %v1119 = vpack.c.b16 %v813, %v807
    %v1120 = vpack.c.b16 %v814, %v808
    %v1121 = vpack.c.b16 %v815, %v809
    %v1122 = vpack.c.b16 %v816, %v810
    %v1123 = vpack.c.b16 %v817, %v811
    %v1124 = vpack.c.b16 %v818, %v812
    %v1125 = vpack.c.b16 %v825, %v819
    %v1126 = vpack.c.b16 %v826, %v820
    %v1127 = vpack.c.b16 %v827, %v821
    %v1128 = vpack.c.b16 %v828, %v822
    %v1129 = vpack.c.b16 %v829, %v823
    %v1130 = vpack.c.b16 %v830, %v824
    %v1131 = vpack.c.b16 %v837, %v831
    %v1132 = vpack.c.b16 %v838, %v832
    %v1133 = vpack.c.b16 %v839, %v833
    %v1134 = vpack.c.b16 %v840, %v834
    %v1135 = vpack.c.b16 %v841, %v835
    %v1136 = vpack.c.b16 %v842, %v836
    %v1137 = vpack.c.b16 %v849, %v843
    %v1138 = vpack.c.b16 %v850, %v844
    %v1139 = vpack.c.b16 %v851, %v845
    %v1140 = vpack.c.b16 %v852, %v846
    %v1141 = vpack.c.b16 %v853, %v847
    %v1142 = vpack.c.b16 %v854, %v848
    %v1143 = vpack.c.b16 %v861, %v855
    %v1144 = vpack.c.b16 %v862, %v856
    %v1145 = vpack.c.b16 %v863, %v857
    %v1146 = vpack.c.b16 %v864, %v858
    %v1147 = vpack.c.b16 %v865, %v859
    %v1148 = vpack.c.b16 %v866, %v860
    %v1149 = vpack.c.b16 %v873, %v867
    %v1150 = vpack.c.b16 %v874, %v868
    %v1151 = vpack.c.b16 %v875, %v869
    %v1152 = vpack.c.b16 %v876, %v870
    %v1153 = vpack.c.b16 %v877, %v871
    %v1154 = vpack.c.b16 %v878, %v872
    %v1155 = vpack.c.b16 %v885, %v879
    %v1156 = vpack.c.b16 %v886, %v880
    %v1157 = vpack.c.b16 %v887, %v881
    %v1158 = vpack.c.b16 %v888, %v882
    %v1159 = vpack.c.b16 %v889, %v883
    %v1160 = vpack.c.b16 %v890, %v884
    %v1161 = vpack.c.b16 %v897, %v891
    %v1162 = vpack.c.b16 %v898, %v892
    %v1163 = vpack.c.b16 %v899, %v893
    %v1164 = vpack.c.b16 %v900, %v894
    %v1165 = vpack.c.b16 %v901, %v895
    %v1166 = vpack.c.b16 %v902, %v896
    %v1167 = vpack.c.b16 %v909, %v903
    %v1168 = vpack.c.b16 %v910, %v904
    %v1169 = vpack.c.b16 %v911, %v905
    %v1170 = vpack.c.b16 %v912, %v906
    %v1171 = vpack.c.b16 %v913, %v907
    %v1172 = vpack.c.b16 %v914, %v908
    %v1173 = vpack.c.b16 %v921, %v915
    %v1174 = vpack.c.b16 %v922, %v916
    %v1175 = vpack.c.b16 %v923, %v917
    %v1176 = vpack.c.b16 %v924, %v918
    %v1177 = vpack.c.b16 %v925, %v919
    %v1178 = vpack.c.b16 %v926, %v920
    %v1179 = vpack.c.b16 %v933, %v927
    %v1180 = vpack.c.b16 %v934, %v928
    %v1181 = vpack.c.b16 %v935, %v929
    %v1182 = vpack.c.b16 %v936, %v930
    %v1183 = vpack.c.b16 %v937, %v931
    %v1184 = vpack.c.b16 %v938, %v932
    %v1185 = vpack.c.b16 %v945, %v939
    %v1186 = vpack.c.b16 %v946, %v940
    %v1187 = vpack.c.b16 %v947, %v941
    %v1188 = vpack.c.b16 %v948, %v942
    %v1189 = vpack.c.b16 %v949, %v943
    %v1190 = vpack.c.b16 %v950, %v944
    %v1191 = vpack.c.b16 %v957, %v951
    %v1192 = vpack.c.b16 %v958, %v952
    %v1193 = vpack.c.b16 %v959, %v953
    %v1194 = vpack.c.b16 %v960, %v954
    %v1195 = vpack.c.b16 %v961, %v955
    %v1196 = vpack.c.b16 %v962, %v956
    %v1197 = vpack.c.b16 %v969, %v963
    %v1198 = vpack.c.b16 %v970, %v964
    %v1199 = vpack.c.b16 %v971, %v965
    %v1200 = vpack.c.b16 %v972, %v966
    %v1201 = vpack.c.b16 %v973, %v967
    %v1202 = vpack.c.b16 %v974, %v968
    %v1203 = vpack.c.b16 %v981, %v975
    %v1204 = vpack.c.b16 %v982, %v976
    %v1205 = vpack.c.b16 %v983, %v977
    %v1206 = vpack.c.b16 %v984, %v978
    %v1207 = vpack.c.b16 %v985, %v979
    %v1208 = vpack.c.b16 %v986, %v980
    %v1209 = vpack.c.b16 %v993, %v987
    %v1210 = vpack.c.b16 %v994, %v988
    %v1211 = vpack.c.b16 %v995, %v989
    %v1212 = vpack.c.b16 %v996, %v990
    %v1213 = vpack.c.b16 %v997, %v991
    %v1214 = vpack.c.b16 %v998, %v992
    %v1215 = vpack.c.b16 %v1005, %v999
    %v1216 = vpack.c.b16 %v1006, %v1000
    %v1217 = vpack.c.b16 %v1007, %v1001
    %v1218 = vpack.c.b16 %v1008, %v1002
    %v1219 = vpack.c.b16 %v1009, %v1003
    %v1220 = vpack.c.b16 %v1010, %v1004
    %v1221 = vpack.c.b16 %v1017, %v1011
    %v1222 = vpack.c.b16 %v1018, %v1012
    %v1223 = vpack.c.b16 %v1019, %v1013
    %v1224 = vpack.c.b16 %v1020, %v1014
    %v1225 = vpack.c.b16 %v1021, %v1015
    %v1226 = vpack.c.b16 %v1022, %v1016
    %v1227 = vpack.c.b16 %v1029, %v1023
    %v1228 = vpack.c.b16 %v1030, %v1024
    %v1229 = vpack.c.b16 %v1031, %v1025
    %v1230 = vpack.c.b16 %v1032, %v1026
    %v1231 = vpack.c.b16 %v1033, %v1027
    %v1232 = vpack.c.b16 %v1034, %v1028
    %v1233 = vpack.c.b16 %v1041, %v1035
    %v1234 = vpack.c.b16 %v1042, %v1036
    %v1235 = vpack.c.b16 %v1043, %v1037
    %v1236 = vpack.c.b16 %v1044, %v1038
    %v1237 = vpack.c.b16 %v1045, %v1039
    %v1238 = vpack.c.b16 %v1046, %v1040
    %1431 = vmatprep.subr.bf16.mxu0 %v1090
    %1432 = vmatpush1.bf16.msra.mxu0 %v1089
    %1433 = vmatprep.subr.bf16.mxu0 %v1084
    %1434 = vmatpush1.bf16.msra.mxu0 %v1083
    %1435 = vmatprep.subr.bf16.mxu0 %v1078
    %1436 = vmatpush1.bf16.msra.mxu0 %v1077
    %1437 = vmatprep.subr.bf16.mxu0 %v1072
    %1438 = vmatpush1.bf16.msra.mxu0 %v1071
    %1439 = vmatprep.subr.bf16.mxu0 %v1066
    %1440 = vmatpush1.bf16.msra.mxu0 %v1065
    %1441 = vmatprep.subr.bf16.mxu0 %v1060
    %1442 = vmatpush1.bf16.msra.mxu0 %v1059
    %1443 = vmatprep.subr.bf16.mxu0 %v1054
    %1444 = vmatpush1.bf16.msra.mxu0 %v1053
    %1445 = vmatprep.subr.bf16.mxu0 %v1048
    %1446 = vmatpush1.bf16.msra.mxu0 %v1047
    %1447 = vmatprep.subr.bf16.mxu0 %v1138
    %1448 = vmatpush2.bf16.msra.mxu0 %v1137
    %1449 = vmatprep.subr.bf16.mxu0 %v1132
    %1450 = vmatpush2.bf16.msra.mxu0 %v1131
    %1451 = vmatprep.subr.bf16.mxu0 %v1126
    %1452 = vmatpush2.bf16.msra.mxu0 %v1125
    %1453 = vmatprep.subr.bf16.mxu0 %v1120
    %1454 = vmatpush2.bf16.msra.mxu0 %v1119
    %1455 = vmatprep.subr.bf16.mxu0 %v1114
    %1456 = vmatpush2.bf16.msra.mxu0 %v1113
    %1457 = vmatprep.subr.bf16.mxu0 %v1108
    %1458 = vmatpush2.bf16.msra.mxu0 %v1107
    %1459 = vmatprep.subr.bf16.mxu0 %v1102
    %1460 = vmatpush2.bf16.msra.mxu0 %v1101
    %1461 = vmatprep.subr.bf16.mxu0 %v1096
    %1462 = vmatpush2.bf16.msra.mxu0 %v1095
    %1463 = vmatprep.mubr.bf16.mxu0 %v273
    %1464 = vmatmul.mubr.bf16.gmra.mxu0 %v271
    %v1465 = vpop.f32.mrf.mxu0
    %v1466 = vadd.f32 0.0, %v1465
    %v1467 = vpop.f32.mrf.mxu0
    %v1468 = vadd.f32 0.0, %v1467
    %v1469 = vpop.f32.mrf.mxu0
    %v1470 = vpop.f32.mrf.mxu0
    %1471 = vdwg.mxu0
    %1472 = vmatprep.subr.bf16.mxu0 %v1186
    %1473 = vmatpush1.bf16.msra.mxu0 %v1185
    %1474 = vmatprep.subr.bf16.mxu0 %v1180
    %1475 = vmatpush1.bf16.msra.mxu0 %v1179
    %1476 = vmatprep.subr.bf16.mxu0 %v1174
    %1477 = vmatpush1.bf16.msra.mxu0 %v1173
    %1478 = vmatprep.subr.bf16.mxu0 %v1168
    %1479 = vmatpush1.bf16.msra.mxu0 %v1167
    %1480 = vmatprep.subr.bf16.mxu0 %v1162
    %1481 = vmatpush1.bf16.msra.mxu0 %v1161
    %1482 = vmatprep.subr.bf16.mxu0 %v1156
    %1483 = vmatpush1.bf16.msra.mxu0 %v1155
    %1484 = vmatprep.subr.bf16.mxu0 %v1150
    %1485 = vmatpush1.bf16.msra.mxu0 %v1149
    %1486 = vmatprep.subr.bf16.mxu0 %v1144
    %1487 = vmatpush1.bf16.msra.mxu0 %v1143
    %1488 = vmatprep.subr.bf16.mxu0 %v1234
    %1489 = vmatpush2.bf16.msra.mxu0 %v1233
    %1490 = vmatprep.subr.bf16.mxu0 %v1228
    %1491 = vmatpush2.bf16.msra.mxu0 %v1227
    %1492 = vmatprep.subr.bf16.mxu0 %v1222
    %1493 = vmatpush2.bf16.msra.mxu0 %v1221
    %1494 = vmatprep.subr.bf16.mxu0 %v1216
    %1495 = vmatpush2.bf16.msra.mxu0 %v1215
    %1496 = vmatprep.subr.bf16.mxu0 %v1210
    %1497 = vmatpush2.bf16.msra.mxu0 %v1209
    %1498 = vmatprep.subr.bf16.mxu0 %v1204
    %1499 = vmatpush2.bf16.msra.mxu0 %v1203
    %1500 = vmatprep.subr.bf16.mxu0 %v1198
    %1501 = vmatpush2.bf16.msra.mxu0 %v1197
    %1502 = vmatprep.subr.bf16.mxu0 %v1192
    %1503 = vmatpush2.bf16.msra.mxu0 %v1191
    %1504 = vmatprep.mubr.bf16.mxu0 %v277
    %1505 = vmatmul.mubr.bf16.gmra.mxu0 %v275
    %v1506 = vpop.f32.mrf.mxu0
    %v1507 = vadd.f32 %v1466, %v1506
    %v1508 = vpop.f32.mrf.mxu0
    %v1509 = vadd.f32 %v1468, %v1508
    %v1510 = vpop.f32.mrf.mxu0
    %v1511 = vpop.f32.mrf.mxu0
    %1512 = vdwg.mxu0
    %1513 = vmatprep.subr.bf16.mxu0 %v1092
    %1514 = vmatpush1.bf16.msra.mxu0 %v1091
    %1515 = vmatprep.subr.bf16.mxu0 %v1086
    %1516 = vmatpush1.bf16.msra.mxu0 %v1085
    %1517 = vmatprep.subr.bf16.mxu0 %v1080
    %1518 = vmatpush1.bf16.msra.mxu0 %v1079
    %1519 = vmatprep.subr.bf16.mxu0 %v1074
    %1520 = vmatpush1.bf16.msra.mxu0 %v1073
    %1521 = vmatprep.subr.bf16.mxu0 %v1068
    %1522 = vmatpush1.bf16.msra.mxu0 %v1067
    %1523 = vmatprep.subr.bf16.mxu0 %v1062
    %1524 = vmatpush1.bf16.msra.mxu0 %v1061
    %1525 = vmatprep.subr.bf16.mxu0 %v1056
    %1526 = vmatpush1.bf16.msra.mxu0 %v1055
    %1527 = vmatprep.subr.bf16.mxu0 %v1050
    %1528 = vmatpush1.bf16.msra.mxu0 %v1049
    %1529 = vmatprep.subr.bf16.mxu0 %v1140
    %1530 = vmatpush2.bf16.msra.mxu0 %v1139
    %1531 = vmatprep.subr.bf16.mxu0 %v1134
    %1532 = vmatpush2.bf16.msra.mxu0 %v1133
    %1533 = vmatprep.subr.bf16.mxu0 %v1128
    %1534 = vmatpush2.bf16.msra.mxu0 %v1127
    %1535 = vmatprep.subr.bf16.mxu0 %v1122
    %1536 = vmatpush2.bf16.msra.mxu0 %v1121
    %1537 = vmatprep.subr.bf16.mxu0 %v1116
    %1538 = vmatpush2.bf16.msra.mxu0 %v1115
    %1539 = vmatprep.subr.bf16.mxu0 %v1110
    %1540 = vmatpush2.bf16.msra.mxu0 %v1109
    %1541 = vmatprep.subr.bf16.mxu0 %v1104
    %1542 = vmatpush2.bf16.msra.mxu0 %v1103
    %1543 = vmatprep.subr.bf16.mxu0 %v1098
    %1544 = vmatpush2.bf16.msra.mxu0 %v1097
    %1545 = vmatprep.mubr.bf16.mxu0 %v273
    %1546 = vmatmul.mubr.bf16.gmra.mxu0 %v271
    %v1547 = vpop.f32.mrf.mxu0
    %v1548 = vadd.f32 0.0, %v1547
    %v1549 = vpop.f32.mrf.mxu0
    %v1550 = vadd.f32 0.0, %v1549
    %v1551 = vpop.f32.mrf.mxu0
    %v1552 = vpop.f32.mrf.mxu0
    %1553 = vdwg.mxu0
    %1554 = vmatprep.subr.bf16.mxu0 %v1188
    %1555 = vmatpush1.bf16.msra.mxu0 %v1187
    %1556 = vmatprep.subr.bf16.mxu0 %v1182
    %1557 = vmatpush1.bf16.msra.mxu0 %v1181
    %1558 = vmatprep.subr.bf16.mxu0 %v1176
    %1559 = vmatpush1.bf16.msra.mxu0 %v1175
    %1560 = vmatprep.subr.bf16.mxu0 %v1170
    %1561 = vmatpush1.bf16.msra.mxu0 %v1169
    %1562 = vmatprep.subr.bf16.mxu0 %v1164
    %1563 = vmatpush1.bf16.msra.mxu0 %v1163
    %1564 = vmatprep.subr.bf16.mxu0 %v1158
    %1565 = vmatpush1.bf16.msra.mxu0 %v1157
    %1566 = vmatprep.subr.bf16.mxu0 %v1152
    %1567 = vmatpush1.bf16.msra.mxu0 %v1151
    %1568 = vmatprep.subr.bf16.mxu0 %v1146
    %1569 = vmatpush1.bf16.msra.mxu0 %v1145
    %1570 = vmatprep.subr.bf16.mxu0 %v1236
    %1571 = vmatpush2.bf16.msra.mxu0 %v1235
    %1572 = vmatprep.subr.bf16.mxu0 %v1230
    %1573 = vmatpush2.bf16.msra.mxu0 %v1229
    %1574 = vmatprep.subr.bf16.mxu0 %v1224
    %1575 = vmatpush2.bf16.msra.mxu0 %v1223
    %1576 = vmatprep.subr.bf16.mxu0 %v1218
    %1577 = vmatpush2.bf16.msra.mxu0 %v1217
    %1578 = vmatprep.subr.bf16.mxu0 %v1212
    %1579 = vmatpush2.bf16.msra.mxu0 %v1211
    %1580 = vmatprep.subr.bf16.mxu0 %v1206
    %1581 = vmatpush2.bf16.msra.mxu0 %v1205
    %1582 = vmatprep.subr.bf16.mxu0 %v1200
    %1583 = vmatpush2.bf16.msra.mxu0 %v1199
    %1584 = vmatprep.subr.bf16.mxu0 %v1194
    %1585 = vmatpush2.bf16.msra.mxu0 %v1193
    %1586 = vmatprep.mubr.bf16.mxu0 %v277
    %1587 = vmatmul.mubr.bf16.gmra.mxu0 %v275
    %v1588 = vpop.f32.mrf.mxu0
    %v1589 = vadd.f32 %v1548, %v1588
    %v1590 = vpop.f32.mrf.mxu0
    %v1591 = vadd.f32 %v1550, %v1590
    %v1592 = vpop.f32.mrf.mxu0
    %v1593 = vpop.f32.mrf.mxu0
    %1594 = vdwg.mxu0
    %1595 = vmatprep.subr.bf16.mxu0 %v1094
    %1596 = vmatpush1.bf16.msra.mxu0 %v1093
    %1597 = vmatprep.subr.bf16.mxu0 %v1088
    %1598 = vmatpush1.bf16.msra.mxu0 %v1087
    %1599 = vmatprep.subr.bf16.mxu0 %v1082
    %1600 = vmatpush1.bf16.msra.mxu0 %v1081
    %1601 = vmatprep.subr.bf16.mxu0 %v1076
    %1602 = vmatpush1.bf16.msra.mxu0 %v1075
    %1603 = vmatprep.subr.bf16.mxu0 %v1070
    %1604 = vmatpush1.bf16.msra.mxu0 %v1069
    %1605 = vmatprep.subr.bf16.mxu0 %v1064
    %1606 = vmatpush1.bf16.msra.mxu0 %v1063
    %1607 = vmatprep.subr.bf16.mxu0 %v1058
    %1608 = vmatpush1.bf16.msra.mxu0 %v1057
    %1609 = vmatprep.subr.bf16.mxu0 %v1052
    %1610 = vmatpush1.bf16.msra.mxu0 %v1051
    %1611 = vmatprep.subr.bf16.mxu0 %v1142
    %1612 = vmatpush2.bf16.msra.mxu0 %v1141
    %1613 = vmatprep.subr.bf16.mxu0 %v1136
    %1614 = vmatpush2.bf16.msra.mxu0 %v1135
    %1615 = vmatprep.subr.bf16.mxu0 %v1130
    %1616 = vmatpush2.bf16.msra.mxu0 %v1129
    %1617 = vmatprep.subr.bf16.mxu0 %v1124
    %1618 = vmatpush2.bf16.msra.mxu0 %v1123
    %1619 = vmatprep.subr.bf16.mxu0 %v1118
    %1620 = vmatpush2.bf16.msra.mxu0 %v1117
    %1621 = vmatprep.subr.bf16.mxu0 %v1112
    %1622 = vmatpush2.bf16.msra.mxu0 %v1111
    %1623 = vmatprep.subr.bf16.mxu0 %v1106
    %1624 = vmatpush2.bf16.msra.mxu0 %v1105
    %1625 = vmatprep.subr.bf16.mxu0 %v1100
    %1626 = vmatpush2.bf16.msra.mxu0 %v1099
    %1627 = vmatprep.mubr.bf16.mxu0 %v273
    %1628 = vmatmul.mubr.bf16.gmra.mxu0 %v271
    %v1629 = vpop.f32.mrf.mxu0
    %v1630 = vadd.f32 0.0, %v1629
    %v1631 = vpop.f32.mrf.mxu0
    %v1632 = vadd.f32 0.0, %v1631
    %v1633 = vpop.f32.mrf.mxu0
    %v1634 = vpop.f32.mrf.mxu0
    %1635 = vdwg.mxu0
    %1636 = vmatprep.subr.bf16.mxu0 %v1190
    %1637 = vmatpush1.bf16.msra.mxu0 %v1189
    %1638 = vmatprep.subr.bf16.mxu0 %v1184
    %1639 = vmatpush1.bf16.msra.mxu0 %v1183
    %1640 = vmatprep.subr.bf16.mxu0 %v1178
    %1641 = vmatpush1.bf16.msra.mxu0 %v1177
    %1642 = vmatprep.subr.bf16.mxu0 %v1172
    %1643 = vmatpush1.bf16.msra.mxu0 %v1171
    %1644 = vmatprep.subr.bf16.mxu0 %v1166
    %1645 = vmatpush1.bf16.msra.mxu0 %v1165
    %1646 = vmatprep.subr.bf16.mxu0 %v1160
    %1647 = vmatpush1.bf16.msra.mxu0 %v1159
    %1648 = vmatprep.subr.bf16.mxu0 %v1154
    %1649 = vmatpush1.bf16.msra.mxu0 %v1153
    %1650 = vmatprep.subr.bf16.mxu0 %v1148
    %1651 = vmatpush1.bf16.msra.mxu0 %v1147
    %1652 = vmatprep.subr.bf16.mxu0 %v1238
    %1653 = vmatpush2.bf16.msra.mxu0 %v1237
    %1654 = vmatprep.subr.bf16.mxu0 %v1232
    %1655 = vmatpush2.bf16.msra.mxu0 %v1231
    %1656 = vmatprep.subr.bf16.mxu0 %v1226
    %1657 = vmatpush2.bf16.msra.mxu0 %v1225
    %1658 = vmatprep.subr.bf16.mxu0 %v1220
    %1659 = vmatpush2.bf16.msra.mxu0 %v1219
    %1660 = vmatprep.subr.bf16.mxu0 %v1214
    %1661 = vmatpush2.bf16.msra.mxu0 %v1213
    %1662 = vmatprep.subr.bf16.mxu0 %v1208
    %1663 = vmatpush2.bf16.msra.mxu0 %v1207
    %1664 = vmatprep.subr.bf16.mxu0 %v1202
    %1665 = vmatpush2.bf16.msra.mxu0 %v1201
    %1666 = vmatprep.subr.bf16.mxu0 %v1196
    %1667 = vmatpush2.bf16.msra.mxu0 %v1195
    %1668 = vmatprep.mubr.bf16.mxu0 %v277
    %1669 = vmatmul.mubr.bf16.gmra.mxu0 %v275
    %v1670 = vpop.f32.mrf.mxu0
    %v1671 = vadd.f32 %v1630, %v1670
    %v1672 = vpop.f32.mrf.mxu0
    %v1673 = vadd.f32 %v1632, %v1672
    %v1674 = vpop.f32.mrf.mxu0
    %v1675 = vpop.f32.mrf.mxu0
    %1676 = vdwg.mxu0
    %v1677 = vmax.f32 %v1507, 0.0
    %v1678 = vmax.f32 %v1509, 0.0
    %v1679 = vmax.f32 %v1589, 0.0
    %v1680 = vmax.f32 %v1591, 0.0
    %v1681 = vmax.f32 %v1671, 0.0
    %v1682 = vmax.f32 %v1673, 0.0
    %v1683 = vpack.c.bf16 %v1677, %v1677
    %v1684 = vpack.c.bf16 %v1678, %v1678
    %v1685 = vpack.c.bf16 %v1679, %v1679
    %v1686 = vpack.c.bf16 %v1680, %v1680
    %v1687 = vpack.c.bf16 %v1681, %v1681
    %v1688 = vpack.c.bf16 %v1682, %v1682
    %v1689 = vld [vmem:[#allocation5] sm:$0xf]
    %v1690 = vld [vmem:[#allocation5 + $0x4] sm:$0xf]
    %v1691 = vld [vmem:[#allocation5 + $0x8] sm:$0xf]
    %v1692 = vld [vmem:[#allocation5 + $0xc] sm:$0xf]
    %v1693 = vld [vmem:[#allocation5 + $0x10] sm:$0xf]
    %v1694 = vld [vmem:[#allocation5 + $0x14] sm:$0xf]
    %v1695 = vld [vmem:[#allocation5 + $0x18] sm:$0xf]
    %v1696 = vld [vmem:[#allocation5 + $0x1c] sm:$0xf]
    %v1697 = vld [vmem:[#allocation5 + $0x20] sm:$0xf]
    %v1698 = vld [vmem:[#allocation5 + $0x24] sm:$0xf]
    %v1699 = vld [vmem:[#allocation5 + $0x28] sm:$0xf]
    %v1700 = vld [vmem:[#allocation5 + $0x2c] sm:$0xf]
    %v1701 = vld [vmem:[#allocation5 + $0x30] sm:$0xf]
    %v1702 = vld [vmem:[#allocation5 + $0x34] sm:$0xf]
    %v1703 = vld [vmem:[#allocation5 + $0x38] sm:$0xf]
    %v1704 = vld [vmem:[#allocation5 + $0x3c] sm:$0xf]
    %v1705 = vld [vmem:[#allocation5 + $0x40] sm:$0xf]
    %v1706 = vld [vmem:[#allocation5 + $0x44] sm:$0xf]
    %v1707 = vld [vmem:[#allocation5 + $0x48] sm:$0xf]
    %v1708 = vld [vmem:[#allocation5 + $0x4c] sm:$0xf]
    %v1709 = vld [vmem:[#allocation5 + $0x50] sm:$0xf]
    %v1710 = vld [vmem:[#allocation5 + $0x54] sm:$0xf]
    %v1711 = vld [vmem:[#allocation5 + $0x58] sm:$0xf]
    %v1712 = vld [vmem:[#allocation5 + $0x5c] sm:$0xf]
    %v1713 = vld [vmem:[#allocation5 + $0x60] sm:$0xf]
    %v1714 = vld [vmem:[#allocation5 + $0x64] sm:$0xf]
    %v1715 = vld [vmem:[#allocation5 + $0x68] sm:$0xf]
    %v1716 = vld [vmem:[#allocation5 + $0x6c] sm:$0xf]
    %v1717 = vld [vmem:[#allocation5 + $0x70] sm:$0xf]
    %v1718 = vld [vmem:[#allocation5 + $0x74] sm:$0xf]
    %v1719 = vld [vmem:[#allocation5 + $0x78] sm:$0xf]
    %v1720 = vld [vmem:[#allocation5 + $0x7c] sm:$0xf]
    %v1721 = vld [vmem:[#allocation5 + $0x80] sm:$0xf]
    %v1722 = vld [vmem:[#allocation5 + $0x84] sm:$0xf]
    %v1723 = vld [vmem:[#allocation5 + $0x88] sm:$0xf]
    %v1724 = vld [vmem:[#allocation5 + $0x8c] sm:$0xf]
    %v1725 = vld [vmem:[#allocation5 + $0x90] sm:$0xf]
    %v1726 = vld [vmem:[#allocation5 + $0x94] sm:$0xf]
    %v1727 = vld [vmem:[#allocation5 + $0x98] sm:$0xf]
    %v1728 = vld [vmem:[#allocation5 + $0x9c] sm:$0xf]
    %v1729 = vld [vmem:[#allocation5 + $0xa0] sm:$0xf]
    %v1730 = vld [vmem:[#allocation5 + $0xa4] sm:$0xf]
    %v1731 = vld [vmem:[#allocation5 + $0xa8] sm:$0xf]
    %v1732 = vld [vmem:[#allocation5 + $0xac] sm:$0xf]
    %v1733 = vld [vmem:[#allocation5 + $0xb0] sm:$0xf]
    %v1734 = vld [vmem:[#allocation5 + $0xb4] sm:$0xf]
    %v1735 = vld [vmem:[#allocation5 + $0xb8] sm:$0xf]
    %v1736 = vld [vmem:[#allocation5 + $0xbc] sm:$0xf]
    %v1737 = vld [vmem:[#allocation5 + $0xc0] sm:$0xf]
    %v1738 = vld [vmem:[#allocation5 + $0xc4] sm:$0xf]
    %v1739 = vld [vmem:[#allocation5 + $0xc8] sm:$0xf]
    %v1740 = vld [vmem:[#allocation5 + $0xcc] sm:$0xf]
    %v1741 = vld [vmem:[#allocation5 + $0xd0] sm:$0xf]
    %v1742 = vld [vmem:[#allocation5 + $0xd4] sm:$0xf]
    %v1743 = vld [vmem:[#allocation5 + $0xd8] sm:$0xf]
    %v1744 = vld [vmem:[#allocation5 + $0xdc] sm:$0xf]
    %v1745 = vld [vmem:[#allocation5 + $0xe0] sm:$0xf]
    %v1746 = vld [vmem:[#allocation5 + $0xe4] sm:$0xf]
    %v1747 = vld [vmem:[#allocation5 + $0xe8] sm:$0xf]
    %v1748 = vld [vmem:[#allocation5 + $0xec] sm:$0xf]
    %v1749 = vld [vmem:[#allocation5 + $0xf0] sm:$0xf]
    %v1750 = vld [vmem:[#allocation5 + $0xf4] sm:$0xf]
    %v1751 = vld [vmem:[#allocation5 + $0xf8] sm:$0xf]
    %v1752 = vld [vmem:[#allocation5 + $0xfc] sm:$0xf]
    %v1753 = vld [vmem:[#allocation5 + $0x100] sm:$0xf]
    %v1754 = vld [vmem:[#allocation5 + $0x104] sm:$0xf]
    %v1755 = vld [vmem:[#allocation5 + $0x108] sm:$0xf]
    %v1756 = vld [vmem:[#allocation5 + $0x10c] sm:$0xf]
    %v1757 = vld [vmem:[#allocation5 + $0x110] sm:$0xf]
    %v1758 = vld [vmem:[#allocation5 + $0x114] sm:$0xf]
    %v1759 = vld [vmem:[#allocation5 + $0x118] sm:$0xf]
    %v1760 = vld [vmem:[#allocation5 + $0x11c] sm:$0xf]
    %v1761 = vld [vmem:[#allocation5 + $0x120] sm:$0xf]
    %v1762 = vld [vmem:[#allocation5 + $0x124] sm:$0xf]
    %v1763 = vld [vmem:[#allocation5 + $0x128] sm:$0xf]
    %v1764 = vld [vmem:[#allocation5 + $0x12c] sm:$0xf]
    %v1765 = vld [vmem:[#allocation5 + $0x130] sm:$0xf]
    %v1766 = vld [vmem:[#allocation5 + $0x134] sm:$0xf]
    %v1767 = vld [vmem:[#allocation5 + $0x138] sm:$0xf]
    %v1768 = vld [vmem:[#allocation5 + $0x13c] sm:$0xf]
    %v1769 = vld [vmem:[#allocation5 + $0x140] sm:$0xf]
    %v1770 = vld [vmem:[#allocation5 + $0x144] sm:$0xf]
    %v1771 = vld [vmem:[#allocation5 + $0x148] sm:$0xf]
    %v1772 = vld [vmem:[#allocation5 + $0x14c] sm:$0xf]
    %v1773 = vld [vmem:[#allocation5 + $0x150] sm:$0xf]
    %v1774 = vld [vmem:[#allocation5 + $0x154] sm:$0xf]
    %v1775 = vld [vmem:[#allocation5 + $0x158] sm:$0xf]
    %v1776 = vld [vmem:[#allocation5 + $0x15c] sm:$0xf]
    %v1777 = vld [vmem:[#allocation5 + $0x160] sm:$0xf]
    %v1778 = vld [vmem:[#allocation5 + $0x164] sm:$0xf]
    %v1779 = vld [vmem:[#allocation5 + $0x168] sm:$0xf]
    %v1780 = vld [vmem:[#allocation5 + $0x16c] sm:$0xf]
    %v1781 = vld [vmem:[#allocation5 + $0x170] sm:$0xf]
    %v1782 = vld [vmem:[#allocation5 + $0x174] sm:$0xf]
    %v1783 = vld [vmem:[#allocation5 + $0x178] sm:$0xf]
    %v1784 = vld [vmem:[#allocation5 + $0x17c] sm:$0xf]
    %v1785 = vld [vmem:[%s6] sm:$0x1]
    %v1787 = vlaneseq
    %v1788 = vshrl.u32 %v1787, 7
    %v1789 = vsub.s32 0, %v1788
    %v1790 = vrot.slane %v1785, %v1789
    %v1888 = vunpack.c.l.b16 %v1689
    %v1889 = vunpack.c.l.b16 %v1690
    %v1890 = vunpack.c.l.b16 %v1691
    %v1891 = vunpack.c.l.b16 %v1692
    %v1892 = vunpack.c.l.b16 %v1693
    %v1893 = vunpack.c.l.b16 %v1694
    %v1894 = vunpack.c.l.b16 %v1695
    %v1895 = vunpack.c.l.b16 %v1696
    %v1896 = vunpack.c.l.b16 %v1697
    %v1897 = vunpack.c.l.b16 %v1698
    %v1898 = vunpack.c.l.b16 %v1699
    %v1899 = vunpack.c.l.b16 %v1700
    %v1900 = vunpack.c.l.b16 %v1701
    %v1901 = vunpack.c.l.b16 %v1702
    %v1902 = vunpack.c.l.b16 %v1703
    %v1903 = vunpack.c.l.b16 %v1704
    %v1904 = vunpack.c.l.b16 %v1705
    %v1905 = vunpack.c.l.b16 %v1706
    %v1906 = vunpack.c.l.b16 %v1707
    %v1907 = vunpack.c.l.b16 %v1708
    %v1908 = vunpack.c.l.b16 %v1709
    %v1909 = vunpack.c.l.b16 %v1710
    %v1910 = vunpack.c.l.b16 %v1711
    %v1911 = vunpack.c.l.b16 %v1712
    %v1912 = vunpack.c.l.b16 %v1713
    %v1913 = vunpack.c.l.b16 %v1714
    %v1914 = vunpack.c.l.b16 %v1715
    %v1915 = vunpack.c.l.b16 %v1716
    %v1916 = vunpack.c.l.b16 %v1717
    %v1917 = vunpack.c.l.b16 %v1718
    %v1918 = vunpack.c.l.b16 %v1719
    %v1919 = vunpack.c.l.b16 %v1720
    %v1920 = vunpack.c.l.b16 %v1721
    %v1921 = vunpack.c.l.b16 %v1722
    %v1922 = vunpack.c.l.b16 %v1723
    %v1923 = vunpack.c.l.b16 %v1724
    %v1924 = vunpack.c.l.b16 %v1725
    %v1925 = vunpack.c.l.b16 %v1726
    %v1926 = vunpack.c.l.b16 %v1727
    %v1927 = vunpack.c.l.b16 %v1728
    %v1928 = vunpack.c.l.b16 %v1729
    %v1929 = vunpack.c.l.b16 %v1730
    %v1930 = vunpack.c.l.b16 %v1731
    %v1931 = vunpack.c.l.b16 %v1732
    %v1932 = vunpack.c.l.b16 %v1733
    %v1933 = vunpack.c.l.b16 %v1734
    %v1934 = vunpack.c.l.b16 %v1735
    %v1935 = vunpack.c.l.b16 %v1736
    %v1936 = vunpack.c.l.b16 %v1737
    %v1937 = vunpack.c.l.b16 %v1738
    %v1938 = vunpack.c.l.b16 %v1739
    %v1939 = vunpack.c.l.b16 %v1740
    %v1940 = vunpack.c.l.b16 %v1741
    %v1941 = vunpack.c.l.b16 %v1742
    %v1942 = vunpack.c.l.b16 %v1743
    %v1943 = vunpack.c.l.b16 %v1744
    %v1944 = vunpack.c.l.b16 %v1745
    %v1945 = vunpack.c.l.b16 %v1746
    %v1946 = vunpack.c.l.b16 %v1747
    %v1947 = vunpack.c.l.b16 %v1748
    %v1948 = vunpack.c.l.b16 %v1749
    %v1949 = vunpack.c.l.b16 %v1750
    %v1950 = vunpack.c.l.b16 %v1751
    %v1951 = vunpack.c.l.b16 %v1752
    %v1952 = vunpack.c.l.b16 %v1753
    %v1953 = vunpack.c.l.b16 %v1754
    %v1954 = vunpack.c.l.b16 %v1755
    %v1955 = vunpack.c.l.b16 %v1756
    %v1956 = vunpack.c.l.b16 %v1757
    %v1957 = vunpack.c.l.b16 %v1758
    %v1958 = vunpack.c.l.b16 %v1759
    %v1959 = vunpack.c.l.b16 %v1760
    %v1960 = vunpack.c.l.b16 %v1761
    %v1961 = vunpack.c.l.b16 %v1762
    %v1962 = vunpack.c.l.b16 %v1763
    %v1963 = vunpack.c.l.b16 %v1764
    %v1964 = vunpack.c.l.b16 %v1765
    %v1965 = vunpack.c.l.b16 %v1766
    %v1966 = vunpack.c.l.b16 %v1767
    %v1967 = vunpack.c.l.b16 %v1768
    %v1968 = vunpack.c.l.b16 %v1769
    %v1969 = vunpack.c.l.b16 %v1770
    %v1970 = vunpack.c.l.b16 %v1771
    %v1971 = vunpack.c.l.b16 %v1772
    %v1972 = vunpack.c.l.b16 %v1773
    %v1973 = vunpack.c.l.b16 %v1774
    %v1974 = vunpack.c.l.b16 %v1775
    %v1975 = vunpack.c.l.b16 %v1776
    %v1976 = vunpack.c.l.b16 %v1777
    %v1977 = vunpack.c.l.b16 %v1778
    %v1978 = vunpack.c.l.b16 %v1779
    %v1979 = vunpack.c.l.b16 %v1780
    %v1980 = vunpack.c.l.b16 %v1781
    %v1981 = vunpack.c.l.b16 %v1782
    %v1982 = vunpack.c.l.b16 %v1783
    %v1983 = vunpack.c.l.b16 %v1784
    %v1984 = vpack.c.b16 %v1889, %v1888
    %v1985 = vpack.c.b16 %v1891, %v1890
    %v1986 = vpack.c.b16 %v1893, %v1892
    %v1987 = vpack.c.b16 %v1895, %v1894
    %v1988 = vpack.c.b16 %v1897, %v1896
    %v1989 = vpack.c.b16 %v1899, %v1898
    %v1990 = vpack.c.b16 %v1901, %v1900
    %v1991 = vpack.c.b16 %v1903, %v1902
    %v1992 = vpack.c.b16 %v1905, %v1904
    %v1993 = vpack.c.b16 %v1907, %v1906
    %v1994 = vpack.c.b16 %v1909, %v1908
    %v1995 = vpack.c.b16 %v1911, %v1910
    %v1996 = vpack.c.b16 %v1913, %v1912
    %v1997 = vpack.c.b16 %v1915, %v1914
    %v1998 = vpack.c.b16 %v1917, %v1916
    %v1999 = vpack.c.b16 %v1919, %v1918
    %v2000 = vpack.c.b16 %v1921, %v1920
    %v2001 = vpack.c.b16 %v1923, %v1922
    %v2002 = vpack.c.b16 %v1925, %v1924
    %v2003 = vpack.c.b16 %v1927, %v1926
    %v2004 = vpack.c.b16 %v1929, %v1928
    %v2005 = vpack.c.b16 %v1931, %v1930
    %v2006 = vpack.c.b16 %v1933, %v1932
    %v2007 = vpack.c.b16 %v1935, %v1934
    %v2008 = vpack.c.b16 %v1937, %v1936
    %v2009 = vpack.c.b16 %v1939, %v1938
    %v2010 = vpack.c.b16 %v1941, %v1940
    %v2011 = vpack.c.b16 %v1943, %v1942
    %v2012 = vpack.c.b16 %v1945, %v1944
    %v2013 = vpack.c.b16 %v1947, %v1946
    %v2014 = vpack.c.b16 %v1949, %v1948
    %v2015 = vpack.c.b16 %v1951, %v1950
    %v2016 = vpack.c.b16 %v1953, %v1952
    %v2017 = vpack.c.b16 %v1955, %v1954
    %v2018 = vpack.c.b16 %v1957, %v1956
    %v2019 = vpack.c.b16 %v1959, %v1958
    %v2020 = vpack.c.b16 %v1961, %v1960
    %v2021 = vpack.c.b16 %v1963, %v1962
    %v2022 = vpack.c.b16 %v1965, %v1964
    %v2023 = vpack.c.b16 %v1967, %v1966
    %v2024 = vpack.c.b16 %v1969, %v1968
    %v2025 = vpack.c.b16 %v1971, %v1970
    %v2026 = vpack.c.b16 %v1973, %v1972
    %v2027 = vpack.c.b16 %v1975, %v1974
    %v2028 = vpack.c.b16 %v1977, %v1976
    %v2029 = vpack.c.b16 %v1979, %v1978
    %v2030 = vpack.c.b16 %v1981, %v1980
    %v2031 = vpack.c.b16 %v1983, %v1982
    %2080 = vmatprep.subr.bf16.mxu0 0
    %2081 = vmatpush1.bf16.msra.mxu0 %v1991
    %2082 = vmatprep.subr.bf16.mxu0 0
    %2083 = vmatpush1.bf16.msra.mxu0 %v1990
    %2084 = vmatprep.subr.bf16.mxu0 0
    %2085 = vmatpush1.bf16.msra.mxu0 %v1989
    %2086 = vmatprep.subr.bf16.mxu0 0
    %2087 = vmatpush1.bf16.msra.mxu0 %v1988
    %2088 = vmatprep.subr.bf16.mxu0 0
    %2089 = vmatpush1.bf16.msra.mxu0 %v1987
    %2090 = vmatprep.subr.bf16.mxu0 0
    %2091 = vmatpush1.bf16.msra.mxu0 %v1986
    %2092 = vmatprep.subr.bf16.mxu0 0
    %2093 = vmatpush1.bf16.msra.mxu0 %v1985
    %2094 = vmatprep.subr.bf16.mxu0 0
    %2095 = vmatpush1.bf16.msra.mxu0 %v1984
    %2096 = vmatprep.subr.bf16.mxu0 0
    %2097 = vmatpush2.bf16.msra.mxu0 %v1999
    %2098 = vmatprep.subr.bf16.mxu0 0
    %2099 = vmatpush2.bf16.msra.mxu0 %v1998
    %2100 = vmatprep.subr.bf16.mxu0 0
    %2101 = vmatpush2.bf16.msra.mxu0 %v1997
    %2102 = vmatprep.subr.bf16.mxu0 0
    %2103 = vmatpush2.bf16.msra.mxu0 %v1996
    %2104 = vmatprep.subr.bf16.mxu0 0
    %2105 = vmatpush2.bf16.msra.mxu0 %v1995
    %2106 = vmatprep.subr.bf16.mxu0 0
    %2107 = vmatpush2.bf16.msra.mxu0 %v1994
    %2108 = vmatprep.subr.bf16.mxu0 0
    %2109 = vmatpush2.bf16.msra.mxu0 %v1993
    %2110 = vmatprep.subr.bf16.mxu0 0
    %2111 = vmatpush2.bf16.msra.mxu0 %v1992
    %2112 = vmatprep.mubr.bf16.mxu0 %v1684
    %2113 = vmatmul.mubr.bf16.gmra.mxu0 %v1683
    %v2114 = vpop.f32.mrf.mxu0
    %v2115 = vadd.f32 %v1790, %v2114
    %v2116 = vpop.f32.mrf.mxu0
    %v2117 = vpop.f32.mrf.mxu0
    %v2118 = vpop.f32.mrf.mxu0
    %2119 = vdwg.mxu0
    %2120 = vmatprep.subr.bf16.mxu0 0
    %2121 = vmatpush1.bf16.msra.mxu0 %v2007
    %2122 = vmatprep.subr.bf16.mxu0 0
    %2123 = vmatpush1.bf16.msra.mxu0 %v2006
    %2124 = vmatprep.subr.bf16.mxu0 0
    %2125 = vmatpush1.bf16.msra.mxu0 %v2005
    %2126 = vmatprep.subr.bf16.mxu0 0
    %2127 = vmatpush1.bf16.msra.mxu0 %v2004
    %2128 = vmatprep.subr.bf16.mxu0 0
    %2129 = vmatpush1.bf16.msra.mxu0 %v2003
    %2130 = vmatprep.subr.bf16.mxu0 0
    %2131 = vmatpush1.bf16.msra.mxu0 %v2002
    %2132 = vmatprep.subr.bf16.mxu0 0
    %2133 = vmatpush1.bf16.msra.mxu0 %v2001
    %2134 = vmatprep.subr.bf16.mxu0 0
    %2135 = vmatpush1.bf16.msra.mxu0 %v2000
    %2136 = vmatprep.subr.bf16.mxu0 0
    %2137 = vmatpush2.bf16.msra.mxu0 %v2015
    %2138 = vmatprep.subr.bf16.mxu0 0
    %2139 = vmatpush2.bf16.msra.mxu0 %v2014
    %2140 = vmatprep.subr.bf16.mxu0 0
    %2141 = vmatpush2.bf16.msra.mxu0 %v2013
    %2142 = vmatprep.subr.bf16.mxu0 0
    %2143 = vmatpush2.bf16.msra.mxu0 %v2012
    %2144 = vmatprep.subr.bf16.mxu0 0
    %2145 = vmatpush2.bf16.msra.mxu0 %v2011
    %2146 = vmatprep.subr.bf16.mxu0 0
    %2147 = vmatpush2.bf16.msra.mxu0 %v2010
    %2148 = vmatprep.subr.bf16.mxu0 0
    %2149 = vmatpush2.bf16.msra.mxu0 %v2009
    %2150 = vmatprep.subr.bf16.mxu0 0
    %2151 = vmatpush2.bf16.msra.mxu0 %v2008
    %2152 = vmatprep.mubr.bf16.mxu0 %v1686
    %2153 = vmatmul.mubr.bf16.gmra.mxu0 %v1685
    %v2154 = vpop.f32.mrf.mxu0
    %v2155 = vadd.f32 %v2115, %v2154
    %v2156 = vpop.f32.mrf.mxu0
    %v2157 = vpop.f32.mrf.mxu0
    %v2158 = vpop.f32.mrf.mxu0
    %2159 = vdwg.mxu0
    %2160 = vmatprep.subr.bf16.mxu0 0
    %2161 = vmatpush1.bf16.msra.mxu0 %v2023
    %2162 = vmatprep.subr.bf16.mxu0 0
    %2163 = vmatpush1.bf16.msra.mxu0 %v2022
    %2164 = vmatprep.subr.bf16.mxu0 0
    %2165 = vmatpush1.bf16.msra.mxu0 %v2021
    %2166 = vmatprep.subr.bf16.mxu0 0
    %2167 = vmatpush1.bf16.msra.mxu0 %v2020
    %2168 = vmatprep.subr.bf16.mxu0 0
    %2169 = vmatpush1.bf16.msra.mxu0 %v2019
    %2170 = vmatprep.subr.bf16.mxu0 0
    %2171 = vmatpush1.bf16.msra.mxu0 %v2018
    %2172 = vmatprep.subr.bf16.mxu0 0
    %2173 = vmatpush1.bf16.msra.mxu0 %v2017
    %2174 = vmatprep.subr.bf16.mxu0 0
    %2175 = vmatpush1.bf16.msra.mxu0 %v2016
    %2176 = vmatprep.subr.bf16.mxu0 0
    %2177 = vmatpush2.bf16.msra.mxu0 %v2031
    %2178 = vmatprep.subr.bf16.mxu0 0
    %2179 = vmatpush2.bf16.msra.mxu0 %v2030
    %2180 = vmatprep.subr.bf16.mxu0 0
    %2181 = vmatpush2.bf16.msra.mxu0 %v2029
    %2182 = vmatprep.subr.bf16.mxu0 0
    %2183 = vmatpush2.bf16.msra.mxu0 %v2028
    %2184 = vmatprep.subr.bf16.mxu0 0
    %2185 = vmatpush2.bf16.msra.mxu0 %v2027
    %2186 = vmatprep.subr.bf16.mxu0 0
    %2187 = vmatpush2.bf16.msra.mxu0 %v2026
    %2188 = vmatprep.subr.bf16.mxu0 0
    %2189 = vmatpush2.bf16.msra.mxu0 %v2025
    %2190 = vmatprep.subr.bf16.mxu0 0
    %2191 = vmatpush2.bf16.msra.mxu0 %v2024
    %2192 = vmatprep.mubr.bf16.mxu0 %v1688
    %2193 = vmatmul.mubr.bf16.gmra.mxu0 %v1687
    %v2194 = vpop.f32.mrf.mxu0
    %v2195 = vadd.f32 %v2155, %v2194
    %v2196 = vpop.f32.mrf.mxu0
    %v2197 = vpop.f32.mrf.mxu0
    %v2198 = vpop.f32.mrf.mxu0
    %2199 = vdwg.mxu0
    %2200 = vst [vmem:[#allocation7] sm:$0x3] %v2195
    // Predicated region
    $region38: #{tpu_custom_call.1} parent=1 // pred_check
      _
    $region39: #{tpu_custom_call.1} parent=1 // pred_check_branch
      %2202 = sbr.rel (0) target = $region41
    $region40: #{tpu_custom_call.1} parent=1 // pred_region
      %s2204 = ssub.s32 32, 32
      %2205 = vsyncadd [#allocation4], %s2204
      %s2207 = sshll.u32 [#allocation7], 4
      %s2208 = int_to_ptr.vmem [resolvable:$true] %s2207
      %2210 = dma.vmem_to_hbm [thread:$0]  %s2208, 32, %s7, [#allocation4]
    $region41: #{tpu_custom_call.1} parent=1 // pred_fallthru
      _
    // Predicated region
    $region42: #{tpu_custom_call.1} parent=1 // pred_check
      _
    $region43: #{tpu_custom_call.1} parent=1 // pred_check_branch
      %2212 = sbr.rel (0) target = $region45
    $region44: #{tpu_custom_call.1} parent=1 // pred_region
      %2213 = dma.done [#allocation4], 32
    $region45: #{tpu_custom_call.1} parent=1 // pred_fallthru
      _
    %2214 = vsyncpa [#allocation3], 1
    %2215 = vsyncpa [#allocation6], 1
    %2216 = vsyncpa [#allocation4], 1

</llo_original>
